<compile_context>
chip_gen: v6e
topology: v6e:2x2x1
jax: 0.10.0
libtpu: 0.0.40
codegen_flags: <defaults>
</compile_context>

<pallas_src>
import math
from functools import partial

import jax
import jax.numpy as jnp
from jax.experimental import pallas as pl
from jax.experimental.pallas import tpu as pltpu


def _vmem_limit_bytes():
    """~3/4 of physical VMEM: ~96 MiB on v5e/v6e (128 MiB), ~48 MiB on v7x (64 MiB)."""
    cap = 64 * 1024 * 1024
    try:
        cap = int(getattr(pltpu.get_tpu_info(), "vmem_capacity_bytes", 0)) or cap
    except Exception:
        pass
    return int(min(cap * 3 // 4, 96 * 1024 * 1024))


# ----------------------------------------------------------------------------
# Fused kernel: patch-embed + all transformer layers + segmentation head/argmax
# ----------------------------------------------------------------------------

def _dit_stack_kernel(x_ref, pw_ref, pb_ref,
                      ln1g_ref, ln1b_ref,
                      wq_ref, bq_ref, wk_ref, bk_ref, wv_ref, bv_ref,
                      wo_ref, bo_ref,
                      ln2g_ref, ln2b_ref,
                      w1_ref, b1_ref, w2_ref, b2_ref,
                      hw_ref, hb_ref,
                      o_ref,
                      h_scr,
                      *, n_heads, eps):
    l = pl.program_id(1)
    n_layers = pl.num_programs(1)
    T, D = h_scr.shape
    dh = D // n_heads

    # ---- layer 0: patch-embed matmul seeds the residual stream (VMEM scratch) ----
    @pl.when(l == 0)
    def _():
        x = x_ref[0]                                                # (T, C*P*P) bf16
        h0 = jnp.dot(x, pw_ref[...], preferred_element_type=jnp.float32)
        h_scr[...] = h0 + pb_ref[...]

    h = h_scr[...]                                                  # (T, D) f32

    def layer_norm(x, g, b):
        mu = jnp.mean(x, axis=-1, keepdims=True)
        xc = x - mu
        var = jnp.mean(xc * xc, axis=-1, keepdims=True)
        return xc * jax.lax.rsqrt(var + eps) * g + b

    # ---- LN1 + Q/K/V projections (bf16 MXU, f32 accumulation) ----
    hn = layer_norm(h, ln1g_ref[0], ln1b_ref[0]).astype(jnp.bfloat16)
    # 1/sqrt(dh) softmax scale is folded into wq/bq on the host.
    q = jnp.dot(hn, wq_ref[0], preferred_element_type=jnp.float32) + bq_ref[0]
    k = jnp.dot(hn, wk_ref[0], preferred_element_type=jnp.float32) + bk_ref[0]
    v = jnp.dot(hn, wv_ref[0], preferred_element_type=jnp.float32) + bv_ref[0]

    # ---- multi-head self-attention, batched over a leading heads axis ----
    q = jnp.transpose(q.reshape(T, n_heads, dh), (1, 0, 2)).astype(jnp.bfloat16)
    k = jnp.transpose(k.reshape(T, n_heads, dh), (1, 0, 2)).astype(jnp.bfloat16)
    v = jnp.transpose(v.reshape(T, n_heads, dh), (1, 0, 2)).astype(jnp.bfloat16)
    # TODO(synk): for production token counts (2-4k) the (H,T,T) scores need
    # flash-style query/KV tiling; full scores are fine at these demo shapes.
    s = jnp.einsum('hqd,hkd->hqk', q, k,
                   preferred_element_type=jnp.float32)              # (H, T, T) f32
    m = jnp.max(s, axis=-1, keepdims=True)
    p = jnp.exp(s - m)
    p = p * pl.reciprocal(jnp.sum(p, axis=-1, keepdims=True), approx=True)
    ctx = jnp.einsum('hqk,hkd->hqd', p.astype(jnp.bfloat16), v,
                     preferred_element_type=jnp.float32)            # (H, T, dh)
    ctx = jnp.transpose(ctx, (1, 0, 2)).reshape(T, D).astype(jnp.bfloat16)

    # ---- output projection (contraction at K = D) + residual ----
    h = h + jnp.dot(ctx, wo_ref[0], preferred_element_type=jnp.float32) + bo_ref[0]

    # ---- LN2 + GELU MLP + residual ----
    hn2 = layer_norm(h, ln2g_ref[0], ln2b_ref[0]).astype(jnp.bfloat16)
    u = jnp.dot(hn2, w1_ref[0], preferred_element_type=jnp.float32) + b1_ref[0]
    # TODO(synk): BEiT uses exact erf-GELU; tanh approximation used here.
    u = 0.5 * u * (1.0 + jnp.tanh(0.7978845608028654 * (u + 0.044715 * u * u * u)))
    h = h + jnp.dot(u.astype(jnp.bfloat16), w2_ref[0],
                    preferred_element_type=jnp.float32) + b2_ref[0]
    h_scr[...] = h

    # ---- last layer: fused segmentation head + per-token argmax (lane-dense) ----
    @pl.when(l == n_layers - 1)
    def _():
        logits = jnp.dot(h.astype(jnp.bfloat16), hw_ref[...],
                         preferred_element_type=jnp.float32) + hb_ref[...]
        n_cls = logits.shape[-1]
        idx = jax.lax.broadcasted_iota(jnp.int32, logits.shape, 1)
        mx = jnp.max(logits, axis=-1, keepdims=True)
        cand = jnp.where(logits == mx, idx, n_cls)      # first-max tie-break
        o_ref[...] = jnp.min(cand, axis=-1).reshape(1, 1, T)


# ----------------------------------------------------------------------------
# Forward pass (semantic-segmentation part of LayoutModelDIT.forward)
# ----------------------------------------------------------------------------

def layout_dit_forward(images_nchw, params, *, patch, n_heads, eps=1e-12):
    B, C, H, W = images_nchw.shape
    P = patch
    Hp, Wp = H // P, W // P
    T = Hp * Wp
    CPP = C * P * P
    D = params["patch_w"].shape[1]
    F = params["w1"].shape[2]
    L = params["wq"].shape[0]
    n_cls = params["head_w"].shape[1]

    # Patch "unfold": conv(kernel=stride=patch) == reshape/transpose + matmul.
    # TODO(synk): could be moved into the kernel via a (B, Hp)-grid BlockSpec over
    # the NCHW image to avoid one extra HBM copy; kept host-side for simplicity.
    x = images_nchw.reshape(B, C, Hp, P, Wp, P)
    x = x.transpose(0, 2, 4, 1, 3, 5).reshape(B, T, CPP).astype(jnp.bfloat16)

    lyr = lambda shape: pl.BlockSpec(shape, lambda b, l: (l, 0, 0))   # per-layer block
    cst = lambda shape: pl.BlockSpec(shape, lambda b, l: (0, 0))      # stays resident

    cls_tok = pl.pallas_call(
        partial(_dit_stack_kernel, n_heads=n_heads, eps=eps),
        out_shape=jax.ShapeDtypeStruct((B, 1, T), jnp.int32),
        grid=(B, L),
        in_specs=[
            pl.BlockSpec((1, T, CPP), lambda b, l: (b, 0, 0)),   # unfolded patches
            cst((CPP, D)), cst((1, D)),                          # patch embed w, b
            lyr((1, 1, D)), lyr((1, 1, D)),                      # ln1 gamma, beta
            lyr((1, D, D)), lyr((1, 1, D)),                      # wq, bq (scale folded)
            lyr((1, D, D)), lyr((1, 1, D)),                      # wk, bk
            lyr((1, D, D)), lyr((1, 1, D)),                      # wv, bv
            lyr((1, D, D)), lyr((1, 1, D)),                      # wo, bo
            lyr((1, 1, D)), lyr((1, 1, D)),                      # ln2 gamma, beta
            lyr((1, D, F)), lyr((1, 1, F)),                      # w1, b1
            lyr((1, F, D)), lyr((1, 1, D)),                      # w2, b2
            cst((D, n_cls)), cst((1, n_cls)),                    # head w, b
        ],
        out_specs=pl.BlockSpec((1, 1, T), lambda b, l: (b, 0, 0)),
        scratch_shapes=[pltpu.VMEM((T, D), jnp.float32)],        # residual stream
        compiler_params=pltpu.CompilerParams(
            dimension_semantics=("parallel", "arbitrary"),
            vmem_limit_bytes=_vmem_limit_bytes()),
    )(x,
      params["patch_w"], params["patch_b"],
      params["ln1_g"], params["ln1_b"],
      params["wq"], params["bq"], params["wk"], params["bk"],
      params["wv"], params["bv"], params["wo"], params["bo"],
      params["ln2_g"], params["ln2_b"],
      params["w1"], params["b1"], params["w2"], params["b2"],
      params["head_w"], params["head_b"])

    cls_tok = cls_tok.reshape(B, Hp, Wp)
    # TODO(synk): post_process_semantic_segmentation bilinearly upsamples logits
    # then argmaxes; here argmax is taken at patch resolution and nearest-upsampled.
    seg = jnp.repeat(jnp.repeat(cls_tok, P, axis=1), P, axis=2)       # (B, H, W)

    # Foreground mask (img_seg > 0) reduction, as in forward() before bbox detection.
    fg_count = jnp.sum((seg > 0).astype(jnp.int32), axis=(1, 2))

    # TODO(synk): cv2.findContours bounding-box extraction, _filter_detections and
    # the Python list/dict bookkeeping are host-side OpenCV/Python with no Pallas
    # equivalent; they consume `seg` on the host.
    return seg, fg_count


# ----------------------------------------------------------------------------
# Deterministic parameter init (synthetic BEiT-like backbone, pre-packed)
# ----------------------------------------------------------------------------

def init_params(key, *, in_ch, patch, hidden, n_layers, n_heads, mlp_dim, n_classes):
    """Per-layer weights stacked on a leading L axis, fused QKV split into
    per-projection matrices, 1/sqrt(dh) scale folded into wq, matmul weights
    bf16, biases / LayerNorm params f32."""
    D, F, L = hidden, mlp_dim, n_layers
    cpp = in_ch * patch * patch
    scale = 1.0 / math.sqrt(D // n_heads)

    def nrm(k, shape):
        return 0.02 * jax.random.normal(k, shape, jnp.float32)

    keys = jax.random.split(key, 6)
    wqkv = nrm(keys[2], (L, D, 3 * D))
    return {
        "patch_w": nrm(keys[0], (cpp, D)).astype(jnp.bfloat16),
        "patch_b": jnp.zeros((1, D), jnp.float32),
        "head_w": nrm(keys[1], (D, n_classes)).astype(jnp.bfloat16),
        "head_b": jnp.zeros((1, n_classes), jnp.float32),
        "ln1_g": jnp.ones((L, 1, D), jnp.float32),
        "ln1_b": jnp.zeros((L, 1, D), jnp.float32),
        "wq": (wqkv[:, :, 0 * D:1 * D] * scale).astype(jnp.bfloat16),
        "bq": jnp.zeros((L, 1, D), jnp.float32),     # scale-folded (zero here)
        "wk": wqkv[:, :, 1 * D:2 * D].astype(jnp.bfloat16),
        "bk": jnp.zeros((L, 1, D), jnp.float32),
        "wv": wqkv[:, :, 2 * D:3 * D].astype(jnp.bfloat16),
        "bv": jnp.zeros((L, 1, D), jnp.float32),
        "wo": nrm(keys[3], (L, D, D)).astype(jnp.bfloat16),
        "bo": jnp.zeros((L, 1, D), jnp.float32),
        "ln2_g": jnp.ones((L, 1, D), jnp.float32),
        "ln2_b": jnp.zeros((L, 1, D), jnp.float32),
        "w1": nrm(keys[4], (L, D, F)).astype(jnp.bfloat16),
        "b1": jnp.zeros((L, 1, F), jnp.float32),
        "w2": nrm(keys[5], (L, F, D)).astype(jnp.bfloat16),
        "b2": jnp.zeros((L, 1, D), jnp.float32),
    }


# ----------------------------------------------------------------------------
# Demo
# ----------------------------------------------------------------------------

if __name__ == "__main__":
    key = jax.random.PRNGKey(0)
    k_img, k_par = jax.random.split(key)

    # Small synthetic config: B=2 RGB 32x32 images, patch 8 (-> 16 tokens),
    # hidden 128, 2 layers, 2 heads (dh=64), MLP 256, 12 classes (_layout_map_raw).
    B, C, H, W = 2, 3, 32, 32
    PATCH, HIDDEN, N_LAYERS, N_HEADS, MLP, N_CLS = 8, 128, 2, 2, 256, 12

    images = jax.random.uniform(k_img, (B, C, H, W), jnp.float32)   # NCHW like PyTorch
    params = init_params(k_par, in_ch=C, patch=PATCH, hidden=HIDDEN,
                         n_layers=N_LAYERS, n_heads=N_HEADS, mlp_dim=MLP,
                         n_classes=N_CLS)

    seg, fg_count = layout_dit_forward(images, params, patch=PATCH, n_heads=N_HEADS)
    jax.block_until_ready((seg, fg_count))

    assert seg.shape == (B, H, W) and seg.dtype == jnp.int32
    assert fg_count.shape == (B,)
    print("KERNEL_OK")
</pallas_src>

<mosaic_0001>
module attributes {stable_mosaic.version = 11 : i64} {
  func.func @_dit_stack_kernel(%arg0: i32, %arg1: i32, %arg2: memref<1x16x192xbf16, #tpu.memory_space<vmem>>, %arg3: memref<192x128xbf16, #tpu.memory_space<vmem>>, %arg4: memref<1x128xf32, #tpu.memory_space<vmem>>, %arg5: memref<1x1x128xf32, #tpu.memory_space<vmem>>, %arg6: memref<1x1x128xf32, #tpu.memory_space<vmem>>, %arg7: memref<1x128x128xbf16, #tpu.memory_space<vmem>>, %arg8: memref<1x1x128xf32, #tpu.memory_space<vmem>>, %arg9: memref<1x128x128xbf16, #tpu.memory_space<vmem>>, %arg10: memref<1x1x128xf32, #tpu.memory_space<vmem>>, %arg11: memref<1x128x128xbf16, #tpu.memory_space<vmem>>, %arg12: memref<1x1x128xf32, #tpu.memory_space<vmem>>, %arg13: memref<1x128x128xbf16, #tpu.memory_space<vmem>>, %arg14: memref<1x1x128xf32, #tpu.memory_space<vmem>>, %arg15: memref<1x1x128xf32, #tpu.memory_space<vmem>>, %arg16: memref<1x1x128xf32, #tpu.memory_space<vmem>>, %arg17: memref<1x128x256xbf16, #tpu.memory_space<vmem>>, %arg18: memref<1x1x256xf32, #tpu.memory_space<vmem>>, %arg19: memref<1x256x128xbf16, #tpu.memory_space<vmem>>, %arg20: memref<1x1x128xf32, #tpu.memory_space<vmem>>, %arg21: memref<128x12xbf16, #tpu.memory_space<vmem>>, %arg22: memref<1x12xf32, #tpu.memory_space<vmem>>, %arg23: memref<1x1x16xi32, #tpu.memory_space<vmem>>, %arg24: memref<16x128xf32, #tpu.memory_space<vmem>>) attributes {dimension_semantics = [#tpu.dimension_semantics<parallel>, #tpu.dimension_semantics<arbitrary>], iteration_bounds = array<i64: 2, 2>, scalar_prefetch = 0 : i64, scratch_operands = 1 : i64, tpu.core_type = #tpu.core_type<tc>, window_params = [{transform_indices = @transform_0, window_bounds = array<i64: 1, 16, 192>}, {pipeline_mode = #tpu.pipeline_mode<synchronous>, transform_indices = @transform_1, window_bounds = array<i64: 192, 128>}, {pipeline_mode = #tpu.pipeline_mode<synchronous>, transform_indices = @transform_2, window_bounds = array<i64: 1, 128>}, {transform_indices = @transform_3, window_bounds = array<i64: 1, 1, 128>}, {transform_indices = @transform_4, window_bounds = array<i64: 1, 1, 128>}, {transform_indices = @transform_5, window_bounds = array<i64: 1, 128, 128>}, {transform_indices = @transform_6, window_bounds = array<i64: 1, 1, 128>}, {transform_indices = @transform_7, window_bounds = array<i64: 1, 128, 128>}, {transform_indices = @transform_8, window_bounds = array<i64: 1, 1, 128>}, {transform_indices = @transform_9, window_bounds = array<i64: 1, 128, 128>}, {transform_indices = @transform_10, window_bounds = array<i64: 1, 1, 128>}, {transform_indices = @transform_11, window_bounds = array<i64: 1, 128, 128>}, {transform_indices = @transform_12, window_bounds = array<i64: 1, 1, 128>}, {transform_indices = @transform_13, window_bounds = array<i64: 1, 1, 128>}, {transform_indices = @transform_14, window_bounds = array<i64: 1, 1, 128>}, {transform_indices = @transform_15, window_bounds = array<i64: 1, 128, 256>}, {transform_indices = @transform_16, window_bounds = array<i64: 1, 1, 256>}, {transform_indices = @transform_17, window_bounds = array<i64: 1, 256, 128>}, {transform_indices = @transform_18, window_bounds = array<i64: 1, 1, 128>}, {pipeline_mode = #tpu.pipeline_mode<synchronous>, transform_indices = @transform_19, window_bounds = array<i64: 128, 12>}, {pipeline_mode = #tpu.pipeline_mode<synchronous>, transform_indices = @transform_20, window_bounds = array<i64: 1, 12>}, {transform_indices = @transform_21, window_bounds = array<i64: 1, 1, 16>}]} {
    %c0_i32 = arith.constant 0 : i32
    %0 = arith.cmpi eq, %arg1, %c0_i32 : i32
    %1 = arith.extui %0 : i1 to i32
    %c0_i32_0 = arith.constant 0 : i32
    %2 = arith.cmpi ne, %1, %c0_i32_0 : i32
    scf.if %2 {
      %c0_76 = arith.constant 0 : index
      %c0_77 = arith.constant 0 : index
      %c0_78 = arith.constant 0 : index
      %141 = vector.load %arg2[%c0_76, %c0_77, %c0_78] : memref<1x16x192xbf16, #tpu.memory_space<vmem>>, vector<1x16x192xbf16>
      %142 = vector.shape_cast %141 : vector<1x16x192xbf16> to vector<16x192xbf16>
      %c0_79 = arith.constant 0 : index
      %c0_80 = arith.constant 0 : index
      %143 = vector.load %arg3[%c0_79, %c0_80] : memref<192x128xbf16, #tpu.memory_space<vmem>>, vector<192x128xbf16>
      %cst_81 = arith.constant dense<0.000000e+00> : vector<16x128xf32>
      %144 = tpu.matmul %142, %143, %cst_81 {dimension_numbers = #tpu.dot_dimension_numbers<[1], [0], [0], [1], [0, 0, 1, 1], [], []>} : vector<16x192xbf16>, vector<192x128xbf16>, vector<16x128xf32> -> vector<16x128xf32>
      %c0_82 = arith.constant 0 : index
      %c0_83 = arith.constant 0 : index
      %145 = vector.load %arg4[%c0_82, %c0_83] : memref<1x128xf32, #tpu.memory_space<vmem>>, vector<1x128xf32>
      %146 = vector.broadcast %145 : vector<1x128xf32> to vector<16x128xf32>
      %147 = arith.addf %144, %146 : vector<16x128xf32>
      %c0_84 = arith.constant 0 : index
      %c0_85 = arith.constant 0 : index
      %148 = vector.load %arg24[%c0_84, %c0_85] : memref<16x128xf32, #tpu.memory_space<vmem>>, vector<16x128xf32>
      tpu.vector_store %arg24[%c0_84, %c0_85], %147 {strides = array<i32>} : memref<16x128xf32, #tpu.memory_space<vmem>>, vector<16x128xf32>,
    } else {
    }
    %c0 = arith.constant 0 : index
    %c0_1 = arith.constant 0 : index
    %3 = vector.load %arg24[%c0, %c0_1] : memref<16x128xf32, #tpu.memory_space<vmem>>, vector<16x128xf32>
    %c0_2 = arith.constant 0 : index
    %c0_3 = arith.constant 0 : index
    %c0_4 = arith.constant 0 : index
    %4 = vector.load %arg5[%c0_2, %c0_3, %c0_4] : memref<1x1x128xf32, #tpu.memory_space<vmem>>, vector<1x1x128xf32>
    %5 = vector.shape_cast %4 : vector<1x1x128xf32> to vector<1x128xf32>
    %c0_5 = arith.constant 0 : index
    %c0_6 = arith.constant 0 : index
    %c0_7 = arith.constant 0 : index
    %6 = vector.load %arg6[%c0_5, %c0_6, %c0_7] : memref<1x1x128xf32, #tpu.memory_space<vmem>>, vector<1x1x128xf32>
    %7 = vector.shape_cast %6 : vector<1x1x128xf32> to vector<1x128xf32>
    %cst = arith.constant dense<0.000000e+00> : vector<16xf32>
    %8 = vector.multi_reduction <add>, %3, %cst [1] : vector<16x128xf32> to vector<16xf32>
    %9 = vector.shape_cast %8 : vector<16xf32> to vector<16x1xf32>
    %cst_8 = arith.constant 1.280000e+02 : f32
    %10 = vector.broadcast %cst_8 : f32 to vector<16x1xf32>
    %11 = arith.divf %9, %10 : vector<16x1xf32>
    %12 = vector.broadcast %11 : vector<16x1xf32> to vector<16x128xf32>
    %13 = arith.subf %3, %12 : vector<16x128xf32>
    %14 = arith.mulf %13, %13 : vector<16x128xf32>
    %cst_9 = arith.constant dense<0.000000e+00> : vector<16xf32>
    %15 = vector.multi_reduction <add>, %14, %cst_9 [1] : vector<16x128xf32> to vector<16xf32>
    %16 = vector.shape_cast %15 : vector<16xf32> to vector<16x1xf32>
    %cst_10 = arith.constant 1.280000e+02 : f32
    %17 = vector.broadcast %cst_10 : f32 to vector<16x1xf32>
    %18 = arith.divf %16, %17 : vector<16x1xf32>
    %cst_11 = arith.constant 9.99999996E-13 : f32
    %19 = vector.broadcast %cst_11 : f32 to vector<16x1xf32>
    %20 = arith.addf %18, %19 : vector<16x1xf32>
    %21 = math.rsqrt %20 : vector<16x1xf32>
    %22 = vector.broadcast %21 : vector<16x1xf32> to vector<16x128xf32>
    %23 = arith.mulf %13, %22 : vector<16x128xf32>
    %24 = vector.broadcast %5 : vector<1x128xf32> to vector<16x128xf32>
    %25 = arith.mulf %23, %24 : vector<16x128xf32>
    %26 = vector.broadcast %7 : vector<1x128xf32> to vector<16x128xf32>
    %27 = arith.addf %25, %26 : vector<16x128xf32>
    %28 = arith.truncf %27 : vector<16x128xf32> to vector<16x128xbf16>
    %c0_12 = arith.constant 0 : index
    %c0_13 = arith.constant 0 : index
    %c0_14 = arith.constant 0 : index
    %29 = vector.load %arg7[%c0_12, %c0_13, %c0_14] : memref<1x128x128xbf16, #tpu.memory_space<vmem>>, vector<1x128x128xbf16>
    %30 = vector.shape_cast %29 : vector<1x128x128xbf16> to vector<128x128xbf16>
    %cst_15 = arith.constant dense<0.000000e+00> : vector<16x128xf32>
    %31 = tpu.matmul %28, %30, %cst_15 {dimension_numbers = #tpu.dot_dimension_numbers<[1], [0], [0], [1], [0, 0, 1, 1], [], []>} : vector<16x128xbf16>, vector<128x128xbf16>, vector<16x128xf32> -> vector<16x128xf32>
    %c0_16 = arith.constant 0 : index
    %c0_17 = arith.constant 0 : index
    %c0_18 = arith.constant 0 : index
    %32 = vector.load %arg8[%c0_16, %c0_17, %c0_18] : memref<1x1x128xf32, #tpu.memory_space<vmem>>, vector<1x1x128xf32>
    %33 = vector.shape_cast %32 : vector<1x1x128xf32> to vector<1x128xf32>
    %34 = vector.broadcast %33 : vector<1x128xf32> to vector<16x128xf32>
    %35 = arith.addf %31, %34 : vector<16x128xf32>
    %c0_19 = arith.constant 0 : index
    %c0_20 = arith.constant 0 : index
    %c0_21 = arith.constant 0 : index
    %36 = vector.load %arg9[%c0_19, %c0_20, %c0_21] : memref<1x128x128xbf16, #tpu.memory_space<vmem>>, vector<1x128x128xbf16>
    %37 = vector.shape_cast %36 : vector<1x128x128xbf16> to vector<128x128xbf16>
    %cst_22 = arith.constant dense<0.000000e+00> : vector<16x128xf32>
    %38 = tpu.matmul %28, %37, %cst_22 {dimension_numbers = #tpu.dot_dimension_numbers<[1], [0], [0], [1], [0, 0, 1, 1], [], []>} : vector<16x128xbf16>, vector<128x128xbf16>, vector<16x128xf32> -> vector<16x128xf32>
    %c0_23 = arith.constant 0 : index
    %c0_24 = arith.constant 0 : index
    %c0_25 = arith.constant 0 : index
    %39 = vector.load %arg10[%c0_23, %c0_24, %c0_25] : memref<1x1x128xf32, #tpu.memory_space<vmem>>, vector<1x1x128xf32>
    %40 = vector.shape_cast %39 : vector<1x1x128xf32> to vector<1x128xf32>
    %41 = vector.broadcast %40 : vector<1x128xf32> to vector<16x128xf32>
    %42 = arith.addf %38, %41 : vector<16x128xf32>
    %c0_26 = arith.constant 0 : index
    %c0_27 = arith.constant 0 : index
    %c0_28 = arith.constant 0 : index
    %43 = vector.load %arg11[%c0_26, %c0_27, %c0_28] : memref<1x128x128xbf16, #tpu.memory_space<vmem>>, vector<1x128x128xbf16>
    %44 = vector.shape_cast %43 : vector<1x128x128xbf16> to vector<128x128xbf16>
    %cst_29 = arith.constant dense<0.000000e+00> : vector<16x128xf32>
    %45 = tpu.matmul %28, %44, %cst_29 {dimension_numbers = #tpu.dot_dimension_numbers<[1], [0], [0], [1], [0, 0, 1, 1], [], []>} : vector<16x128xbf16>, vector<128x128xbf16>, vector<16x128xf32> -> vector<16x128xf32>
    %c0_30 = arith.constant 0 : index
    %c0_31 = arith.constant 0 : index
    %c0_32 = arith.constant 0 : index
    %46 = vector.load %arg12[%c0_30, %c0_31, %c0_32] : memref<1x1x128xf32, #tpu.memory_space<vmem>>, vector<1x1x128xf32>
    %47 = vector.shape_cast %46 : vector<1x1x128xf32> to vector<1x128xf32>
    %48 = vector.broadcast %47 : vector<1x128xf32> to vector<16x128xf32>
    %49 = arith.addf %45, %48 : vector<16x128xf32>
    %50 = vector.shape_cast %35 : vector<16x128xf32> to vector<16x2x64xf32>
    %51 = tpu.transpose %50, [1, 0, 2] : vector<16x2x64xf32> -> vector<2x16x64xf32>
    %52 = arith.truncf %51 : vector<2x16x64xf32> to vector<2x16x64xbf16>
    %53 = vector.shape_cast %42 : vector<16x128xf32> to vector<16x2x64xf32>
    %54 = tpu.transpose %53, [1, 0, 2] : vector<16x2x64xf32> -> vector<2x16x64xf32>
    %55 = arith.truncf %54 : vector<2x16x64xf32> to vector<2x16x64xbf16>
    %56 = vector.shape_cast %49 : vector<16x128xf32> to vector<16x2x64xf32>
    %57 = tpu.transpose %56, [1, 0, 2] : vector<16x2x64xf32> -> vector<2x16x64xf32>
    %58 = arith.truncf %57 : vector<2x16x64xf32> to vector<2x16x64xbf16>
    "tpu.trace_start"() <{level = 10 : i32, message = "hqd,hkd->hqk"}> : () -> ()
    %cst_33 = arith.constant dense<0.000000e+00> : vector<2x16x16xf32>
    %59 = tpu.matmul %52, %55, %cst_33 {dimension_numbers = #tpu.dot_dimension_numbers<[2], [2], [1], [1], [0, 0, 0, 1, 1, 1], [0], [0]>} : vector<2x16x64xbf16>, vector<2x16x64xbf16>, vector<2x16x16xf32> -> vector<2x16x16xf32>
    "tpu.trace_stop"() : () -> ()
    %cst_34 = arith.constant dense<0xFF800000> : vector<2x16xf32>
    %60 = vector.multi_reduction <maximumf>, %59, %cst_34 [2] : vector<2x16x16xf32> to vector<2x16xf32>
    %61 = vector.shape_cast %60 : vector<2x16xf32> to vector<2x16x1xf32>
    %62 = vector.broadcast %61 : vector<2x16x1xf32> to vector<2x16x16xf32>
    %63 = arith.subf %59, %62 : vector<2x16x16xf32>
    %64 = math.exp %63 : vector<2x16x16xf32>
    %cst_35 = arith.constant dense<0.000000e+00> : vector<2x16xf32>
    %65 = vector.multi_reduction <add>, %64, %cst_35 [2] : vector<2x16x16xf32> to vector<2x16xf32>
    %66 = vector.shape_cast %65 : vector<2x16xf32> to vector<2x16x1xf32>
    %67 = tpu.reciprocal %66 {approx = true} : vector<2x16x1xf32> -> vector<2x16x1xf32>
    %68 = vector.broadcast %67 : vector<2x16x1xf32> to vector<2x16x16xf32>
    %69 = arith.mulf %64, %68 : vector<2x16x16xf32>
    %70 = arith.truncf %69 : vector<2x16x16xf32> to vector<2x16x16xbf16>
    "tpu.trace_start"() <{level = 10 : i32, message = "hqk,hkd->hqd"}> : () -> ()
    %cst_36 = arith.constant dense<0.000000e+00> : vector<2x16x64xf32>
    %71 = tpu.matmul %70, %58, %cst_36 {dimension_numbers = #tpu.dot_dimension_numbers<[2], [1], [1], [2], [0, 0, 0, 1, 1, 2], [0], [0]>} : vector<2x16x16xbf16>, vector<2x16x64xbf16>, vector<2x16x64xf32> -> vector<2x16x64xf32>
    "tpu.trace_stop"() : () -> ()
    %72 = tpu.transpose %71, [1, 0, 2] : vector<2x16x64xf32> -> vector<16x2x64xf32>
    %73 = vector.shape_cast %72 : vector<16x2x64xf32> to vector<16x128xf32>
    %74 = arith.truncf %73 : vector<16x128xf32> to vector<16x128xbf16>
    %c0_37 = arith.constant 0 : index
    %c0_38 = arith.constant 0 : index
    %c0_39 = arith.constant 0 : index
    %75 = vector.load %arg13[%c0_37, %c0_38, %c0_39] : memref<1x128x128xbf16, #tpu.memory_space<vmem>>, vector<1x128x128xbf16>
    %76 = vector.shape_cast %75 : vector<1x128x128xbf16> to vector<128x128xbf16>
    %cst_40 = arith.constant dense<0.000000e+00> : vector<16x128xf32>
    %77 = tpu.matmul %74, %76, %cst_40 {dimension_numbers = #tpu.dot_dimension_numbers<[1], [0], [0], [1], [0, 0, 1, 1], [], []>} : vector<16x128xbf16>, vector<128x128xbf16>, vector<16x128xf32> -> vector<16x128xf32>
    %78 = arith.addf %3, %77 : vector<16x128xf32>
    %c0_41 = arith.constant 0 : index
    %c0_42 = arith.constant 0 : index
    %c0_43 = arith.constant 0 : index
    %79 = vector.load %arg14[%c0_41, %c0_42, %c0_43] : memref<1x1x128xf32, #tpu.memory_space<vmem>>, vector<1x1x128xf32>
    %80 = vector.shape_cast %79 : vector<1x1x128xf32> to vector<1x128xf32>
    %81 = vector.broadcast %80 : vector<1x128xf32> to vector<16x128xf32>
    %82 = arith.addf %78, %81 : vector<16x128xf32>
    %c0_44 = arith.constant 0 : index
    %c0_45 = arith.constant 0 : index
    %c0_46 = arith.constant 0 : index
    %83 = vector.load %arg15[%c0_44, %c0_45, %c0_46] : memref<1x1x128xf32, #tpu.memory_space<vmem>>, vector<1x1x128xf32>
    %84 = vector.shape_cast %83 : vector<1x1x128xf32> to vector<1x128xf32>
    %c0_47 = arith.constant 0 : index
    %c0_48 = arith.constant 0 : index
    %c0_49 = arith.constant 0 : index
    %85 = vector.load %arg16[%c0_47, %c0_48, %c0_49] : memref<1x1x128xf32, #tpu.memory_space<vmem>>, vector<1x1x128xf32>
    %86 = vector.shape_cast %85 : vector<1x1x128xf32> to vector<1x128xf32>
    %cst_50 = arith.constant dense<0.000000e+00> : vector<16xf32>
    %87 = vector.multi_reduction <add>, %82, %cst_50 [1] : vector<16x128xf32> to vector<16xf32>
    %88 = vector.shape_cast %87 : vector<16xf32> to vector<16x1xf32>
    %cst_51 = arith.constant 1.280000e+02 : f32
    %89 = vector.broadcast %cst_51 : f32 to vector<16x1xf32>
    %90 = arith.divf %88, %89 : vector<16x1xf32>
    %91 = vector.broadcast %90 : vector<16x1xf32> to vector<16x128xf32>
    %92 = arith.subf %82, %91 : vector<16x128xf32>
    %93 = arith.mulf %92, %92 : vector<16x128xf32>
    %cst_52 = arith.constant dense<0.000000e+00> : vector<16xf32>
    %94 = vector.multi_reduction <add>, %93, %cst_52 [1] : vector<16x128xf32> to vector<16xf32>
    %95 = vector.shape_cast %94 : vector<16xf32> to vector<16x1xf32>
    %cst_53 = arith.constant 1.280000e+02 : f32
    %96 = vector.broadcast %cst_53 : f32 to vector<16x1xf32>
    %97 = arith.divf %95, %96 : vector<16x1xf32>
    %cst_54 = arith.constant 9.99999996E-13 : f32
    %98 = vector.broadcast %cst_54 : f32 to vector<16x1xf32>
    %99 = arith.addf %97, %98 : vector<16x1xf32>
    %100 = math.rsqrt %99 : vector<16x1xf32>
    %101 = vector.broadcast %100 : vector<16x1xf32> to vector<16x128xf32>
    %102 = arith.mulf %92, %101 : vector<16x128xf32>
    %103 = vector.broadcast %84 : vector<1x128xf32> to vector<16x128xf32>
    %104 = arith.mulf %102, %103 : vector<16x128xf32>
    %105 = vector.broadcast %86 : vector<1x128xf32> to vector<16x128xf32>
    %106 = arith.addf %104, %105 : vector<16x128xf32>
    %107 = arith.truncf %106 : vector<16x128xf32> to vector<16x128xbf16>
    %c0_55 = arith.constant 0 : index
    %c0_56 = arith.constant 0 : index
    %c0_57 = arith.constant 0 : index
    %108 = vector.load %arg17[%c0_55, %c0_56, %c0_57] : memref<1x128x256xbf16, #tpu.memory_space<vmem>>, vector<1x128x256xbf16>
    %109 = vector.shape_cast %108 : vector<1x128x256xbf16> to vector<128x256xbf16>
    %cst_58 = arith.constant dense<0.000000e+00> : vector<16x256xf32>
    %110 = tpu.matmul %107, %109, %cst_58 {dimension_numbers = #tpu.dot_dimension_numbers<[1], [0], [0], [1], [0, 0, 1, 1], [], []>} : vector<16x128xbf16>, vector<128x256xbf16>, vector<16x256xf32> -> vector<16x256xf32>
    %c0_59 = arith.constant 0 : index
    %c0_60 = arith.constant 0 : index
    %c0_61 = arith.constant 0 : index
    %111 = vector.load %arg18[%c0_59, %c0_60, %c0_61] : memref<1x1x256xf32, #tpu.memory_space<vmem>>, vector<1x1x256xf32>
    %112 = vector.shape_cast %111 : vector<1x1x256xf32> to vector<1x256xf32>
    %113 = vector.broadcast %112 : vector<1x256xf32> to vector<16x256xf32>
    %114 = arith.addf %110, %113 : vector<16x256xf32>
    %cst_62 = arith.constant 5.000000e-01 : f32
    %115 = vector.broadcast %cst_62 : f32 to vector<16x256xf32>
    %116 = arith.mulf %115, %114 : vector<16x256xf32>
    %cst_63 = arith.constant 4.471500e-02 : f32
    %117 = vector.broadcast %cst_63 : f32 to vector<16x256xf32>
    %118 = arith.mulf %117, %114 : vector<16x256xf32>
    %119 = arith.mulf %118, %114 : vector<16x256xf32>
    %120 = arith.mulf %119, %114 : vector<16x256xf32>
    %121 = arith.addf %114, %120 : vector<16x256xf32>
    %cst_64 = arith.constant 0.797884583 : f32
    %122 = vector.broadcast %cst_64 : f32 to vector<16x256xf32>
    %123 = arith.mulf %122, %121 : vector<16x256xf32>
    %124 = math.tanh %123 : vector<16x256xf32>
    %cst_65 = arith.constant 1.000000e+00 : f32
    %125 = vector.broadcast %cst_65 : f32 to vector<16x256xf32>
    %126 = arith.addf %125, %124 : vector<16x256xf32>
    %127 = arith.mulf %116, %126 : vector<16x256xf32>
    %128 = arith.truncf %127 : vector<16x256xf32> to vector<16x256xbf16>
    %c0_66 = arith.constant 0 : index
    %c0_67 = arith.constant 0 : index
    %c0_68 = arith.constant 0 : index
    %129 = vector.load %arg19[%c0_66, %c0_67, %c0_68] : memref<1x256x128xbf16, #tpu.memory_space<vmem>>, vector<1x256x128xbf16>
    %130 = vector.shape_cast %129 : vector<1x256x128xbf16> to vector<256x128xbf16>
    %cst_69 = arith.constant dense<0.000000e+00> : vector<16x128xf32>
    %131 = tpu.matmul %128, %130, %cst_69 {dimension_numbers = #tpu.dot_dimension_numbers<[1], [0], [0], [1], [0, 0, 1, 1], [], []>} : vector<16x256xbf16>, vector<256x128xbf16>, vector<16x128xf32> -> vector<16x128xf32>
    %132 = arith.addf %82, %131 : vector<16x128xf32>
    %c0_70 = arith.constant 0 : index
    %c0_71 = arith.constant 0 : index
    %c0_72 = arith.constant 0 : index
    %133 = vector.load %arg20[%c0_70, %c0_71, %c0_72] : memref<1x1x128xf32, #tpu.memory_space<vmem>>, vector<1x1x128xf32>
    %134 = vector.shape_cast %133 : vector<1x1x128xf32> to vector<1x128xf32>
    %135 = vector.broadcast %134 : vector<1x128xf32> to vector<16x128xf32>
    %136 = arith.addf %132, %135 : vector<16x128xf32>
    %c0_73 = arith.constant 0 : index
    %c0_74 = arith.constant 0 : index
    %137 = vector.load %arg24[%c0_73, %c0_74] : memref<16x128xf32, #tpu.memory_space<vmem>>, vector<16x128xf32>
    tpu.vector_store %arg24[%c0_73, %c0_74], %136 {strides = array<i32>} : memref<16x128xf32, #tpu.memory_space<vmem>>, vector<16x128xf32>,
    %c1_i32 = arith.constant 1 : i32
    %138 = arith.cmpi eq, %arg1, %c1_i32 : i32
    %139 = arith.extui %138 : i1 to i32
    %c0_i32_75 = arith.constant 0 : i32
    %140 = arith.cmpi ne, %139, %c0_i32_75 : i32
    scf.if %140 {
      %141 = arith.truncf %136 : vector<16x128xf32> to vector<16x128xbf16>
      %c0_76 = arith.constant 0 : index
      %c0_77 = arith.constant 0 : index
      %142 = vector.load %arg21[%c0_76, %c0_77] : memref<128x12xbf16, #tpu.memory_space<vmem>>, vector<128x12xbf16>
      %cst_78 = arith.constant dense<0.000000e+00> : vector<16x12xf32>
      %143 = tpu.matmul %141, %142, %cst_78 {dimension_numbers = #tpu.dot_dimension_numbers<[1], [0], [0], [1], [0, 0, 1, 1], [], []>} : vector<16x128xbf16>, vector<128x12xbf16>, vector<16x12xf32> -> vector<16x12xf32>
      %c0_79 = arith.constant 0 : index
      %c0_80 = arith.constant 0 : index
      %144 = vector.load %arg22[%c0_79, %c0_80] : memref<1x12xf32, #tpu.memory_space<vmem>>, vector<1x12xf32>
      %145 = vector.broadcast %144 : vector<1x12xf32> to vector<16x12xf32>
      %146 = arith.addf %143, %145 : vector<16x12xf32>
      %147 = tpu.iota {dimensions = array<i32: 1>} : vector<16x12xi32>
      %cst_81 = arith.constant dense<0xFF800000> : vector<16xf32>
      %148 = vector.multi_reduction <maximumf>, %146, %cst_81 [1] : vector<16x12xf32> to vector<16xf32>
      %149 = vector.shape_cast %148 : vector<16xf32> to vector<16x1xf32>
      %150 = vector.broadcast %149 : vector<16x1xf32> to vector<16x12xf32>
      %151 = arith.cmpf oeq, %146, %150 : vector<16x12xf32>
      %c12_i32 = arith.constant 12 : i32
      %152 = vector.broadcast %c12_i32 : i32 to vector<16x12xi32>
      %153 = arith.select %151, %147, %152 : vector<16x12xi1>, vector<16x12xi32>
      %cst_82 = arith.constant dense<2147483647> : vector<16xi32>
      %154 = vector.multi_reduction <minsi>, %153, %cst_82 [1] : vector<16x12xi32> to vector<16xi32>
      %155 = vector.shape_cast %154 : vector<16xi32> to vector<1x1x16xi32>
      %c0_83 = arith.constant 0 : index
      %c0_84 = arith.constant 0 : index
      %c0_85 = arith.constant 0 : index
      %156 = vector.load %arg23[%c0_83, %c0_84, %c0_85] : memref<1x1x16xi32, #tpu.memory_space<vmem>>, vector<1x1x16xi32>
      tpu.vector_store %arg23[%c0_83, %c0_84, %c0_85], %155 {strides = array<i32>} : memref<1x1x16xi32, #tpu.memory_space<vmem>>, vector<1x1x16xi32>,
    } else {
    }
    return
  }
  func.func @transform_0(%arg0: i32, %arg1: i32) -> (i32, i32, i32) {
    %c0_i32 = arith.constant 0 : i32
    %c0_i32_0 = arith.constant 0 : i32
    %c0_i32_1 = arith.constant 0 : i32
    return %arg0, %c0_i32, %c0_i32_0 : i32, i32, i32
  }
  func.func @transform_1(%arg0: i32, %arg1: i32) -> (i32, i32) {
    %c0_i32 = arith.constant 0 : i32
    %c0_i32_0 = arith.constant 0 : i32
    %c0_i32_1 = arith.constant 0 : i32
    return %c0_i32, %c0_i32_0 : i32, i32
  }
  func.func @transform_2(%arg0: i32, %arg1: i32) -> (i32, i32) {
    %c0_i32 = arith.constant 0 : i32
    %c0_i32_0 = arith.constant 0 : i32
    %c0_i32_1 = arith.constant 0 : i32
    return %c0_i32, %c0_i32_0 : i32, i32
  }
  func.func @transform_3(%arg0: i32, %arg1: i32) -> (i32, i32, i32) {
    %c0_i32 = arith.constant 0 : i32
    %c0_i32_0 = arith.constant 0 : i32
    %c0_i32_1 = arith.constant 0 : i32
    return %arg1, %c0_i32, %c0_i32_0 : i32, i32, i32
  }
  func.func @transform_4(%arg0: i32, %arg1: i32) -> (i32, i32, i32) {
    %c0_i32 = arith.constant 0 : i32
    %c0_i32_0 = arith.constant 0 : i32
    %c0_i32_1 = arith.constant 0 : i32
    return %arg1, %c0_i32, %c0_i32_0 : i32, i32, i32
  }
  func.func @transform_5(%arg0: i32, %arg1: i32) -> (i32, i32, i32) {
    %c0_i32 = arith.constant 0 : i32
    %c0_i32_0 = arith.constant 0 : i32
    %c0_i32_1 = arith.constant 0 : i32
    return %arg1, %c0_i32, %c0_i32_0 : i32, i32, i32
  }
  func.func @transform_6(%arg0: i32, %arg1: i32) -> (i32, i32, i32) {
    %c0_i32 = arith.constant 0 : i32
    %c0_i32_0 = arith.constant 0 : i32
    %c0_i32_1 = arith.constant 0 : i32
    return %arg1, %c0_i32, %c0_i32_0 : i32, i32, i32
  }
  func.func @transform_7(%arg0: i32, %arg1: i32) -> (i32, i32, i32) {
    %c0_i32 = arith.constant 0 : i32
    %c0_i32_0 = arith.constant 0 : i32
    %c0_i32_1 = arith.constant 0 : i32
    return %arg1, %c0_i32, %c0_i32_0 : i32, i32, i32
  }
  func.func @transform_8(%arg0: i32, %arg1: i32) -> (i32, i32, i32) {
    %c0_i32 = arith.constant 0 : i32
    %c0_i32_0 = arith.constant 0 : i32
    %c0_i32_1 = arith.constant 0 : i32
    return %arg1, %c0_i32, %c0_i32_0 : i32, i32, i32
  }
  func.func @transform_9(%arg0: i32, %arg1: i32) -> (i32, i32, i32) {
    %c0_i32 = arith.constant 0 : i32
    %c0_i32_0 = arith.constant 0 : i32
    %c0_i32_1 = arith.constant 0 : i32
    return %arg1, %c0_i32, %c0_i32_0 : i32, i32, i32
  }
  func.func @transform_10(%arg0: i32, %arg1: i32) -> (i32, i32, i32) {
    %c0_i32 = arith.constant 0 : i32
    %c0_i32_0 = arith.constant 0 : i32
    %c0_i32_1 = arith.constant 0 : i32
    return %arg1, %c0_i32, %c0_i32_0 : i32, i32, i32
  }
  func.func @transform_11(%arg0: i32, %arg1: i32) -> (i32, i32, i32) {
    %c0_i32 = arith.constant 0 : i32
    %c0_i32_0 = arith.constant 0 : i32
    %c0_i32_1 = arith.constant 0 : i32
    return %arg1, %c0_i32, %c0_i32_0 : i32, i32, i32
  }
  func.func @transform_12(%arg0: i32, %arg1: i32) -> (i32, i32, i32) {
    %c0_i32 = arith.constant 0 : i32
    %c0_i32_0 = arith.constant 0 : i32
    %c0_i32_1 = arith.constant 0 : i32
    return %arg1, %c0_i32, %c0_i32_0 : i32, i32, i32
  }
  func.func @transform_13(%arg0: i32, %arg1: i32) -> (i32, i32, i32) {
    %c0_i32 = arith.constant 0 : i32
    %c0_i32_0 = arith.constant 0 : i32
    %c0_i32_1 = arith.constant 0 : i32
    return %arg1, %c0_i32, %c0_i32_0 : i32, i32, i32
  }
  func.func @transform_14(%arg0: i32, %arg1: i32) -> (i32, i32, i32) {
    %c0_i32 = arith.constant 0 : i32
    %c0_i32_0 = arith.constant 0 : i32
    %c0_i32_1 = arith.constant 0 : i32
    return %arg1, %c0_i32, %c0_i32_0 : i32, i32, i32
  }
  func.func @transform_15(%arg0: i32, %arg1: i32) -> (i32, i32, i32) {
    %c0_i32 = arith.constant 0 : i32
    %c0_i32_0 = arith.constant 0 : i32
    %c0_i32_1 = arith.constant 0 : i32
    return %arg1, %c0_i32, %c0_i32_0 : i32, i32, i32
  }
  func.func @transform_16(%arg0: i32, %arg1: i32) -> (i32, i32, i32) {
    %c0_i32 = arith.constant 0 : i32
    %c0_i32_0 = arith.constant 0 : i32
    %c0_i32_1 = arith.constant 0 : i32
    return %arg1, %c0_i32, %c0_i32_0 : i32, i32, i32
  }
  func.func @transform_17(%arg0: i32, %arg1: i32) -> (i32, i32, i32) {
    %c0_i32 = arith.constant 0 : i32
    %c0_i32_0 = arith.constant 0 : i32
    %c0_i32_1 = arith.constant 0 : i32
    return %arg1, %c0_i32, %c0_i32_0 : i32, i32, i32
  }
  func.func @transform_18(%arg0: i32, %arg1: i32) -> (i32, i32, i32) {
    %c0_i32 = arith.constant 0 : i32
    %c0_i32_0 = arith.constant 0 : i32
    %c0_i32_1 = arith.constant 0 : i32
    return %arg1, %c0_i32, %c0_i32_0 : i32, i32, i32
  }
  func.func @transform_19(%arg0: i32, %arg1: i32) -> (i32, i32) {
    %c0_i32 = arith.constant 0 : i32
    %c0_i32_0 = arith.constant 0 : i32
    %c0_i32_1 = arith.constant 0 : i32
    return %c0_i32, %c0_i32_0 : i32, i32
  }
  func.func @transform_20(%arg0: i32, %arg1: i32) -> (i32, i32) {
    %c0_i32 = arith.constant 0 : i32
    %c0_i32_0 = arith.constant 0 : i32
    %c0_i32_1 = arith.constant 0 : i32
    return %c0_i32, %c0_i32_0 : i32, i32
  }
  func.func @transform_21(%arg0: i32, %arg1: i32) -> (i32, i32, i32) {
    %c0_i32 = arith.constant 0 : i32
    %c0_i32_0 = arith.constant 0 : i32
    %c0_i32_1 = arith.constant 0 : i32
    return %arg0, %c0_i32, %c0_i32_0 : i32, i32, i32
  }
}

</mosaic_0001>

<llo_original>
// kernel: tpu_custom_call.1
$region0: #{tpu_custom_call.1}
  #allocation0 [shape = 'u32[]', space=smem, size = 0x4, offset = 0x4, fixed_abs, tag = 'smem constant byte address 0x4 - core index']
  #allocation1 [shape = 'u32[144,128]{1,0:T(1,128)}', space=vmem, size = 0x12000, scoped, tag = 'internal scratch']
  #allocation2 [shape = 'f32[16,128]{1,0:T(8,128)}', space=vmem, size = 0x2000, scoped, tag = 'scratch operand']
  %s0 = inlined_call_operand.vmem [shape: bf16[2,16,192], index: 0, kind: input, shape index: {}]
  %s1 = inlined_call_operand.hbm [shape: bf16[192,128], index: 1, kind: input, shape index: {}]
  %s2 = inlined_call_operand.vmem [shape: f32[1,128], index: 2, kind: input, shape index: {}]
  %s3 = inlined_call_operand.vmem [shape: f32[2,1,128], index: 3, kind: input, shape index: {}]
  %s4 = inlined_call_operand.vmem [shape: f32[2,1,128], index: 4, kind: input, shape index: {}]
  %s5 = inlined_call_operand.hbm [shape: bf16[2,128,128], index: 5, kind: input, shape index: {}]
  %s6 = inlined_call_operand.vmem [shape: f32[2,1,128], index: 6, kind: input, shape index: {}]
  %s7 = inlined_call_operand.hbm [shape: bf16[2,128,128], index: 7, kind: input, shape index: {}]
  %s8 = inlined_call_operand.vmem [shape: f32[2,1,128], index: 8, kind: input, shape index: {}]
  %s9 = inlined_call_operand.hbm [shape: bf16[2,128,128], index: 9, kind: input, shape index: {}]
  %s10 = inlined_call_operand.vmem [shape: f32[2,1,128], index: 10, kind: input, shape index: {}]
  %s11 = inlined_call_operand.hbm [shape: bf16[2,128,128], index: 11, kind: input, shape index: {}]
  %s12 = inlined_call_operand.vmem [shape: f32[2,1,128], index: 12, kind: input, shape index: {}]
  %s13 = inlined_call_operand.vmem [shape: f32[2,1,128], index: 13, kind: input, shape index: {}]
  %s14 = inlined_call_operand.vmem [shape: f32[2,1,128], index: 14, kind: input, shape index: {}]
  %s15 = inlined_call_operand.hbm [shape: bf16[2,128,256], index: 15, kind: input, shape index: {}]
  %s16 = inlined_call_operand.vmem [shape: f32[2,1,256], index: 16, kind: input, shape index: {}]
  %s17 = inlined_call_operand.hbm [shape: bf16[2,256,128], index: 17, kind: input, shape index: {}]
  %s18 = inlined_call_operand.vmem [shape: f32[2,1,128], index: 18, kind: input, shape index: {}]
  %s19 = inlined_call_operand.vmem [shape: bf16[128,12], index: 19, kind: input, shape index: {}]
  %s20 = inlined_call_operand.vmem [shape: f32[1,12], index: 20, kind: input, shape index: {}]
  %s21 = inlined_call_operand.hbm [shape: s32[2,1,16], index: 21, kind: output, shape index: {}]
  %s22 = sld [smem:[#allocation0]]
  $region153: #{tpu_custom_call.1} parent=0
    _
  %s24 = ssub.s32 1, %s22
  %s25 = scalar_select 0, %s24, %s22
  $region1: #{tpu_custom_call.1} parent=0
    #allocation3 [shape = 'u8[49152]{0}', space=vmem, size = 0xc000, scoped, tag = 'input window, operand 1, single buffered']
    #allocation4 [shape = 's32[2]{0}', space=sflag, size = 0x8, scoped, tag = 'scoped memory for tpu_custom_call.1']
    #allocation5 [shape = 's32[2]{0}', space=sflag, size = 0x8, scoped, tag = 'scoped memory for tpu_custom_call.1']
    #allocation6 [shape = 'u8[65536]{0}', space=vmem, size = 0x10000, scoped, tag = 'input window, operand 5']
    #allocation7 [shape = 's32[2]{0}', space=sflag, size = 0x8, scoped, tag = 'scoped memory for tpu_custom_call.1']
    #allocation8 [shape = 'u8[65536]{0}', space=vmem, size = 0x10000, scoped, tag = 'input window, operand 7']
    #allocation9 [shape = 'u8[65536]{0}', space=vmem, size = 0x10000, scoped, tag = 'input window, operand 9']
    #allocation10 [shape = 's32[2]{0}', space=sflag, size = 0x8, scoped, tag = 'scoped memory for tpu_custom_call.1']
    #allocation11 [shape = 'u8[65536]{0}', space=vmem, size = 0x10000, scoped, tag = 'input window, operand 11']
    #allocation12 [shape = 'u8[131072]{0}', space=vmem, size = 0x20000, scoped, tag = 'input window, operand 15']
    #allocation13 [shape = 's32[2]{0}', space=sflag, size = 0x8, scoped, tag = 'scoped memory for tpu_custom_call.1']
    #allocation14 [shape = 'u8[131072]{0}', space=vmem, size = 0x20000, scoped, tag = 'input window, operand 17']
    #allocation15 [shape = 'u8[1024]{0}', space=vmem, size = 0x400, scoped, tag = 'output window, operand 0']
    %26 = vsyncpa [#allocation4], 0
    %27 = vsyncpa [#allocation7], 0
    %s28 = scalar_lea.sflag [#allocation7], 1
    %29 = vsyncpa %s28, 0
    %30 = vsyncpa [#allocation10], 0
    %s31 = scalar_lea.sflag [#allocation10], 1
    %32 = vsyncpa %s31, 0
    %33 = vsyncpa [#allocation13], 0
    %s34 = scalar_lea.sflag [#allocation13], 1
    %35 = vsyncpa %s34, 0
    %36 = vsyncpa [#allocation5], 0
    %s37 = scalar_lea.sflag [#allocation5], 1
    %38 = vsyncpa %s37, 0
    loop: start=0, step=1, limit=6
    $region2: #{tpu_custom_call.1} parent=1 // loop_pre_header
      _
    $region3: #{tpu_custom_call.1} parent=1 // loop_header
      %s40 = sphi 0, %s44
      %p41 = scmp.ge.s32.totalorder %s40, 6
      %s47 = sphi 0, %s59
      %s48 = sphi 0, %s55
      %s49 = sphi 0, %s47
      %s50 = sphi 0, %s48
      %s51 = sphi 0, %s49
      %s52 = sphi 0, %s50
      %s62 = sphi 0, %s64
      %s65 = sphi 0, %s62
      %s66 = sphi 0, %s65
      %s82 = sphi 0, %s66
      %s86 = sphi 0, %s86
      %s88 = sphi 0, %s86
      %s89 = sphi 0, %s88
      %s103 = sphi 0, %s89
      %s107 = sphi 0, %s107
      %s109 = sphi 0, %s107
      %s110 = sphi 0, %s109
      %s124 = sphi 0, %s110
      %s130 = sphi 0, %s132
      %s133 = sphi 0, %s130
      %s134 = sphi 0, %s133
      %s150 = sphi 0, %s134
      %s156 = sphi 0, %s158
      %s159 = sphi 0, %s156
      %s160 = sphi 0, %s159
      %s176 = sphi 0, %s160
      %s182 = sphi 0, %s184
      %s185 = sphi 0, %s182
      %s186 = sphi 0, %s185
      %s202 = sphi 0, %s186
      %s208 = sphi 0, %s210
      %s211 = sphi 0, %s208
      %s212 = sphi 0, %s211
      %s228 = sphi 0, %s212
      %s234 = sphi 0, %s236
      %s237 = sphi 0, %s234
      %s238 = sphi 0, %s237
      %s254 = sphi 0, %s238
      %s260 = sphi 0, %s262
      %s263 = sphi 0, %s260
      %s264 = sphi 0, %s263
      %s280 = sphi 0, %s264
      %s286 = sphi 0, %s288
      %s289 = sphi 0, %s286
      %s290 = sphi 0, %s289
      %s306 = sphi 0, %s290
      %s312 = sphi 0, %s314
      %s315 = sphi 0, %s312
      %s316 = sphi 0, %s315
      %s332 = sphi 0, %s316
      %s338 = sphi 0, %s340
      %s341 = sphi 0, %s338
      %s342 = sphi 0, %s341
      %s358 = sphi 0, %s342
      %s364 = sphi 0, %s366
      %s367 = sphi 0, %s364
      %s368 = sphi 0, %s367
      %s384 = sphi 0, %s368
      %s390 = sphi 0, %s392
      %s393 = sphi 0, %s390
      %s394 = sphi 0, %s393
      %s410 = sphi 0, %s394
      %s416 = sphi 0, %s418
      %s419 = sphi 0, %s416
      %s420 = sphi 0, %s419
      %s436 = sphi 0, %s420
      %s442 = sphi 0, %s444
      %s445 = sphi 0, %s442
      %s446 = sphi 0, %s445
      %s462 = sphi 0, %s446
      %s468 = sphi 0, %s470
      %s471 = sphi 0, %s468
      %s472 = sphi 0, %s471
      %s488 = sphi 0, %s472
      %s494 = sphi 0, %s496
      %s497 = sphi 0, %s494
      %s498 = sphi 0, %s497
      %s514 = sphi 0, %s498
      %s520 = sphi 0, %s522
      %s523 = sphi 0, %s520
      %s524 = sphi 0, %s523
      %s540 = sphi 0, %s524
      %s544 = sphi 0, %s544
      %s546 = sphi 0, %s544
      %s547 = sphi 0, %s546
      %s561 = sphi 0, %s547
      %s565 = sphi 0, %s565
      %s567 = sphi 0, %s565
      %s568 = sphi 0, %s567
      %s582 = sphi 0, %s568
      %s588 = sphi 0, %s590
      %s591 = sphi 0, %s588
      %s592 = sphi 0, %s591
      %s608 = sphi 0, %s592
    $region4: #{tpu_custom_call.1} parent=1 // loop_header_branch
      %43 = sbr.rel (%p41) target = $region8
    $region5: #{tpu_custom_call.1} parent=1 // loop_body
      %s45 = ssub.s32 %s40, 1
      %s46 = ssub.s32 %s40, 2
      %s53 = sadd.s32 1, %s48
      %p54 = scmp.ge.s32.totalorder %s53, 2
      %s55 = scalar_select %p54, 0, %s53
      %s56 = sadd.s32 1, %s47
      %s57 = scalar_select %p54, %s56, %s47
      %p58 = scmp.ge.s32.totalorder %s57, 2
      %s59 = scalar_select %p58, 0, %s57
      %s60 = ssub.s32 %s47, %s59
      %p61 = scmp.eq.s32.totalorder %s60, 0
      %s63 = sadd.s32 %s62, 1
      %s64 = scalar_select %p61, %s62, %s63
      %p67 = pneg %p61
      %p68 = scmp.eq.s32.totalorder %s40, 3
      %p69 = por %p67, %p68
      %p70 = scmp.ne.s32.totalorder %s62, %s65
      %p71 = scmp.eq.s32.totalorder %s40, 0
      %p72 = por %p70, %p71
      %p73 = scmp.ne.s32.totalorder %s62, %s65
      %p74 = scmp.eq.s32.totalorder %s45, 3
      %p75 = por %p73, %p74
      %p76 = scmp.ne.s32.totalorder %s65, %s66
      %p77 = scmp.eq.s32.totalorder %s45, 0
      %p78 = por %p76, %p77
      %p79 = scmp.ne.s32.totalorder %s65, %s66
      %p80 = scmp.eq.s32.totalorder %s46, 3
      %p81 = por %p79, %p80
      %p83 = scmp.ne.s32.totalorder %s66, %s82
      %p84 = scmp.eq.s32.totalorder %s46, 0
      %p85 = por %p83, %p84
      %s87 = sadd.s32 %s86, 1
      %p90 = scmp.eq.s32.totalorder %s40, 3
      %p91 = scmp.ne.s32.totalorder %s86, %s88
      %p92 = scmp.eq.s32.totalorder %s40, 0
      %p93 = por %p91, %p92
      %p94 = scmp.ne.s32.totalorder %s86, %s88
      %p95 = scmp.eq.s32.totalorder %s45, 3
      %p96 = por %p94, %p95
      %p97 = scmp.ne.s32.totalorder %s88, %s89
      %p98 = scmp.eq.s32.totalorder %s45, 0
      %p99 = por %p97, %p98
      %p100 = scmp.ne.s32.totalorder %s88, %s89
      %p101 = scmp.eq.s32.totalorder %s46, 3
      %p102 = por %p100, %p101
      %p104 = scmp.ne.s32.totalorder %s89, %s103
      %p105 = scmp.eq.s32.totalorder %s46, 0
      %p106 = por %p104, %p105
      %s108 = sadd.s32 %s107, 1
      %p111 = scmp.eq.s32.totalorder %s40, 3
      %p112 = scmp.ne.s32.totalorder %s107, %s109
      %p113 = scmp.eq.s32.totalorder %s40, 0
      %p114 = por %p112, %p113
      %p115 = scmp.ne.s32.totalorder %s107, %s109
      %p116 = scmp.eq.s32.totalorder %s45, 3
      %p117 = por %p115, %p116
      %p118 = scmp.ne.s32.totalorder %s109, %s110
      %p119 = scmp.eq.s32.totalorder %s45, 0
      %p120 = por %p118, %p119
      %p121 = scmp.ne.s32.totalorder %s109, %s110
      %p122 = scmp.eq.s32.totalorder %s46, 3
      %p123 = por %p121, %p122
      %p125 = scmp.ne.s32.totalorder %s110, %s124
      %p126 = scmp.eq.s32.totalorder %s46, 0
      %p127 = por %p125, %p126
      %s128 = ssub.s32 %s48, %s55
      %p129 = scmp.eq.s32.totalorder %s128, 0
      %s131 = sadd.s32 %s130, 1
      %s132 = scalar_select %p129, %s130, %s131
      %p135 = pneg %p129
      %p136 = scmp.eq.s32.totalorder %s40, 3
      %p137 = por %p135, %p136
      %p138 = scmp.ne.s32.totalorder %s130, %s133
      %p139 = scmp.eq.s32.totalorder %s40, 0
      %p140 = por %p138, %p139
      %p141 = scmp.ne.s32.totalorder %s130, %s133
      %p142 = scmp.eq.s32.totalorder %s45, 3
      %p143 = por %p141, %p142
      %p144 = scmp.ne.s32.totalorder %s133, %s134
      %p145 = scmp.eq.s32.totalorder %s45, 0
      %p146 = por %p144, %p145
      %p147 = scmp.ne.s32.totalorder %s133, %s134
      %p148 = scmp.eq.s32.totalorder %s46, 3
      %p149 = por %p147, %p148
      %p151 = scmp.ne.s32.totalorder %s134, %s150
      %p152 = scmp.eq.s32.totalorder %s46, 0
      %p153 = por %p151, %p152
      %s154 = ssub.s32 %s48, %s55
      %p155 = scmp.eq.s32.totalorder %s154, 0
      %s157 = sadd.s32 %s156, 1
      %s158 = scalar_select %p155, %s156, %s157
      %p161 = pneg %p155
      %p162 = scmp.eq.s32.totalorder %s40, 3
      %p163 = por %p161, %p162
      %p164 = scmp.ne.s32.totalorder %s156, %s159
      %p165 = scmp.eq.s32.totalorder %s40, 0
      %p166 = por %p164, %p165
      %p167 = scmp.ne.s32.totalorder %s156, %s159
      %p168 = scmp.eq.s32.totalorder %s45, 3
      %p169 = por %p167, %p168
      %p170 = scmp.ne.s32.totalorder %s159, %s160
      %p171 = scmp.eq.s32.totalorder %s45, 0
      %p172 = por %p170, %p171
      %p173 = scmp.ne.s32.totalorder %s159, %s160
      %p174 = scmp.eq.s32.totalorder %s46, 3
      %p175 = por %p173, %p174
      %p177 = scmp.ne.s32.totalorder %s160, %s176
      %p178 = scmp.eq.s32.totalorder %s46, 0
      %p179 = por %p177, %p178
      %s180 = ssub.s32 %s48, %s55
      %p181 = scmp.eq.s32.totalorder %s180, 0
      %s183 = sadd.s32 %s182, 1
      %s184 = scalar_select %p181, %s182, %s183
      %p187 = pneg %p181
      %p188 = scmp.eq.s32.totalorder %s40, 3
      %p189 = por %p187, %p188
      %p190 = scmp.ne.s32.totalorder %s182, %s185
      %p191 = scmp.eq.s32.totalorder %s40, 0
      %p192 = por %p190, %p191
      %p193 = scmp.ne.s32.totalorder %s182, %s185
      %p194 = scmp.eq.s32.totalorder %s45, 3
      %p195 = por %p193, %p194
      %p196 = scmp.ne.s32.totalorder %s185, %s186
      %p197 = scmp.eq.s32.totalorder %s45, 0
      %p198 = por %p196, %p197
      %p199 = scmp.ne.s32.totalorder %s185, %s186
      %p200 = scmp.eq.s32.totalorder %s46, 3
      %p201 = por %p199, %p200
      %p203 = scmp.ne.s32.totalorder %s186, %s202
      %p204 = scmp.eq.s32.totalorder %s46, 0
      %p205 = por %p203, %p204
      %s206 = ssub.s32 %s48, %s55
      %p207 = scmp.eq.s32.totalorder %s206, 0
      %s209 = sadd.s32 %s208, 1
      %s210 = scalar_select %p207, %s208, %s209
      %p213 = pneg %p207
      %p214 = scmp.eq.s32.totalorder %s40, 3
      %p215 = por %p213, %p214
      %p216 = scmp.ne.s32.totalorder %s208, %s211
      %p217 = scmp.eq.s32.totalorder %s40, 0
      %p218 = por %p216, %p217
      %p219 = scmp.ne.s32.totalorder %s208, %s211
      %p220 = scmp.eq.s32.totalorder %s45, 3
      %p221 = por %p219, %p220
      %p222 = scmp.ne.s32.totalorder %s211, %s212
      %p223 = scmp.eq.s32.totalorder %s45, 0
      %p224 = por %p222, %p223
      %p225 = scmp.ne.s32.totalorder %s211, %s212
      %p226 = scmp.eq.s32.totalorder %s46, 3
      %p227 = por %p225, %p226
      %p229 = scmp.ne.s32.totalorder %s212, %s228
      %p230 = scmp.eq.s32.totalorder %s46, 0
      %p231 = por %p229, %p230
      %s232 = ssub.s32 %s48, %s55
      %p233 = scmp.eq.s32.totalorder %s232, 0
      %s235 = sadd.s32 %s234, 1
      %s236 = scalar_select %p233, %s234, %s235
      %p239 = pneg %p233
      %p240 = scmp.eq.s32.totalorder %s40, 3
      %p241 = por %p239, %p240
      %p242 = scmp.ne.s32.totalorder %s234, %s237
      %p243 = scmp.eq.s32.totalorder %s40, 0
      %p244 = por %p242, %p243
      %p245 = scmp.ne.s32.totalorder %s234, %s237
      %p246 = scmp.eq.s32.totalorder %s45, 3
      %p247 = por %p245, %p246
      %p248 = scmp.ne.s32.totalorder %s237, %s238
      %p249 = scmp.eq.s32.totalorder %s45, 0
      %p250 = por %p248, %p249
      %p251 = scmp.ne.s32.totalorder %s237, %s238
      %p252 = scmp.eq.s32.totalorder %s46, 3
      %p253 = por %p251, %p252
      %p255 = scmp.ne.s32.totalorder %s238, %s254
      %p256 = scmp.eq.s32.totalorder %s46, 0
      %p257 = por %p255, %p256
      %s258 = ssub.s32 %s48, %s55
      %p259 = scmp.eq.s32.totalorder %s258, 0
      %s261 = sadd.s32 %s260, 1
      %s262 = scalar_select %p259, %s260, %s261
      %p265 = pneg %p259
      %p266 = scmp.eq.s32.totalorder %s40, 3
      %p267 = por %p265, %p266
      %p268 = scmp.ne.s32.totalorder %s260, %s263
      %p269 = scmp.eq.s32.totalorder %s40, 0
      %p270 = por %p268, %p269
      %p271 = scmp.ne.s32.totalorder %s260, %s263
      %p272 = scmp.eq.s32.totalorder %s45, 3
      %p273 = por %p271, %p272
      %p274 = scmp.ne.s32.totalorder %s263, %s264
      %p275 = scmp.eq.s32.totalorder %s45, 0
      %p276 = por %p274, %p275
      %p277 = scmp.ne.s32.totalorder %s263, %s264
      %p278 = scmp.eq.s32.totalorder %s46, 3
      %p279 = por %p277, %p278
      %p281 = scmp.ne.s32.totalorder %s264, %s280
      %p282 = scmp.eq.s32.totalorder %s46, 0
      %p283 = por %p281, %p282
      %s284 = ssub.s32 %s48, %s55
      %p285 = scmp.eq.s32.totalorder %s284, 0
      %s287 = sadd.s32 %s286, 1
      %s288 = scalar_select %p285, %s286, %s287
      %p291 = pneg %p285
      %p292 = scmp.eq.s32.totalorder %s40, 3
      %p293 = por %p291, %p292
      %p294 = scmp.ne.s32.totalorder %s286, %s289
      %p295 = scmp.eq.s32.totalorder %s40, 0
      %p296 = por %p294, %p295
      %p297 = scmp.ne.s32.totalorder %s286, %s289
      %p298 = scmp.eq.s32.totalorder %s45, 3
      %p299 = por %p297, %p298
      %p300 = scmp.ne.s32.totalorder %s289, %s290
      %p301 = scmp.eq.s32.totalorder %s45, 0
      %p302 = por %p300, %p301
      %p303 = scmp.ne.s32.totalorder %s289, %s290
      %p304 = scmp.eq.s32.totalorder %s46, 3
      %p305 = por %p303, %p304
      %p307 = scmp.ne.s32.totalorder %s290, %s306
      %p308 = scmp.eq.s32.totalorder %s46, 0
      %p309 = por %p307, %p308
      %s310 = ssub.s32 %s48, %s55
      %p311 = scmp.eq.s32.totalorder %s310, 0
      %s313 = sadd.s32 %s312, 1
      %s314 = scalar_select %p311, %s312, %s313
      %p317 = pneg %p311
      %p318 = scmp.eq.s32.totalorder %s40, 3
      %p319 = por %p317, %p318
      %p320 = scmp.ne.s32.totalorder %s312, %s315
      %p321 = scmp.eq.s32.totalorder %s40, 0
      %p322 = por %p320, %p321
      %p323 = scmp.ne.s32.totalorder %s312, %s315
      %p324 = scmp.eq.s32.totalorder %s45, 3
      %p325 = por %p323, %p324
      %p326 = scmp.ne.s32.totalorder %s315, %s316
      %p327 = scmp.eq.s32.totalorder %s45, 0
      %p328 = por %p326, %p327
      %p329 = scmp.ne.s32.totalorder %s315, %s316
      %p330 = scmp.eq.s32.totalorder %s46, 3
      %p331 = por %p329, %p330
      %p333 = scmp.ne.s32.totalorder %s316, %s332
      %p334 = scmp.eq.s32.totalorder %s46, 0
      %p335 = por %p333, %p334
      %s336 = ssub.s32 %s48, %s55
      %p337 = scmp.eq.s32.totalorder %s336, 0
      %s339 = sadd.s32 %s338, 1
      %s340 = scalar_select %p337, %s338, %s339
      %p343 = pneg %p337
      %p344 = scmp.eq.s32.totalorder %s40, 3
      %p345 = por %p343, %p344
      %p346 = scmp.ne.s32.totalorder %s338, %s341
      %p347 = scmp.eq.s32.totalorder %s40, 0
      %p348 = por %p346, %p347
      %p349 = scmp.ne.s32.totalorder %s338, %s341
      %p350 = scmp.eq.s32.totalorder %s45, 3
      %p351 = por %p349, %p350
      %p352 = scmp.ne.s32.totalorder %s341, %s342
      %p353 = scmp.eq.s32.totalorder %s45, 0
      %p354 = por %p352, %p353
      %p355 = scmp.ne.s32.totalorder %s341, %s342
      %p356 = scmp.eq.s32.totalorder %s46, 3
      %p357 = por %p355, %p356
      %p359 = scmp.ne.s32.totalorder %s342, %s358
      %p360 = scmp.eq.s32.totalorder %s46, 0
      %p361 = por %p359, %p360
      %s362 = ssub.s32 %s48, %s55
      %p363 = scmp.eq.s32.totalorder %s362, 0
      %s365 = sadd.s32 %s364, 1
      %s366 = scalar_select %p363, %s364, %s365
      %p369 = pneg %p363
      %p370 = scmp.eq.s32.totalorder %s40, 3
      %p371 = por %p369, %p370
      %p372 = scmp.ne.s32.totalorder %s364, %s367
      %p373 = scmp.eq.s32.totalorder %s40, 0
      %p374 = por %p372, %p373
      %p375 = scmp.ne.s32.totalorder %s364, %s367
      %p376 = scmp.eq.s32.totalorder %s45, 3
      %p377 = por %p375, %p376
      %p378 = scmp.ne.s32.totalorder %s367, %s368
      %p379 = scmp.eq.s32.totalorder %s45, 0
      %p380 = por %p378, %p379
      %p381 = scmp.ne.s32.totalorder %s367, %s368
      %p382 = scmp.eq.s32.totalorder %s46, 3
      %p383 = por %p381, %p382
      %p385 = scmp.ne.s32.totalorder %s368, %s384
      %p386 = scmp.eq.s32.totalorder %s46, 0
      %p387 = por %p385, %p386
      %s388 = ssub.s32 %s48, %s55
      %p389 = scmp.eq.s32.totalorder %s388, 0
      %s391 = sadd.s32 %s390, 1
      %s392 = scalar_select %p389, %s390, %s391
      %p395 = pneg %p389
      %p396 = scmp.eq.s32.totalorder %s40, 3
      %p397 = por %p395, %p396
      %p398 = scmp.ne.s32.totalorder %s390, %s393
      %p399 = scmp.eq.s32.totalorder %s40, 0
      %p400 = por %p398, %p399
      %p401 = scmp.ne.s32.totalorder %s390, %s393
      %p402 = scmp.eq.s32.totalorder %s45, 3
      %p403 = por %p401, %p402
      %p404 = scmp.ne.s32.totalorder %s393, %s394
      %p405 = scmp.eq.s32.totalorder %s45, 0
      %p406 = por %p404, %p405
      %p407 = scmp.ne.s32.totalorder %s393, %s394
      %p408 = scmp.eq.s32.totalorder %s46, 3
      %p409 = por %p407, %p408
      %p411 = scmp.ne.s32.totalorder %s394, %s410
      %p412 = scmp.eq.s32.totalorder %s46, 0
      %p413 = por %p411, %p412
      %s414 = ssub.s32 %s48, %s55
      %p415 = scmp.eq.s32.totalorder %s414, 0
      %s417 = sadd.s32 %s416, 1
      %s418 = scalar_select %p415, %s416, %s417
      %p421 = pneg %p415
      %p422 = scmp.eq.s32.totalorder %s40, 3
      %p423 = por %p421, %p422
      %p424 = scmp.ne.s32.totalorder %s416, %s419
      %p425 = scmp.eq.s32.totalorder %s40, 0
      %p426 = por %p424, %p425
      %p427 = scmp.ne.s32.totalorder %s416, %s419
      %p428 = scmp.eq.s32.totalorder %s45, 3
      %p429 = por %p427, %p428
      %p430 = scmp.ne.s32.totalorder %s419, %s420
      %p431 = scmp.eq.s32.totalorder %s45, 0
      %p432 = por %p430, %p431
      %p433 = scmp.ne.s32.totalorder %s419, %s420
      %p434 = scmp.eq.s32.totalorder %s46, 3
      %p435 = por %p433, %p434
      %p437 = scmp.ne.s32.totalorder %s420, %s436
      %p438 = scmp.eq.s32.totalorder %s46, 0
      %p439 = por %p437, %p438
      %s440 = ssub.s32 %s48, %s55
      %p441 = scmp.eq.s32.totalorder %s440, 0
      %s443 = sadd.s32 %s442, 1
      %s444 = scalar_select %p441, %s442, %s443
      %p447 = pneg %p441
      %p448 = scmp.eq.s32.totalorder %s40, 3
      %p449 = por %p447, %p448
      %p450 = scmp.ne.s32.totalorder %s442, %s445
      %p451 = scmp.eq.s32.totalorder %s40, 0
      %p452 = por %p450, %p451
      %p453 = scmp.ne.s32.totalorder %s442, %s445
      %p454 = scmp.eq.s32.totalorder %s45, 3
      %p455 = por %p453, %p454
      %p456 = scmp.ne.s32.totalorder %s445, %s446
      %p457 = scmp.eq.s32.totalorder %s45, 0
      %p458 = por %p456, %p457
      %p459 = scmp.ne.s32.totalorder %s445, %s446
      %p460 = scmp.eq.s32.totalorder %s46, 3
      %p461 = por %p459, %p460
      %p463 = scmp.ne.s32.totalorder %s446, %s462
      %p464 = scmp.eq.s32.totalorder %s46, 0
      %p465 = por %p463, %p464
      %s466 = ssub.s32 %s48, %s55
      %p467 = scmp.eq.s32.totalorder %s466, 0
      %s469 = sadd.s32 %s468, 1
      %s470 = scalar_select %p467, %s468, %s469
      %p473 = pneg %p467
      %p474 = scmp.eq.s32.totalorder %s40, 3
      %p475 = por %p473, %p474
      %p476 = scmp.ne.s32.totalorder %s468, %s471
      %p477 = scmp.eq.s32.totalorder %s40, 0
      %p478 = por %p476, %p477
      %p479 = scmp.ne.s32.totalorder %s468, %s471
      %p480 = scmp.eq.s32.totalorder %s45, 3
      %p481 = por %p479, %p480
      %p482 = scmp.ne.s32.totalorder %s471, %s472
      %p483 = scmp.eq.s32.totalorder %s45, 0
      %p484 = por %p482, %p483
      %p485 = scmp.ne.s32.totalorder %s471, %s472
      %p486 = scmp.eq.s32.totalorder %s46, 3
      %p487 = por %p485, %p486
      %p489 = scmp.ne.s32.totalorder %s472, %s488
      %p490 = scmp.eq.s32.totalorder %s46, 0
      %p491 = por %p489, %p490
      %s492 = ssub.s32 %s48, %s55
      %p493 = scmp.eq.s32.totalorder %s492, 0
      %s495 = sadd.s32 %s494, 1
      %s496 = scalar_select %p493, %s494, %s495
      %p499 = pneg %p493
      %p500 = scmp.eq.s32.totalorder %s40, 3
      %p501 = por %p499, %p500
      %p502 = scmp.ne.s32.totalorder %s494, %s497
      %p503 = scmp.eq.s32.totalorder %s40, 0
      %p504 = por %p502, %p503
      %p505 = scmp.ne.s32.totalorder %s494, %s497
      %p506 = scmp.eq.s32.totalorder %s45, 3
      %p507 = por %p505, %p506
      %p508 = scmp.ne.s32.totalorder %s497, %s498
      %p509 = scmp.eq.s32.totalorder %s45, 0
      %p510 = por %p508, %p509
      %p511 = scmp.ne.s32.totalorder %s497, %s498
      %p512 = scmp.eq.s32.totalorder %s46, 3
      %p513 = por %p511, %p512
      %p515 = scmp.ne.s32.totalorder %s498, %s514
      %p516 = scmp.eq.s32.totalorder %s46, 0
      %p517 = por %p515, %p516
      %s518 = ssub.s32 %s48, %s55
      %p519 = scmp.eq.s32.totalorder %s518, 0
      %s521 = sadd.s32 %s520, 1
      %s522 = scalar_select %p519, %s520, %s521
      %p525 = pneg %p519
      %p526 = scmp.eq.s32.totalorder %s40, 3
      %p527 = por %p525, %p526
      %p528 = scmp.ne.s32.totalorder %s520, %s523
      %p529 = scmp.eq.s32.totalorder %s40, 0
      %p530 = por %p528, %p529
      %p531 = scmp.ne.s32.totalorder %s520, %s523
      %p532 = scmp.eq.s32.totalorder %s45, 3
      %p533 = por %p531, %p532
      %p534 = scmp.ne.s32.totalorder %s523, %s524
      %p535 = scmp.eq.s32.totalorder %s45, 0
      %p536 = por %p534, %p535
      %p537 = scmp.ne.s32.totalorder %s523, %s524
      %p538 = scmp.eq.s32.totalorder %s46, 3
      %p539 = por %p537, %p538
      %p541 = scmp.ne.s32.totalorder %s524, %s540
      %p542 = scmp.eq.s32.totalorder %s46, 0
      %p543 = por %p541, %p542
      %s545 = sadd.s32 %s544, 1
      %p548 = scmp.eq.s32.totalorder %s40, 3
      %p549 = scmp.ne.s32.totalorder %s544, %s546
      %p550 = scmp.eq.s32.totalorder %s40, 0
      %p551 = por %p549, %p550
      %p552 = scmp.ne.s32.totalorder %s544, %s546
      %p553 = scmp.eq.s32.totalorder %s45, 3
      %p554 = por %p552, %p553
      %p555 = scmp.ne.s32.totalorder %s546, %s547
      %p556 = scmp.eq.s32.totalorder %s45, 0
      %p557 = por %p555, %p556
      %p558 = scmp.ne.s32.totalorder %s546, %s547
      %p559 = scmp.eq.s32.totalorder %s46, 3
      %p560 = por %p558, %p559
      %p562 = scmp.ne.s32.totalorder %s547, %s561
      %p563 = scmp.eq.s32.totalorder %s46, 0
      %p564 = por %p562, %p563
      %s566 = sadd.s32 %s565, 1
      %p569 = scmp.eq.s32.totalorder %s40, 3
      %p570 = scmp.ne.s32.totalorder %s565, %s567
      %p571 = scmp.eq.s32.totalorder %s40, 0
      %p572 = por %p570, %p571
      %p573 = scmp.ne.s32.totalorder %s565, %s567
      %p574 = scmp.eq.s32.totalorder %s45, 3
      %p575 = por %p573, %p574
      %p576 = scmp.ne.s32.totalorder %s567, %s568
      %p577 = scmp.eq.s32.totalorder %s45, 0
      %p578 = por %p576, %p577
      %p579 = scmp.ne.s32.totalorder %s567, %s568
      %p580 = scmp.eq.s32.totalorder %s46, 3
      %p581 = por %p579, %p580
      %p583 = scmp.ne.s32.totalorder %s568, %s582
      %p584 = scmp.eq.s32.totalorder %s46, 0
      %p585 = por %p583, %p584
      %s586 = ssub.s32 %s47, %s59
      %p587 = scmp.eq.s32.totalorder %s586, 0
      %s589 = sadd.s32 %s588, 1
      %s590 = scalar_select %p587, %s588, %s589
      %p593 = pneg %p587
      %p594 = scmp.eq.s32.totalorder %s40, 3
      %p595 = por %p593, %p594
      %p596 = scmp.ne.s32.totalorder %s588, %s591
      %p597 = scmp.eq.s32.totalorder %s40, 0
      %p598 = por %p596, %p597
      %p599 = scmp.ne.s32.totalorder %s588, %s591
      %p600 = scmp.eq.s32.totalorder %s45, 3
      %p601 = por %p599, %p600
      %p602 = scmp.ne.s32.totalorder %s591, %s592
      %p603 = scmp.eq.s32.totalorder %s45, 0
      %p604 = por %p602, %p603
      %p605 = scmp.ne.s32.totalorder %s591, %s592
      %p606 = scmp.eq.s32.totalorder %s46, 3
      %p607 = por %p605, %p606
      %p609 = scmp.ne.s32.totalorder %s592, %s608
      %p610 = scmp.eq.s32.totalorder %s46, 0
      %p611 = por %p609, %p610
      %p612 = scmp.le.s32.totalorder 1, %s40
      %p613 = scmp.lt.s32.totalorder %s40, 5
      %p614 = pnand %p612, %p613
      %p615 = pneg %p614
      // Predicated region
      $region9: #{tpu_custom_call.1} parent=5 // pred_check
        _
      $region10: #{tpu_custom_call.1} parent=5 // pred_check_branch
        %617 = sbr.rel (%p614) target = $region12
      $region11: #{tpu_custom_call.1} parent=5 // pred_region
        %s618 = ssub.s32 %s40, 1
        // Predicated region
        $region13: #{tpu_custom_call.1} parent=11 // pred_check
          %p619 = pneg %p99
        $region14: #{tpu_custom_call.1} parent=11 // pred_check_branch
          %621 = sbr.rel (%p619) target = $region16
        $region15: #{tpu_custom_call.1} parent=11 // pred_region
          %s623 = ssub.s32 1536, 1536
          %624 = vsyncadd [#allocation4], %s623
          %s625 = sshll.u32 [#allocation3], 4
          %s626 = int_to_ptr.vmem [resolvable:$true] %s625
          %631 = dma.hbm_to_vmem [thread:$0]  %s1, 1536, %s626, [#allocation4], 64, 64, 4
        $region16: #{tpu_custom_call.1} parent=11 // pred_fallthru
          _
        // Predicated region
        $region17: #{tpu_custom_call.1} parent=11 // pred_check
          %p632 = pneg %p120
        $region18: #{tpu_custom_call.1} parent=11 // pred_check_branch
          %634 = sbr.rel (%p632) target = $region20
        $region19: #{tpu_custom_call.1} parent=11 // pred_region
          _
        $region20: #{tpu_custom_call.1} parent=11 // pred_fallthru
          _
        // Predicated region
        $region21: #{tpu_custom_call.1} parent=11 // pred_check
          %p635 = pneg %p557
        $region22: #{tpu_custom_call.1} parent=11 // pred_check_branch
          %637 = sbr.rel (%p635) target = $region24
        $region23: #{tpu_custom_call.1} parent=11 // pred_region
          _
        $region24: #{tpu_custom_call.1} parent=11 // pred_fallthru
          _
        // Predicated region
        $region25: #{tpu_custom_call.1} parent=11 // pred_check
          %p638 = pneg %p578
        $region26: #{tpu_custom_call.1} parent=11 // pred_check_branch
          %640 = sbr.rel (%p638) target = $region28
        $region27: #{tpu_custom_call.1} parent=11 // pred_region
          _
        $region28: #{tpu_custom_call.1} parent=11 // pred_fallthru
          _
      $region12: #{tpu_custom_call.1} parent=5 // pred_fallthru
        _
      %p641 = scmp.lt.s32.totalorder %s40, 4
      // Predicated region
      $region29: #{tpu_custom_call.1} parent=5 // pred_check
        %p642 = pneg %p641
      $region30: #{tpu_custom_call.1} parent=5 // pred_check_branch
        %644 = sbr.rel (%p642) target = $region32
      $region31: #{tpu_custom_call.1} parent=5 // pred_region
        // Predicated region
        $region33: #{tpu_custom_call.1} parent=31 // pred_check
          %p645 = pneg %p72
        $region34: #{tpu_custom_call.1} parent=31 // pred_check_branch
          %647 = sbr.rel (%p645) target = $region36
        $region35: #{tpu_custom_call.1} parent=31 // pred_region
          %p648 = scmp.lt.s32.totalorder %s47, 1
          %s649 = scalar_select %p648, %s47, 1
          %s650 = smul.addr %s649, 4
          %s651 = smul.addr %s650, 4
          %s652 = scalar_lea.vmem %s0, %s651
        $region36: #{tpu_custom_call.1} parent=31 // pred_fallthru
          _
        // Predicated region
        $region37: #{tpu_custom_call.1} parent=31 // pred_check
          %p653 = pneg %p140
        $region38: #{tpu_custom_call.1} parent=31 // pred_check_branch
          %655 = sbr.rel (%p653) target = $region40
        $region39: #{tpu_custom_call.1} parent=31 // pred_region
          %p656 = scmp.lt.s32.totalorder %s48, 1
          %s657 = scalar_select %p656, %s48, 1
          %s658 = scalar_lea.vmem %s3, %s657
        $region40: #{tpu_custom_call.1} parent=31 // pred_fallthru
          _
        // Predicated region
        $region41: #{tpu_custom_call.1} parent=31 // pred_check
          %p659 = pneg %p166
        $region42: #{tpu_custom_call.1} parent=31 // pred_check_branch
          %661 = sbr.rel (%p659) target = $region44
        $region43: #{tpu_custom_call.1} parent=31 // pred_region
          %p662 = scmp.lt.s32.totalorder %s48, 1
          %s663 = scalar_select %p662, %s48, 1
          %s664 = scalar_lea.vmem %s4, %s663
        $region44: #{tpu_custom_call.1} parent=31 // pred_fallthru
          _
        // Predicated region
        $region45: #{tpu_custom_call.1} parent=31 // pred_check
          %p665 = pneg %p192
        $region46: #{tpu_custom_call.1} parent=31 // pred_check_branch
          %667 = sbr.rel (%p665) target = $region48
        $region47: #{tpu_custom_call.1} parent=31 // pred_region
          %s668 = sand.u32 %s40, 1
          %s669 = scalar_lea.sflag [#allocation7], %s668
          %s670 = sand.u32 %s182, 1
          %s671 = smul.addr %s670, 64
          %s672 = scalar_lea.vmem [#allocation6], %s671
          %s674 = ssub.s32 1024, 1024
          %675 = vsyncadd %s669, %s674
          %s676 = smul.addr %s48, 16
          %s677 = smul.addr %s676, 64
          %s678 = scalar_lea.hbm %s5, %s677
          %s679 = sshll.u32 %s672, 4
          %s680 = int_to_ptr.vmem [resolvable:$true] %s679
          %685 = dma.hbm_to_vmem [thread:$0]  %s678, 1024, %s680, %s669, 64, 64, 4
        $region48: #{tpu_custom_call.1} parent=31 // pred_fallthru
          _
        // Predicated region
        $region49: #{tpu_custom_call.1} parent=31 // pred_check
          %p686 = pneg %p218
        $region50: #{tpu_custom_call.1} parent=31 // pred_check_branch
          %688 = sbr.rel (%p686) target = $region52
        $region51: #{tpu_custom_call.1} parent=31 // pred_region
          %p689 = scmp.lt.s32.totalorder %s48, 1
          %s690 = scalar_select %p689, %s48, 1
          %s691 = scalar_lea.vmem %s6, %s690
        $region52: #{tpu_custom_call.1} parent=31 // pred_fallthru
          _
        // Predicated region
        $region53: #{tpu_custom_call.1} parent=31 // pred_check
          %p692 = pneg %p244
        $region54: #{tpu_custom_call.1} parent=31 // pred_check_branch
          %694 = sbr.rel (%p692) target = $region56
        $region55: #{tpu_custom_call.1} parent=31 // pred_region
          %s695 = sand.u32 %s40, 1
          %s696 = scalar_lea.sflag [#allocation7], %s695
          %s697 = sand.u32 %s234, 1
          %s698 = smul.addr %s697, 64
          %s699 = scalar_lea.vmem [#allocation8], %s698
          %s701 = ssub.s32 1024, 1024
          %702 = vsyncadd %s696, %s701
          %s703 = smul.addr %s48, 16
          %s704 = smul.addr %s703, 64
          %s705 = scalar_lea.hbm %s7, %s704
          %s706 = sshll.u32 %s699, 4
          %s707 = int_to_ptr.vmem [resolvable:$true] %s706
          %712 = dma.hbm_to_vmem [thread:$0]  %s705, 1024, %s707, %s696, 64, 64, 4
        $region56: #{tpu_custom_call.1} parent=31 // pred_fallthru
          _
        // Predicated region
        $region57: #{tpu_custom_call.1} parent=31 // pred_check
          %p713 = pneg %p270
        $region58: #{tpu_custom_call.1} parent=31 // pred_check_branch
          %715 = sbr.rel (%p713) target = $region60
        $region59: #{tpu_custom_call.1} parent=31 // pred_region
          %p716 = scmp.lt.s32.totalorder %s48, 1
          %s717 = scalar_select %p716, %s48, 1
          %s718 = scalar_lea.vmem %s8, %s717
        $region60: #{tpu_custom_call.1} parent=31 // pred_fallthru
          _
        // Predicated region
        $region61: #{tpu_custom_call.1} parent=31 // pred_check
          %p719 = pneg %p296
        $region62: #{tpu_custom_call.1} parent=31 // pred_check_branch
          %721 = sbr.rel (%p719) target = $region64
        $region63: #{tpu_custom_call.1} parent=31 // pred_region
          %s722 = sand.u32 %s40, 1
          %s723 = scalar_lea.sflag [#allocation10], %s722
          %s724 = sand.u32 %s286, 1
          %s725 = smul.addr %s724, 64
          %s726 = scalar_lea.vmem [#allocation9], %s725
          %s728 = ssub.s32 1024, 1024
          %729 = vsyncadd %s723, %s728
          %s730 = smul.addr %s48, 16
          %s731 = smul.addr %s730, 64
          %s732 = scalar_lea.hbm %s9, %s731
          %s733 = sshll.u32 %s726, 4
          %s734 = int_to_ptr.vmem [resolvable:$true] %s733
          %739 = dma.hbm_to_vmem [thread:$0]  %s732, 1024, %s734, %s723, 64, 64, 4
        $region64: #{tpu_custom_call.1} parent=31 // pred_fallthru
          _
        // Predicated region
        $region65: #{tpu_custom_call.1} parent=31 // pred_check
          %p740 = pneg %p322
        $region66: #{tpu_custom_call.1} parent=31 // pred_check_branch
          %742 = sbr.rel (%p740) target = $region68
        $region67: #{tpu_custom_call.1} parent=31 // pred_region
          %p743 = scmp.lt.s32.totalorder %s48, 1
          %s744 = scalar_select %p743, %s48, 1
          %s745 = scalar_lea.vmem %s10, %s744
        $region68: #{tpu_custom_call.1} parent=31 // pred_fallthru
          _
        // Predicated region
        $region69: #{tpu_custom_call.1} parent=31 // pred_check
          %p746 = pneg %p348
        $region70: #{tpu_custom_call.1} parent=31 // pred_check_branch
          %748 = sbr.rel (%p746) target = $region72
        $region71: #{tpu_custom_call.1} parent=31 // pred_region
          %s749 = sand.u32 %s40, 1
          %s750 = scalar_lea.sflag [#allocation10], %s749
          %s751 = sand.u32 %s338, 1
          %s752 = smul.addr %s751, 64
          %s753 = scalar_lea.vmem [#allocation11], %s752
          %s755 = ssub.s32 1024, 1024
          %756 = vsyncadd %s750, %s755
          %s757 = smul.addr %s48, 16
          %s758 = smul.addr %s757, 64
          %s759 = scalar_lea.hbm %s11, %s758
          %s760 = sshll.u32 %s753, 4
          %s761 = int_to_ptr.vmem [resolvable:$true] %s760
          %766 = dma.hbm_to_vmem [thread:$0]  %s759, 1024, %s761, %s750, 64, 64, 4
        $region72: #{tpu_custom_call.1} parent=31 // pred_fallthru
          _
        // Predicated region
        $region73: #{tpu_custom_call.1} parent=31 // pred_check
          %p767 = pneg %p374
        $region74: #{tpu_custom_call.1} parent=31 // pred_check_branch
          %769 = sbr.rel (%p767) target = $region76
        $region75: #{tpu_custom_call.1} parent=31 // pred_region
          %p770 = scmp.lt.s32.totalorder %s48, 1
          %s771 = scalar_select %p770, %s48, 1
          %s772 = scalar_lea.vmem %s12, %s771
        $region76: #{tpu_custom_call.1} parent=31 // pred_fallthru
          _
        // Predicated region
        $region77: #{tpu_custom_call.1} parent=31 // pred_check
          %p773 = pneg %p400
        $region78: #{tpu_custom_call.1} parent=31 // pred_check_branch
          %775 = sbr.rel (%p773) target = $region80
        $region79: #{tpu_custom_call.1} parent=31 // pred_region
          %p776 = scmp.lt.s32.totalorder %s48, 1
          %s777 = scalar_select %p776, %s48, 1
          %s778 = scalar_lea.vmem %s13, %s777
        $region80: #{tpu_custom_call.1} parent=31 // pred_fallthru
          _
        // Predicated region
        $region81: #{tpu_custom_call.1} parent=31 // pred_check
          %p779 = pneg %p426
        $region82: #{tpu_custom_call.1} parent=31 // pred_check_branch
          %781 = sbr.rel (%p779) target = $region84
        $region83: #{tpu_custom_call.1} parent=31 // pred_region
          %p782 = scmp.lt.s32.totalorder %s48, 1
          %s783 = scalar_select %p782, %s48, 1
          %s784 = scalar_lea.vmem %s14, %s783
        $region84: #{tpu_custom_call.1} parent=31 // pred_fallthru
          _
        // Predicated region
        $region85: #{tpu_custom_call.1} parent=31 // pred_check
          %p785 = pneg %p452
        $region86: #{tpu_custom_call.1} parent=31 // pred_check_branch
          %787 = sbr.rel (%p785) target = $region88
        $region87: #{tpu_custom_call.1} parent=31 // pred_region
          %s788 = sand.u32 %s40, 1
          %s789 = scalar_lea.sflag [#allocation13], %s788
          %s790 = sand.u32 %s442, 1
          %s791 = smul.addr %s790, 128
          %s792 = scalar_lea.vmem [#allocation12], %s791
          %s794 = ssub.s32 2048, 2048
          %795 = vsyncadd %s789, %s794
          %s796 = smul.addr %s48, 32
          %s797 = smul.addr %s796, 64
          %s798 = scalar_lea.hbm %s15, %s797
          %s799 = sshll.u32 %s792, 4
          %s800 = int_to_ptr.vmem [resolvable:$true] %s799
          %805 = dma.hbm_to_vmem [thread:$0]  %s798, 2048, %s800, %s789, 128, 128, 8
        $region88: #{tpu_custom_call.1} parent=31 // pred_fallthru
          _
        // Predicated region
        $region89: #{tpu_custom_call.1} parent=31 // pred_check
          %p806 = pneg %p478
        $region90: #{tpu_custom_call.1} parent=31 // pred_check_branch
          %808 = sbr.rel (%p806) target = $region92
        $region91: #{tpu_custom_call.1} parent=31 // pred_region
          %p809 = scmp.lt.s32.totalorder %s48, 1
          %s810 = scalar_select %p809, %s48, 1
          %s811 = smul.addr %s810, 2
          %s812 = scalar_lea.vmem %s16, %s811
        $region92: #{tpu_custom_call.1} parent=31 // pred_fallthru
          _
        // Predicated region
        $region93: #{tpu_custom_call.1} parent=31 // pred_check
          %p813 = pneg %p504
        $region94: #{tpu_custom_call.1} parent=31 // pred_check_branch
          %815 = sbr.rel (%p813) target = $region96
        $region95: #{tpu_custom_call.1} parent=31 // pred_region
          %s816 = sand.u32 %s40, 1
          %s817 = scalar_lea.sflag [#allocation13], %s816
          %s818 = sand.u32 %s494, 1
          %s819 = smul.addr %s818, 128
          %s820 = scalar_lea.vmem [#allocation14], %s819
          %s822 = ssub.s32 2048, 2048
          %823 = vsyncadd %s817, %s822
          %s824 = smul.addr %s48, 32
          %s825 = smul.addr %s824, 64
          %s826 = scalar_lea.hbm %s17, %s825
          %s827 = sshll.u32 %s820, 4
          %s828 = int_to_ptr.vmem [resolvable:$true] %s827
          %833 = dma.hbm_to_vmem [thread:$0]  %s826, 2048, %s828, %s817, 64, 64, 4
        $region96: #{tpu_custom_call.1} parent=31 // pred_fallthru
          _
        // Predicated region
        $region97: #{tpu_custom_call.1} parent=31 // pred_check
          %p834 = pneg %p530
        $region98: #{tpu_custom_call.1} parent=31 // pred_check_branch
          %836 = sbr.rel (%p834) target = $region100
        $region99: #{tpu_custom_call.1} parent=31 // pred_region
          %p837 = scmp.lt.s32.totalorder %s48, 1
          %s838 = scalar_select %p837, %s48, 1
          %s839 = scalar_lea.vmem %s18, %s838
        $region100: #{tpu_custom_call.1} parent=31 // pred_fallthru
          _
      $region32: #{tpu_custom_call.1} parent=5 // pred_fallthru
        _
      %p840 = scmp.le.s32.totalorder 1, %s40
      %p841 = scmp.lt.s32.totalorder %s40, 5
      %p842 = pnand %p840, %p841
      %p843 = pneg %p842
      // Predicated region
      $region101: #{tpu_custom_call.1} parent=5 // pred_check
        _
      $region102: #{tpu_custom_call.1} parent=5 // pred_check_branch
        %845 = sbr.rel (%p842) target = $region104
      $region103: #{tpu_custom_call.1} parent=5 // pred_region
        %s846 = ssub.s32 %s40, 1
        // Predicated region
        $region105: #{tpu_custom_call.1} parent=103 // pred_check
          %p847 = pneg %p99
        $region106: #{tpu_custom_call.1} parent=103 // pred_check_branch
          %849 = sbr.rel (%p847) target = $region108
        $region107: #{tpu_custom_call.1} parent=103 // pred_region
          %850 = dma.done [#allocation4], 1536
        $region108: #{tpu_custom_call.1} parent=103 // pred_fallthru
          _
        %s851 = sand.u32 %s45, 1
        %s852 = scalar_lea.sflag [#allocation7], %s851
        %s853 = sand.u32 %s185, 1
        %s854 = smul.addr %s853, 64
        %s855 = scalar_lea.vmem [#allocation6], %s854
        // Predicated region
        $region109: #{tpu_custom_call.1} parent=103 // pred_check
          %p856 = pneg %p198
        $region110: #{tpu_custom_call.1} parent=103 // pred_check_branch
          %858 = sbr.rel (%p856) target = $region112
        $region111: #{tpu_custom_call.1} parent=103 // pred_region
          %859 = dma.done %s852, 1024
        $region112: #{tpu_custom_call.1} parent=103 // pred_fallthru
          _
        %s860 = sand.u32 %s45, 1
        %s861 = scalar_lea.sflag [#allocation7], %s860
        %s862 = sand.u32 %s237, 1
        %s863 = smul.addr %s862, 64
        %s864 = scalar_lea.vmem [#allocation8], %s863
        // Predicated region
        $region113: #{tpu_custom_call.1} parent=103 // pred_check
          %p865 = pneg %p250
        $region114: #{tpu_custom_call.1} parent=103 // pred_check_branch
          %867 = sbr.rel (%p865) target = $region116
        $region115: #{tpu_custom_call.1} parent=103 // pred_region
          %868 = dma.done %s861, 1024
        $region116: #{tpu_custom_call.1} parent=103 // pred_fallthru
          _
        %s869 = sand.u32 %s45, 1
        %s870 = scalar_lea.sflag [#allocation10], %s869
        %s871 = sand.u32 %s289, 1
        %s872 = smul.addr %s871, 64
        %s873 = scalar_lea.vmem [#allocation9], %s872
        // Predicated region
        $region117: #{tpu_custom_call.1} parent=103 // pred_check
          %p874 = pneg %p302
        $region118: #{tpu_custom_call.1} parent=103 // pred_check_branch
          %876 = sbr.rel (%p874) target = $region120
        $region119: #{tpu_custom_call.1} parent=103 // pred_region
          %877 = dma.done %s870, 1024
        $region120: #{tpu_custom_call.1} parent=103 // pred_fallthru
          _
        %s878 = sand.u32 %s45, 1
        %s879 = scalar_lea.sflag [#allocation10], %s878
        %s880 = sand.u32 %s341, 1
        %s881 = smul.addr %s880, 64
        %s882 = scalar_lea.vmem [#allocation11], %s881
        // Predicated region
        $region121: #{tpu_custom_call.1} parent=103 // pred_check
          %p883 = pneg %p354
        $region122: #{tpu_custom_call.1} parent=103 // pred_check_branch
          %885 = sbr.rel (%p883) target = $region124
        $region123: #{tpu_custom_call.1} parent=103 // pred_region
          %886 = dma.done %s879, 1024
        $region124: #{tpu_custom_call.1} parent=103 // pred_fallthru
          _
        %s887 = sand.u32 %s45, 1
        %s888 = scalar_lea.sflag [#allocation13], %s887
        %s889 = sand.u32 %s445, 1
        %s890 = smul.addr %s889, 128
        %s891 = scalar_lea.vmem [#allocation12], %s890
        // Predicated region
        $region125: #{tpu_custom_call.1} parent=103 // pred_check
          %p892 = pneg %p458
        $region126: #{tpu_custom_call.1} parent=103 // pred_check_branch
          %894 = sbr.rel (%p892) target = $region128
        $region127: #{tpu_custom_call.1} parent=103 // pred_region
          %895 = dma.done %s888, 2048
        $region128: #{tpu_custom_call.1} parent=103 // pred_fallthru
          _
        %s896 = sand.u32 %s45, 1
        %s897 = scalar_lea.sflag [#allocation13], %s896
        %s898 = sand.u32 %s497, 1
        %s899 = smul.addr %s898, 128
        %s900 = scalar_lea.vmem [#allocation14], %s899
        // Predicated region
        $region129: #{tpu_custom_call.1} parent=103 // pred_check
          %p901 = pneg %p510
        $region130: #{tpu_custom_call.1} parent=103 // pred_check_branch
          %903 = sbr.rel (%p901) target = $region132
        $region131: #{tpu_custom_call.1} parent=103 // pred_region
          %904 = dma.done %s897, 2048
        $region132: #{tpu_custom_call.1} parent=103 // pred_fallthru
          _
        %p905 = scmp.lt.s32.totalorder %s49, 1
        %s906 = scalar_select %p905, %s49, 1
        %s907 = smul.addr %s906, 4
        %s908 = smul.addr %s907, 4
        %s909 = scalar_lea.vmem %s0, %s908
        %p910 = pneg %p78
        %p911 = pneg %p75
        %p912 = pneg %p99
        %p913 = pneg %p96
        %p914 = pneg %p120
        %p915 = pneg %p117
        %p916 = scmp.lt.s32.totalorder %s50, 1
        %s917 = scalar_select %p916, %s50, 1
        %s918 = scalar_lea.vmem %s3, %s917
        %p919 = pneg %p146
        %p920 = pneg %p143
        %p921 = scmp.lt.s32.totalorder %s50, 1
        %s922 = scalar_select %p921, %s50, 1
        %s923 = scalar_lea.vmem %s4, %s922
        %p924 = pneg %p172
        %p925 = pneg %p169
        %s926 = sand.u32 %s45, 1
        %s927 = scalar_lea.sflag [#allocation7], %s926
        %s928 = sand.u32 %s185, 1
        %s929 = smul.addr %s928, 64
        %s930 = scalar_lea.vmem [#allocation6], %s929
        %p931 = pneg %p198
        %p932 = pneg %p195
        %p933 = scmp.lt.s32.totalorder %s50, 1
        %s934 = scalar_select %p933, %s50, 1
        %s935 = scalar_lea.vmem %s6, %s934
        %p936 = pneg %p224
        %p937 = pneg %p221
        %s938 = sand.u32 %s45, 1
        %s939 = scalar_lea.sflag [#allocation7], %s938
        %s940 = sand.u32 %s237, 1
        %s941 = smul.addr %s940, 64
        %s942 = scalar_lea.vmem [#allocation8], %s941
        %p943 = pneg %p250
        %p944 = pneg %p247
        %p945 = scmp.lt.s32.totalorder %s50, 1
        %s946 = scalar_select %p945, %s50, 1
        %s947 = scalar_lea.vmem %s8, %s946
        %p948 = pneg %p276
        %p949 = pneg %p273
        %s950 = sand.u32 %s45, 1
        %s951 = scalar_lea.sflag [#allocation10], %s950
        %s952 = sand.u32 %s289, 1
        %s953 = smul.addr %s952, 64
        %s954 = scalar_lea.vmem [#allocation9], %s953
        %p955 = pneg %p302
        %p956 = pneg %p299
        %p957 = scmp.lt.s32.totalorder %s50, 1
        %s958 = scalar_select %p957, %s50, 1
        %s959 = scalar_lea.vmem %s10, %s958
        %p960 = pneg %p328
        %p961 = pneg %p325
        %s962 = sand.u32 %s45, 1
        %s963 = scalar_lea.sflag [#allocation10], %s962
        %s964 = sand.u32 %s341, 1
        %s965 = smul.addr %s964, 64
        %s966 = scalar_lea.vmem [#allocation11], %s965
        %p967 = pneg %p354
        %p968 = pneg %p351
        %p969 = scmp.lt.s32.totalorder %s50, 1
        %s970 = scalar_select %p969, %s50, 1
        %s971 = scalar_lea.vmem %s12, %s970
        %p972 = pneg %p380
        %p973 = pneg %p377
        %p974 = scmp.lt.s32.totalorder %s50, 1
        %s975 = scalar_select %p974, %s50, 1
        %s976 = scalar_lea.vmem %s13, %s975
        %p977 = pneg %p406
        %p978 = pneg %p403
        %p979 = scmp.lt.s32.totalorder %s50, 1
        %s980 = scalar_select %p979, %s50, 1
        %s981 = scalar_lea.vmem %s14, %s980
        %p982 = pneg %p432
        %p983 = pneg %p429
        %s984 = sand.u32 %s45, 1
        %s985 = scalar_lea.sflag [#allocation13], %s984
        %s986 = sand.u32 %s445, 1
        %s987 = smul.addr %s986, 128
        %s988 = scalar_lea.vmem [#allocation12], %s987
        %p989 = pneg %p458
        %p990 = pneg %p455
        %p991 = scmp.lt.s32.totalorder %s50, 1
        %s992 = scalar_select %p991, %s50, 1
        %s993 = smul.addr %s992, 2
        %s994 = scalar_lea.vmem %s16, %s993
        %p995 = pneg %p484
        %p996 = pneg %p481
        %s997 = sand.u32 %s45, 1
        %s998 = scalar_lea.sflag [#allocation13], %s997
        %s999 = sand.u32 %s497, 1
        %s1000 = smul.addr %s999, 128
        %s1001 = scalar_lea.vmem [#allocation14], %s1000
        %p1002 = pneg %p510
        %p1003 = pneg %p507
        %p1004 = scmp.lt.s32.totalorder %s50, 1
        %s1005 = scalar_select %p1004, %s50, 1
        %s1006 = scalar_lea.vmem %s18, %s1005
        %p1007 = pneg %p536
        %p1008 = pneg %p533
        %p1009 = pneg %p557
        %p1010 = pneg %p554
        %p1011 = pneg %p578
        %p1012 = pneg %p575
        %p1013 = pneg %p604
        %p1014 = pneg %p601
        %s1015 = sand.u32 %s591, 1
        %s1016 = scalar_lea.sflag [#allocation5], %s1015
        %s1017 = sand.u32 %s591, 1
        %s1018 = scalar_lea.vmem [#allocation15], %s1017
        %p1019 = scmp.lt.s32.totalorder %s49, 1
        %s1020 = scalar_select %p1019, %s49, 1
        %s1021 = smul.addr %s1020, 4
        %s1022 = smul.addr %s1021, 4
        %s1023 = scalar_lea.vmem %s0, %s1022
        %p1024 = scmp.lt.s32.totalorder %s50, 1
        %s1025 = scalar_select %p1024, %s50, 1
        %s1026 = scalar_lea.vmem %s3, %s1025
        %p1027 = scmp.lt.s32.totalorder %s50, 1
        %s1028 = scalar_select %p1027, %s50, 1
        %s1029 = scalar_lea.vmem %s4, %s1028
        %p1030 = scmp.lt.s32.totalorder %s50, 1
        %s1031 = scalar_select %p1030, %s50, 1
        %s1032 = scalar_lea.vmem %s6, %s1031
        %p1033 = scmp.lt.s32.totalorder %s50, 1
        %s1034 = scalar_select %p1033, %s50, 1
        %s1035 = scalar_lea.vmem %s8, %s1034
        %p1036 = scmp.lt.s32.totalorder %s50, 1
        %s1037 = scalar_select %p1036, %s50, 1
        %s1038 = scalar_lea.vmem %s10, %s1037
        %p1039 = scmp.lt.s32.totalorder %s50, 1
        %s1040 = scalar_select %p1039, %s50, 1
        %s1041 = scalar_lea.vmem %s12, %s1040
        %p1042 = scmp.lt.s32.totalorder %s50, 1
        %s1043 = scalar_select %p1042, %s50, 1
        %s1044 = scalar_lea.vmem %s13, %s1043
        %p1045 = scmp.lt.s32.totalorder %s50, 1
        %s1046 = scalar_select %p1045, %s50, 1
        %s1047 = scalar_lea.vmem %s14, %s1046
        %p1048 = scmp.lt.s32.totalorder %s50, 1
        %s1049 = scalar_select %p1048, %s50, 1
        %s1050 = smul.addr %s1049, 2
        %s1051 = scalar_lea.vmem %s16, %s1050
        %p1052 = scmp.lt.s32.totalorder %s50, 1
        %s1053 = scalar_select %p1052, %s50, 1
        %s1054 = scalar_lea.vmem %s18, %s1053
        %p1056 = scmp.eq.s32.totalorder %s50, 0
        // Predicated region
        $region133: #{tpu_custom_call.1} parent=103 // pred_check
          %p1057 = pneg %p1056
        $region134: #{tpu_custom_call.1} parent=103 // pred_check_branch
          %1059 = sbr.rel (%p1057) target = $region136
        $region135: #{tpu_custom_call.1} parent=103 // pred_region
          %v1060 = vld [vmem:[%s1023] sm:$0xff]
          %v1061 = vld [vmem:[%s1023 + $0x8] sm:$0xff]
          %v1062 = vld [vmem:[#allocation3] sm:$0xf]
          %v1063 = vld [vmem:[#allocation3 + $0x4] sm:$0xf]
          %v1064 = vld [vmem:[#allocation3 + $0x8] sm:$0xf]
          %v1065 = vld [vmem:[#allocation3 + $0xc] sm:$0xf]
          %v1066 = vld [vmem:[#allocation3 + $0x10] sm:$0xf]
          %v1067 = vld [vmem:[#allocation3 + $0x14] sm:$0xf]
          %v1068 = vld [vmem:[#allocation3 + $0x18] sm:$0xf]
          %v1069 = vld [vmem:[#allocation3 + $0x1c] sm:$0xf]
          %v1070 = vld [vmem:[#allocation3 + $0x20] sm:$0xf]
          %v1071 = vld [vmem:[#allocation3 + $0x24] sm:$0xf]
          %v1072 = vld [vmem:[#allocation3 + $0x28] sm:$0xf]
          %v1073 = vld [vmem:[#allocation3 + $0x2c] sm:$0xf]
          %v1074 = vld [vmem:[#allocation3 + $0x30] sm:$0xf]
          %v1075 = vld [vmem:[#allocation3 + $0x34] sm:$0xf]
          %v1076 = vld [vmem:[#allocation3 + $0x38] sm:$0xf]
          %v1077 = vld [vmem:[#allocation3 + $0x3c] sm:$0xf]
          %v1078 = vld [vmem:[#allocation3 + $0x40] sm:$0xf]
          %v1079 = vld [vmem:[#allocation3 + $0x44] sm:$0xf]
          %v1080 = vld [vmem:[#allocation3 + $0x48] sm:$0xf]
          %v1081 = vld [vmem:[#allocation3 + $0x4c] sm:$0xf]
          %v1082 = vld [vmem:[#allocation3 + $0x50] sm:$0xf]
          %v1083 = vld [vmem:[#allocation3 + $0x54] sm:$0xf]
          %v1084 = vld [vmem:[#allocation3 + $0x58] sm:$0xf]
          %v1085 = vld [vmem:[#allocation3 + $0x5c] sm:$0xf]
          %v1086 = vld [vmem:[%s2] sm:$0x1]
          %v1088 = vlaneseq
          %v1089 = vshrl.u32 %v1088, 7
          %v1090 = vsub.s32 0, %v1089
          %v1091 = vrot.slane %v1086, %v1090
          %v1095 = vunpack.c.l.b16 %v1060
          %v1096 = vunpack.c.h.b16 %v1060
          %v1097 = vunpack.c.l.b16 %v1061
          %v1098 = vunpack.c.h.b16 %v1061
          %v1099 = vpack.c.b16 %v1097, %v1095
          %v1100 = vpack.c.b16 %v1098, %v1096
          %v1126 = vunpack.c.l.b16 %v1062
          %v1127 = vunpack.c.l.b16 %v1063
          %v1128 = vunpack.c.l.b16 %v1064
          %v1129 = vunpack.c.l.b16 %v1065
          %v1130 = vunpack.c.l.b16 %v1066
          %v1131 = vunpack.c.l.b16 %v1067
          %v1132 = vunpack.c.l.b16 %v1068
          %v1133 = vunpack.c.l.b16 %v1069
          %v1134 = vunpack.c.l.b16 %v1070
          %v1135 = vunpack.c.l.b16 %v1071
          %v1136 = vunpack.c.l.b16 %v1072
          %v1137 = vunpack.c.l.b16 %v1073
          %v1138 = vunpack.c.l.b16 %v1074
          %v1139 = vunpack.c.l.b16 %v1075
          %v1140 = vunpack.c.l.b16 %v1076
          %v1141 = vunpack.c.l.b16 %v1077
          %v1142 = vunpack.c.l.b16 %v1078
          %v1143 = vunpack.c.l.b16 %v1079
          %v1144 = vunpack.c.l.b16 %v1080
          %v1145 = vunpack.c.l.b16 %v1081
          %v1146 = vunpack.c.l.b16 %v1082
          %v1147 = vunpack.c.l.b16 %v1083
          %v1148 = vunpack.c.l.b16 %v1084
          %v1149 = vunpack.c.l.b16 %v1085
          %v1150 = vpack.c.b16 %v1127, %v1126
          %v1151 = vpack.c.b16 %v1129, %v1128
          %v1152 = vpack.c.b16 %v1131, %v1130
          %v1153 = vpack.c.b16 %v1133, %v1132
          %v1154 = vpack.c.b16 %v1135, %v1134
          %v1155 = vpack.c.b16 %v1137, %v1136
          %v1156 = vpack.c.b16 %v1139, %v1138
          %v1157 = vpack.c.b16 %v1141, %v1140
          %v1158 = vpack.c.b16 %v1143, %v1142
          %v1159 = vpack.c.b16 %v1145, %v1144
          %v1160 = vpack.c.b16 %v1147, %v1146
          %v1161 = vpack.c.b16 %v1149, %v1148
          %vm1174 = vcmask 523264
          %v1176 = vsel %vm1174, %v1100, 0
          %1178 = vmatprep.subr.bf16.mxu0 0
          %1179 = vmatpush1.bf16.msra.mxu0 %v1157
          %1180 = vmatprep.subr.bf16.mxu0 0
          %1181 = vmatpush1.bf16.msra.mxu0 %v1156
          %1182 = vmatprep.subr.bf16.mxu0 0
          %1183 = vmatpush1.bf16.msra.mxu0 %v1155
          %1184 = vmatprep.subr.bf16.mxu0 0
          %1185 = vmatpush1.bf16.msra.mxu0 %v1154
          %1186 = vmatprep.subr.bf16.mxu0 0
          %1187 = vmatpush1.bf16.msra.mxu0 %v1153
          %1188 = vmatprep.subr.bf16.mxu0 0
          %1189 = vmatpush1.bf16.msra.mxu0 %v1152
          %1190 = vmatprep.subr.bf16.mxu0 0
          %1191 = vmatpush1.bf16.msra.mxu0 %v1151
          %1192 = vmatprep.subr.bf16.mxu0 0
          %1193 = vmatpush1.bf16.msra.mxu0 %v1150
          %1194 = vmatprep.subr.bf16.mxu0 0
          %1195 = vmatpush2.bf16.msra.mxu0 0
          %1196 = vmatprep.subr.bf16.mxu0 0
          %1197 = vmatpush2.bf16.msra.mxu0 0
          %1198 = vmatprep.subr.bf16.mxu0 0
          %1199 = vmatpush2.bf16.msra.mxu0 0
          %1200 = vmatprep.subr.bf16.mxu0 0
          %1201 = vmatpush2.bf16.msra.mxu0 0
          %1202 = vmatprep.subr.bf16.mxu0 0
          %1203 = vmatpush2.bf16.msra.mxu0 %v1161
          %1204 = vmatprep.subr.bf16.mxu0 0
          %1205 = vmatpush2.bf16.msra.mxu0 %v1160
          %1206 = vmatprep.subr.bf16.mxu0 0
          %1207 = vmatpush2.bf16.msra.mxu0 %v1159
          %1208 = vmatprep.subr.bf16.mxu0 0
          %1209 = vmatpush2.bf16.msra.mxu0 %v1158
          %1210 = vmatprep.mubr.bf16.mxu0 %v1176
          %1211 = vmatmul.mubr.bf16.gmra.mxu0 %v1099
          %v1212 = vpop.f32.mrf.mxu0
          %v1213 = vadd.f32 %v1091, %v1212
          %v1214 = vpop.f32.mrf.mxu0
          %v1215 = vpop.f32.mrf.mxu0
          %v1216 = vadd.f32 %v1091, %v1215
          %v1217 = vpop.f32.mrf.mxu0
          %1218 = vdwg.mxu0
          %1219 = vst [vmem:[#allocation2] sm:$0xff] %v1213
          %1220 = vst [vmem:[#allocation2 + $0x8] sm:$0xff] %v1216
        $region136: #{tpu_custom_call.1} parent=103 // pred_fallthru
          _
        %v1221 = vld [vmem:[#allocation2] sm:$0xff]
        %v1222 = vld [vmem:[#allocation2 + $0x8] sm:$0xff]
        %v1223 = vld [vmem:[%s1026] sm:$0x1]
        %v1224 = vld [vmem:[%s1029] sm:$0x1]
        %1225 = vadd.xlane.f32.xlu0 %v1221
        %v1226 = vpop.xlane.xlu0 %1225
        %1227 = vadd.xlane.f32.xlu0 %v1222
        %v1228 = vpop.xlane.xlu0 %1227
        %v1229 = vrcp.pop 128.0
        %v1230 = vmul.f32 %v1226, %v1229
        %v1231 = vmul.f32 %v1228, %v1229
        %v1232 = vsub.f32 %v1221, %v1230
        %v1233 = vsub.f32 %v1222, %v1231
        %v1234 = vmul.f32 %v1232, %v1232
        %v1235 = vmul.f32 %v1233, %v1233
        %1236 = vadd.xlane.f32.xlu0 %v1234
        %v1237 = vpop.xlane.xlu0 %1236
        %1238 = vadd.xlane.f32.xlu0 %v1235
        %v1239 = vpop.xlane.xlu0 %1238
        %v1240 = vmul.f32 %v1237, %v1229
        %v1241 = vmul.f32 %v1239, %v1229
        %v1242 = vadd.f32 %v1240, 1e-12
        %v1243 = vadd.f32 %v1241, 1e-12
        %v1244 = vrsqrt.pop %v1242
        %v1245 = vrsqrt.pop %v1243
        %v1246 = vmul.f32 %v1232, %v1244
        %v1247 = vmul.f32 %v1233, %v1245
        %v1249 = vlaneseq
        %v1250 = vshrl.u32 %v1249, 7
        %v1251 = vsub.s32 0, %v1250
        %v1252 = vrot.slane %v1223, %v1251
        %v1254 = vmul.f32 %v1246, %v1252
        %v1255 = vmul.f32 %v1247, %v1252
        %v1257 = vlaneseq
        %v1258 = vshrl.u32 %v1257, 7
        %v1259 = vsub.s32 0, %v1258
        %v1260 = vrot.slane %v1224, %v1259
        %v1262 = vadd.f32 %v1254, %v1260
        %v1263 = vadd.f32 %v1255, %v1260
        %v1264 = vpack.c.bf16 %v1263, %v1262
        %v1265 = vld [vmem:[%s855] sm:$0xf]
        %v1266 = vld [vmem:[%s855 + $0x4] sm:$0xf]
        %v1267 = vld [vmem:[%s855 + $0x8] sm:$0xf]
        %v1268 = vld [vmem:[%s855 + $0xc] sm:$0xf]
        %v1269 = vld [vmem:[%s855 + $0x10] sm:$0xf]
        %v1270 = vld [vmem:[%s855 + $0x14] sm:$0xf]
        %v1271 = vld [vmem:[%s855 + $0x18] sm:$0xf]
        %v1272 = vld [vmem:[%s855 + $0x1c] sm:$0xf]
        %v1273 = vld [vmem:[%s855 + $0x20] sm:$0xf]
        %v1274 = vld [vmem:[%s855 + $0x24] sm:$0xf]
        %v1275 = vld [vmem:[%s855 + $0x28] sm:$0xf]
        %v1276 = vld [vmem:[%s855 + $0x2c] sm:$0xf]
        %v1277 = vld [vmem:[%s855 + $0x30] sm:$0xf]
        %v1278 = vld [vmem:[%s855 + $0x34] sm:$0xf]
        %v1279 = vld [vmem:[%s855 + $0x38] sm:$0xf]
        %v1280 = vld [vmem:[%s855 + $0x3c] sm:$0xf]
        %v1281 = vld [vmem:[%s1032] sm:$0x1]
        %v1283 = vlaneseq
        %v1284 = vshrl.u32 %v1283, 7
        %v1285 = vsub.s32 0, %v1284
        %v1286 = vrot.slane %v1281, %v1285
        %v1304 = vunpack.c.l.b16 %v1265
        %v1305 = vunpack.c.l.b16 %v1266
        %v1306 = vunpack.c.l.b16 %v1267
        %v1307 = vunpack.c.l.b16 %v1268
        %v1308 = vunpack.c.l.b16 %v1269
        %v1309 = vunpack.c.l.b16 %v1270
        %v1310 = vunpack.c.l.b16 %v1271
        %v1311 = vunpack.c.l.b16 %v1272
        %v1312 = vunpack.c.l.b16 %v1273
        %v1313 = vunpack.c.l.b16 %v1274
        %v1314 = vunpack.c.l.b16 %v1275
        %v1315 = vunpack.c.l.b16 %v1276
        %v1316 = vunpack.c.l.b16 %v1277
        %v1317 = vunpack.c.l.b16 %v1278
        %v1318 = vunpack.c.l.b16 %v1279
        %v1319 = vunpack.c.l.b16 %v1280
        %v1320 = vpack.c.b16 %v1305, %v1304
        %v1321 = vpack.c.b16 %v1307, %v1306
        %v1322 = vpack.c.b16 %v1309, %v1308
        %v1323 = vpack.c.b16 %v1311, %v1310
        %v1324 = vpack.c.b16 %v1313, %v1312
        %v1325 = vpack.c.b16 %v1315, %v1314
        %v1326 = vpack.c.b16 %v1317, %v1316
        %v1327 = vpack.c.b16 %v1319, %v1318
        %1336 = vmatprep.subr.bf16.mxu0 0
        %1337 = vmatpush1.bf16.msra.mxu0 %v1327
        %1338 = vmatprep.subr.bf16.mxu0 0
        %1339 = vmatpush1.bf16.msra.mxu0 %v1326
        %1340 = vmatprep.subr.bf16.mxu0 0
        %1341 = vmatpush1.bf16.msra.mxu0 %v1325
        %1342 = vmatprep.subr.bf16.mxu0 0
        %1343 = vmatpush1.bf16.msra.mxu0 %v1324
        %1344 = vmatprep.subr.bf16.mxu0 0
        %1345 = vmatpush1.bf16.msra.mxu0 %v1323
        %1346 = vmatprep.subr.bf16.mxu0 0
        %1347 = vmatpush1.bf16.msra.mxu0 %v1322
        %1348 = vmatprep.subr.bf16.mxu0 0
        %1349 = vmatpush1.bf16.msra.mxu0 %v1321
        %1350 = vmatprep.subr.bf16.mxu0 0
        %1351 = vmatpush1.bf16.msra.mxu0 %v1320
        %1352 = vmatprep.subr.bf16.mxu0 0
        %1353 = vmatpush2.bf16.msra.mxu0 0
        %1354 = vmatprep.subr.bf16.mxu0 0
        %1355 = vmatpush2.bf16.msra.mxu0 0
        %1356 = vmatprep.subr.bf16.mxu0 0
        %1357 = vmatpush2.bf16.msra.mxu0 0
        %1358 = vmatprep.subr.bf16.mxu0 0
        %1359 = vmatpush2.bf16.msra.mxu0 0
        %1360 = vmatprep.subr.bf16.mxu0 0
        %1361 = vmatpush2.bf16.msra.mxu0 0
        %1362 = vmatprep.subr.bf16.mxu0 0
        %1363 = vmatpush2.bf16.msra.mxu0 0
        %1364 = vmatprep.subr.bf16.mxu0 0
        %1365 = vmatpush2.bf16.msra.mxu0 0
        %1366 = vmatprep.subr.bf16.mxu0 0
        %1367 = vmatpush2.bf16.msra.mxu0 0
        %1368 = vmatprep.mubr.bf16.mxu0 0
        %1369 = vmatmul.mubr.bf16.gmra.mxu0 %v1264
        %v1370 = vpop.f32.mrf.mxu0
        %v1371 = vadd.f32 %v1286, %v1370
        %v1372 = vpop.f32.mrf.mxu0
        %v1373 = vpop.f32.mrf.mxu0
        %v1374 = vadd.f32 %v1286, %v1373
        %v1375 = vpop.f32.mrf.mxu0
        %1376 = vdwg.mxu0
        %v1377 = vld [vmem:[%s864] sm:$0xf]
        %v1378 = vld [vmem:[%s864 + $0x4] sm:$0xf]
        %v1379 = vld [vmem:[%s864 + $0x8] sm:$0xf]
        %v1380 = vld [vmem:[%s864 + $0xc] sm:$0xf]
        %v1381 = vld [vmem:[%s864 + $0x10] sm:$0xf]
        %v1382 = vld [vmem:[%s864 + $0x14] sm:$0xf]
        %v1383 = vld [vmem:[%s864 + $0x18] sm:$0xf]
        %v1384 = vld [vmem:[%s864 + $0x1c] sm:$0xf]
        %v1385 = vld [vmem:[%s864 + $0x20] sm:$0xf]
        %v1386 = vld [vmem:[%s864 + $0x24] sm:$0xf]
        %v1387 = vld [vmem:[%s864 + $0x28] sm:$0xf]
        %v1388 = vld [vmem:[%s864 + $0x2c] sm:$0xf]
        %v1389 = vld [vmem:[%s864 + $0x30] sm:$0xf]
        %v1390 = vld [vmem:[%s864 + $0x34] sm:$0xf]
        %v1391 = vld [vmem:[%s864 + $0x38] sm:$0xf]
        %v1392 = vld [vmem:[%s864 + $0x3c] sm:$0xf]
        %v1393 = vld [vmem:[%s1035] sm:$0x1]
        %v1395 = vlaneseq
        %v1396 = vshrl.u32 %v1395, 7
        %v1397 = vsub.s32 0, %v1396
        %v1398 = vrot.slane %v1393, %v1397
        %v1416 = vunpack.c.l.b16 %v1377
        %v1417 = vunpack.c.l.b16 %v1378
        %v1418 = vunpack.c.l.b16 %v1379
        %v1419 = vunpack.c.l.b16 %v1380
        %v1420 = vunpack.c.l.b16 %v1381
        %v1421 = vunpack.c.l.b16 %v1382
        %v1422 = vunpack.c.l.b16 %v1383
        %v1423 = vunpack.c.l.b16 %v1384
        %v1424 = vunpack.c.l.b16 %v1385
        %v1425 = vunpack.c.l.b16 %v1386
        %v1426 = vunpack.c.l.b16 %v1387
        %v1427 = vunpack.c.l.b16 %v1388
        %v1428 = vunpack.c.l.b16 %v1389
        %v1429 = vunpack.c.l.b16 %v1390
        %v1430 = vunpack.c.l.b16 %v1391
        %v1431 = vunpack.c.l.b16 %v1392
        %v1432 = vpack.c.b16 %v1417, %v1416
        %v1433 = vpack.c.b16 %v1419, %v1418
        %v1434 = vpack.c.b16 %v1421, %v1420
        %v1435 = vpack.c.b16 %v1423, %v1422
        %v1436 = vpack.c.b16 %v1425, %v1424
        %v1437 = vpack.c.b16 %v1427, %v1426
        %v1438 = vpack.c.b16 %v1429, %v1428
        %v1439 = vpack.c.b16 %v1431, %v1430
        %1448 = vmatprep.subr.bf16.mxu0 0
        %1449 = vmatpush1.bf16.msra.mxu0 %v1439
        %1450 = vmatprep.subr.bf16.mxu0 0
        %1451 = vmatpush1.bf16.msra.mxu0 %v1438
        %1452 = vmatprep.subr.bf16.mxu0 0
        %1453 = vmatpush1.bf16.msra.mxu0 %v1437
        %1454 = vmatprep.subr.bf16.mxu0 0
        %1455 = vmatpush1.bf16.msra.mxu0 %v1436
        %1456 = vmatprep.subr.bf16.mxu0 0
        %1457 = vmatpush1.bf16.msra.mxu0 %v1435
        %1458 = vmatprep.subr.bf16.mxu0 0
        %1459 = vmatpush1.bf16.msra.mxu0 %v1434
        %1460 = vmatprep.subr.bf16.mxu0 0
        %1461 = vmatpush1.bf16.msra.mxu0 %v1433
        %1462 = vmatprep.subr.bf16.mxu0 0
        %1463 = vmatpush1.bf16.msra.mxu0 %v1432
        %1464 = vmatprep.subr.bf16.mxu0 0
        %1465 = vmatpush2.bf16.msra.mxu0 0
        %1466 = vmatprep.subr.bf16.mxu0 0
        %1467 = vmatpush2.bf16.msra.mxu0 0
        %1468 = vmatprep.subr.bf16.mxu0 0
        %1469 = vmatpush2.bf16.msra.mxu0 0
        %1470 = vmatprep.subr.bf16.mxu0 0
        %1471 = vmatpush2.bf16.msra.mxu0 0
        %1472 = vmatprep.subr.bf16.mxu0 0
        %1473 = vmatpush2.bf16.msra.mxu0 0
        %1474 = vmatprep.subr.bf16.mxu0 0
        %1475 = vmatpush2.bf16.msra.mxu0 0
        %1476 = vmatprep.subr.bf16.mxu0 0
        %1477 = vmatpush2.bf16.msra.mxu0 0
        %1478 = vmatprep.subr.bf16.mxu0 0
        %1479 = vmatpush2.bf16.msra.mxu0 0
        %1480 = vmatprep.mubr.bf16.mxu0 0
        %1481 = vmatmul.mubr.bf16.gmra.mxu0 %v1264
        %v1482 = vpop.f32.mrf.mxu0
        %v1483 = vadd.f32 %v1398, %v1482
        %v1484 = vpop.f32.mrf.mxu0
        %v1485 = vpop.f32.mrf.mxu0
        %v1486 = vadd.f32 %v1398, %v1485
        %v1487 = vpop.f32.mrf.mxu0
        %1488 = vdwg.mxu0
        %v1489 = vld [vmem:[%s873] sm:$0xf]
        %v1490 = vld [vmem:[%s873 + $0x4] sm:$0xf]
        %v1491 = vld [vmem:[%s873 + $0x8] sm:$0xf]
        %v1492 = vld [vmem:[%s873 + $0xc] sm:$0xf]
        %v1493 = vld [vmem:[%s873 + $0x10] sm:$0xf]
        %v1494 = vld [vmem:[%s873 + $0x14] sm:$0xf]
        %v1495 = vld [vmem:[%s873 + $0x18] sm:$0xf]
        %v1496 = vld [vmem:[%s873 + $0x1c] sm:$0xf]
        %v1497 = vld [vmem:[%s873 + $0x20] sm:$0xf]
        %v1498 = vld [vmem:[%s873 + $0x24] sm:$0xf]
        %v1499 = vld [vmem:[%s873 + $0x28] sm:$0xf]
        %v1500 = vld [vmem:[%s873 + $0x2c] sm:$0xf]
        %v1501 = vld [vmem:[%s873 + $0x30] sm:$0xf]
        %v1502 = vld [vmem:[%s873 + $0x34] sm:$0xf]
        %v1503 = vld [vmem:[%s873 + $0x38] sm:$0xf]
        %v1504 = vld [vmem:[%s873 + $0x3c] sm:$0xf]
        %v1505 = vld [vmem:[%s1038] sm:$0x1]
        %v1507 = vlaneseq
        %v1508 = vshrl.u32 %v1507, 7
        %v1509 = vsub.s32 0, %v1508
        %v1510 = vrot.slane %v1505, %v1509
        %v1528 = vunpack.c.l.b16 %v1489
        %v1529 = vunpack.c.l.b16 %v1490
        %v1530 = vunpack.c.l.b16 %v1491
        %v1531 = vunpack.c.l.b16 %v1492
        %v1532 = vunpack.c.l.b16 %v1493
        %v1533 = vunpack.c.l.b16 %v1494
        %v1534 = vunpack.c.l.b16 %v1495
        %v1535 = vunpack.c.l.b16 %v1496
        %v1536 = vunpack.c.l.b16 %v1497
        %v1537 = vunpack.c.l.b16 %v1498
        %v1538 = vunpack.c.l.b16 %v1499
        %v1539 = vunpack.c.l.b16 %v1500
        %v1540 = vunpack.c.l.b16 %v1501
        %v1541 = vunpack.c.l.b16 %v1502
        %v1542 = vunpack.c.l.b16 %v1503
        %v1543 = vunpack.c.l.b16 %v1504
        %v1544 = vpack.c.b16 %v1529, %v1528
        %v1545 = vpack.c.b16 %v1531, %v1530
        %v1546 = vpack.c.b16 %v1533, %v1532
        %v1547 = vpack.c.b16 %v1535, %v1534
        %v1548 = vpack.c.b16 %v1537, %v1536
        %v1549 = vpack.c.b16 %v1539, %v1538
        %v1550 = vpack.c.b16 %v1541, %v1540
        %v1551 = vpack.c.b16 %v1543, %v1542
        %1560 = vmatprep.subr.bf16.mxu0 0
        %1561 = vmatpush1.bf16.msra.mxu0 %v1551
        %1562 = vmatprep.subr.bf16.mxu0 0
        %1563 = vmatpush1.bf16.msra.mxu0 %v1550
        %1564 = vmatprep.subr.bf16.mxu0 0
        %1565 = vmatpush1.bf16.msra.mxu0 %v1549
        %1566 = vmatprep.subr.bf16.mxu0 0
        %1567 = vmatpush1.bf16.msra.mxu0 %v1548
        %1568 = vmatprep.subr.bf16.mxu0 0
        %1569 = vmatpush1.bf16.msra.mxu0 %v1547
        %1570 = vmatprep.subr.bf16.mxu0 0
        %1571 = vmatpush1.bf16.msra.mxu0 %v1546
        %1572 = vmatprep.subr.bf16.mxu0 0
        %1573 = vmatpush1.bf16.msra.mxu0 %v1545
        %1574 = vmatprep.subr.bf16.mxu0 0
        %1575 = vmatpush1.bf16.msra.mxu0 %v1544
        %1576 = vmatprep.subr.bf16.mxu0 0
        %1577 = vmatpush2.bf16.msra.mxu0 0
        %1578 = vmatprep.subr.bf16.mxu0 0
        %1579 = vmatpush2.bf16.msra.mxu0 0
        %1580 = vmatprep.subr.bf16.mxu0 0
        %1581 = vmatpush2.bf16.msra.mxu0 0
        %1582 = vmatprep.subr.bf16.mxu0 0
        %1583 = vmatpush2.bf16.msra.mxu0 0
        %1584 = vmatprep.subr.bf16.mxu0 0
        %1585 = vmatpush2.bf16.msra.mxu0 0
        %1586 = vmatprep.subr.bf16.mxu0 0
        %1587 = vmatpush2.bf16.msra.mxu0 0
        %1588 = vmatprep.subr.bf16.mxu0 0
        %1589 = vmatpush2.bf16.msra.mxu0 0
        %1590 = vmatprep.subr.bf16.mxu0 0
        %1591 = vmatpush2.bf16.msra.mxu0 0
        %1592 = vmatprep.mubr.bf16.mxu0 0
        %1593 = vmatmul.mubr.bf16.gmra.mxu0 %v1264
        %v1594 = vpop.f32.mrf.mxu0
        %v1595 = vadd.f32 %v1510, %v1594
        %v1596 = vpop.f32.mrf.mxu0
        %v1597 = vpop.f32.mrf.mxu0
        %v1598 = vadd.f32 %v1510, %v1597
        %v1599 = vpop.f32.mrf.mxu0
        %1600 = vdwg.mxu0
        %1603 = vrot.lane.b32.xlu0 %v1371, 64
        %v1604 = vpop.permute.xlu0 %1603
        %1605 = vrot.lane.b32.xlu0 %v1374, 64
        %v1606 = vpop.permute.xlu0 %1605
        %v1609 = vcombine.high %v1371, 0.0
        %v1611 = vunpack.c.l.s4 1983009808
        %v1612 = vunpack.c.0.s8 %v1611
        %v1613 = vlaneseq
        %v1614 = vshrl.u32 %v1613, 7
        %v1615 = vsub.s32 %v1612, %v1614
        %v1616 = vrot.slane %v1371, %v1615
        %v1618 = vunpack.c.l.s4 1983009808
        %v1619 = vunpack.c.0.s8 %v1618
        %v1620 = vlaneseq
        %v1621 = vshrl.u32 %v1620, 7
        %v1622 = vsub.s32 %v1619, %v1621
        %v1623 = vrot.slane %v1609, %v1622
        %v1624 = vcombine.high %v1604, 0.0
        %v1626 = vunpack.c.l.s4 1983009808
        %v1627 = vunpack.c.0.s8 %v1626
        %v1628 = vlaneseq
        %v1629 = vshrl.u32 %v1628, 7
        %v1630 = vsub.s32 %v1627, %v1629
        %v1631 = vrot.slane %v1604, %v1630
        %v1633 = vunpack.c.l.s4 1983009808
        %v1634 = vunpack.c.0.s8 %v1633
        %v1635 = vlaneseq
        %v1636 = vshrl.u32 %v1635, 7
        %v1637 = vsub.s32 %v1634, %v1636
        %v1638 = vrot.slane %v1624, %v1637
        %v1639 = vcombine.low %v1616, %v1631
        %v1640 = vcombine.high %v1616, %v1631
        %v1642 = vunpack.c.l.s4 1934713408
        %v1643 = vunpack.c.0.s8 %v1642
        %v1644 = vlaneseq
        %v1645 = vshrl.u32 %v1644, 7
        %v1646 = vsub.s32 %v1643, %v1645
        %v1647 = vrot.slane %v1639, %v1646
        %v1649 = vunpack.c.l.s4 1934713408
        %v1650 = vunpack.c.0.s8 %v1649
        %v1651 = vlaneseq
        %v1652 = vshrl.u32 %v1651, 7
        %v1653 = vsub.s32 %v1650, %v1652
        %v1654 = vrot.slane %v1640, %v1653
        %v1655 = vcombine.low %v1623, %v1638
        %v1656 = vcombine.high %v1623, %v1638
        %v1658 = vunpack.c.l.s4 1934713408
        %v1659 = vunpack.c.0.s8 %v1658
        %v1660 = vlaneseq
        %v1661 = vshrl.u32 %v1660, 7
        %v1662 = vsub.s32 %v1659, %v1661
        %v1663 = vrot.slane %v1655, %v1662
        %v1665 = vunpack.c.l.s4 1934713408
        %v1666 = vunpack.c.0.s8 %v1665
        %v1667 = vlaneseq
        %v1668 = vshrl.u32 %v1667, 7
        %v1669 = vsub.s32 %v1666, %v1668
        %v1670 = vrot.slane %v1656, %v1669
        %v1671 = vcombine.high %v1647, 0.0
        %v1672 = vcombine.high %v1654, 0.0
        %v1673 = vcombine.high %v1663, 0.0
        %v1674 = vcombine.high %v1670, 0.0
        %v1675 = vcombine.high %v1374, 0.0
        %v1677 = vunpack.c.l.s4 1983009808
        %v1678 = vunpack.c.0.s8 %v1677
        %v1679 = vlaneseq
        %v1680 = vshrl.u32 %v1679, 7
        %v1681 = vsub.s32 %v1678, %v1680
        %v1682 = vrot.slane %v1374, %v1681
        %v1684 = vunpack.c.l.s4 1983009808
        %v1685 = vunpack.c.0.s8 %v1684
        %v1686 = vlaneseq
        %v1687 = vshrl.u32 %v1686, 7
        %v1688 = vsub.s32 %v1685, %v1687
        %v1689 = vrot.slane %v1675, %v1688
        %v1690 = vcombine.high %v1606, 0.0
        %v1692 = vunpack.c.l.s4 1983009808
        %v1693 = vunpack.c.0.s8 %v1692
        %v1694 = vlaneseq
        %v1695 = vshrl.u32 %v1694, 7
        %v1696 = vsub.s32 %v1693, %v1695
        %v1697 = vrot.slane %v1606, %v1696
        %v1699 = vunpack.c.l.s4 1983009808
        %v1700 = vunpack.c.0.s8 %v1699
        %v1701 = vlaneseq
        %v1702 = vshrl.u32 %v1701, 7
        %v1703 = vsub.s32 %v1700, %v1702
        %v1704 = vrot.slane %v1690, %v1703
        %v1705 = vcombine.low %v1682, %v1697
        %v1706 = vcombine.high %v1682, %v1697
        %v1708 = vunpack.c.l.s4 1934713408
        %v1709 = vunpack.c.0.s8 %v1708
        %v1710 = vlaneseq
        %v1711 = vshrl.u32 %v1710, 7
        %v1712 = vsub.s32 %v1709, %v1711
        %v1713 = vrot.slane %v1705, %v1712
        %v1715 = vunpack.c.l.s4 1934713408
        %v1716 = vunpack.c.0.s8 %v1715
        %v1717 = vlaneseq
        %v1718 = vshrl.u32 %v1717, 7
        %v1719 = vsub.s32 %v1716, %v1718
        %v1720 = vrot.slane %v1706, %v1719
        %v1721 = vcombine.low %v1689, %v1704
        %v1722 = vcombine.high %v1689, %v1704
        %v1724 = vunpack.c.l.s4 1934713408
        %v1725 = vunpack.c.0.s8 %v1724
        %v1726 = vlaneseq
        %v1727 = vshrl.u32 %v1726, 7
        %v1728 = vsub.s32 %v1725, %v1727
        %v1729 = vrot.slane %v1721, %v1728
        %v1731 = vunpack.c.l.s4 1934713408
        %v1732 = vunpack.c.0.s8 %v1731
        %v1733 = vlaneseq
        %v1734 = vshrl.u32 %v1733, 7
        %v1735 = vsub.s32 %v1732, %v1734
        %v1736 = vrot.slane %v1722, %v1735
        %v1737 = vcombine.high %v1713, 0.0
        %v1738 = vcombine.high %v1720, 0.0
        %v1739 = vcombine.high %v1729, 0.0
        %v1740 = vcombine.high %v1736, 0.0
        %v1741 = vcombine.low %v1647, %v1654
        %v1743 = vunpack.c.l.s4 1983009808
        %v1744 = vunpack.c.0.s8 %v1743
        %v1745 = vlaneseq
        %v1746 = vshrl.u32 %v1745, 7
        %v1747 = vsub.s32 %v1744, %v1746
        %v1748 = vrot.slane %v1741, %v1747
        %v1749 = vcombine.low %v1671, %v1672
        %v1751 = vunpack.c.l.s4 1983009808
        %v1752 = vunpack.c.0.s8 %v1751
        %v1753 = vlaneseq
        %v1754 = vshrl.u32 %v1753, 7
        %v1755 = vsub.s32 %v1752, %v1754
        %v1756 = vrot.slane %v1749, %v1755
        %v1757 = vcombine.low %v1663, %v1670
        %v1759 = vunpack.c.l.s4 1983009808
        %v1760 = vunpack.c.0.s8 %v1759
        %v1761 = vlaneseq
        %v1762 = vshrl.u32 %v1761, 7
        %v1763 = vsub.s32 %v1760, %v1762
        %v1764 = vrot.slane %v1757, %v1763
        %v1765 = vcombine.low %v1673, %v1674
        %v1767 = vunpack.c.l.s4 1983009808
        %v1768 = vunpack.c.0.s8 %v1767
        %v1769 = vlaneseq
        %v1770 = vshrl.u32 %v1769, 7
        %v1771 = vsub.s32 %v1768, %v1770
        %v1772 = vrot.slane %v1765, %v1771
        %v1773 = vcombine.low %v1748, %v1756
        %v1775 = vunpack.c.l.s4 1934713408
        %v1776 = vunpack.c.0.s8 %v1775
        %v1777 = vlaneseq
        %v1778 = vshrl.u32 %v1777, 7
        %v1779 = vsub.s32 %v1776, %v1778
        %v1780 = vrot.slane %v1773, %v1779
        %v1781 = vcombine.low %v1764, %v1772
        %v1783 = vunpack.c.l.s4 1934713408
        %v1784 = vunpack.c.0.s8 %v1783
        %v1785 = vlaneseq
        %v1786 = vshrl.u32 %v1785, 7
        %v1787 = vsub.s32 %v1784, %v1786
        %v1788 = vrot.slane %v1781, %v1787
        %v1789 = vcombine.low %v1780, %v1788
        %v1790 = vcombine.high %v1780, %v1788
        %v1791 = vcombine.low %v1713, %v1720
        %v1793 = vunpack.c.l.s4 1983009808
        %v1794 = vunpack.c.0.s8 %v1793
        %v1795 = vlaneseq
        %v1796 = vshrl.u32 %v1795, 7
        %v1797 = vsub.s32 %v1794, %v1796
        %v1798 = vrot.slane %v1791, %v1797
        %v1799 = vcombine.low %v1737, %v1738
        %v1801 = vunpack.c.l.s4 1983009808
        %v1802 = vunpack.c.0.s8 %v1801
        %v1803 = vlaneseq
        %v1804 = vshrl.u32 %v1803, 7
        %v1805 = vsub.s32 %v1802, %v1804
        %v1806 = vrot.slane %v1799, %v1805
        %v1807 = vcombine.low %v1729, %v1736
        %v1809 = vunpack.c.l.s4 1983009808
        %v1810 = vunpack.c.0.s8 %v1809
        %v1811 = vlaneseq
        %v1812 = vshrl.u32 %v1811, 7
        %v1813 = vsub.s32 %v1810, %v1812
        %v1814 = vrot.slane %v1807, %v1813
        %v1815 = vcombine.low %v1739, %v1740
        %v1817 = vunpack.c.l.s4 1983009808
        %v1818 = vunpack.c.0.s8 %v1817
        %v1819 = vlaneseq
        %v1820 = vshrl.u32 %v1819, 7
        %v1821 = vsub.s32 %v1818, %v1820
        %v1822 = vrot.slane %v1815, %v1821
        %v1823 = vcombine.low %v1798, %v1806
        %v1825 = vunpack.c.l.s4 1934713408
        %v1826 = vunpack.c.0.s8 %v1825
        %v1827 = vlaneseq
        %v1828 = vshrl.u32 %v1827, 7
        %v1829 = vsub.s32 %v1826, %v1828
        %v1830 = vrot.slane %v1823, %v1829
        %v1831 = vcombine.low %v1814, %v1822
        %v1833 = vunpack.c.l.s4 1934713408
        %v1834 = vunpack.c.0.s8 %v1833
        %v1835 = vlaneseq
        %v1836 = vshrl.u32 %v1835, 7
        %v1837 = vsub.s32 %v1834, %v1836
        %v1838 = vrot.slane %v1831, %v1837
        %v1839 = vcombine.low %v1830, %v1838
        %v1840 = vcombine.high %v1830, %v1838
        %v1841 = vpack.c.bf16 %v1839, %v1789
        %v1842 = vpack.c.bf16 %v1840, %v1790
        %1845 = vrot.lane.b32.xlu0 %v1483, 64
        %v1846 = vpop.permute.xlu0 %1845
        %1847 = vrot.lane.b32.xlu0 %v1486, 64
        %v1848 = vpop.permute.xlu0 %1847
        %v1851 = vcombine.high %v1483, 0.0
        %v1853 = vunpack.c.l.s4 1983009808
        %v1854 = vunpack.c.0.s8 %v1853
        %v1855 = vlaneseq
        %v1856 = vshrl.u32 %v1855, 7
        %v1857 = vsub.s32 %v1854, %v1856
        %v1858 = vrot.slane %v1483, %v1857
        %v1860 = vunpack.c.l.s4 1983009808
        %v1861 = vunpack.c.0.s8 %v1860
        %v1862 = vlaneseq
        %v1863 = vshrl.u32 %v1862, 7
        %v1864 = vsub.s32 %v1861, %v1863
        %v1865 = vrot.slane %v1851, %v1864
        %v1866 = vcombine.high %v1846, 0.0
        %v1868 = vunpack.c.l.s4 1983009808
        %v1869 = vunpack.c.0.s8 %v1868
        %v1870 = vlaneseq
        %v1871 = vshrl.u32 %v1870, 7
        %v1872 = vsub.s32 %v1869, %v1871
        %v1873 = vrot.slane %v1846, %v1872
        %v1875 = vunpack.c.l.s4 1983009808
        %v1876 = vunpack.c.0.s8 %v1875
        %v1877 = vlaneseq
        %v1878 = vshrl.u32 %v1877, 7
        %v1879 = vsub.s32 %v1876, %v1878
        %v1880 = vrot.slane %v1866, %v1879
        %v1881 = vcombine.low %v1858, %v1873
        %v1882 = vcombine.high %v1858, %v1873
        %v1884 = vunpack.c.l.s4 1934713408
        %v1885 = vunpack.c.0.s8 %v1884
        %v1886 = vlaneseq
        %v1887 = vshrl.u32 %v1886, 7
        %v1888 = vsub.s32 %v1885, %v1887
        %v1889 = vrot.slane %v1881, %v1888
        %v1891 = vunpack.c.l.s4 1934713408
        %v1892 = vunpack.c.0.s8 %v1891
        %v1893 = vlaneseq
        %v1894 = vshrl.u32 %v1893, 7
        %v1895 = vsub.s32 %v1892, %v1894
        %v1896 = vrot.slane %v1882, %v1895
        %v1897 = vcombine.low %v1865, %v1880
        %v1898 = vcombine.high %v1865, %v1880
        %v1900 = vunpack.c.l.s4 1934713408
        %v1901 = vunpack.c.0.s8 %v1900
        %v1902 = vlaneseq
        %v1903 = vshrl.u32 %v1902, 7
        %v1904 = vsub.s32 %v1901, %v1903
        %v1905 = vrot.slane %v1897, %v1904
        %v1907 = vunpack.c.l.s4 1934713408
        %v1908 = vunpack.c.0.s8 %v1907
        %v1909 = vlaneseq
        %v1910 = vshrl.u32 %v1909, 7
        %v1911 = vsub.s32 %v1908, %v1910
        %v1912 = vrot.slane %v1898, %v1911
        %v1913 = vcombine.high %v1889, 0.0
        %v1914 = vcombine.high %v1896, 0.0
        %v1915 = vcombine.high %v1905, 0.0
        %v1916 = vcombine.high %v1912, 0.0
        %v1917 = vcombine.high %v1486, 0.0
        %v1919 = vunpack.c.l.s4 1983009808
        %v1920 = vunpack.c.0.s8 %v1919
        %v1921 = vlaneseq
        %v1922 = vshrl.u32 %v1921, 7
        %v1923 = vsub.s32 %v1920, %v1922
        %v1924 = vrot.slane %v1486, %v1923
        %v1926 = vunpack.c.l.s4 1983009808
        %v1927 = vunpack.c.0.s8 %v1926
        %v1928 = vlaneseq
        %v1929 = vshrl.u32 %v1928, 7
        %v1930 = vsub.s32 %v1927, %v1929
        %v1931 = vrot.slane %v1917, %v1930
        %v1932 = vcombine.high %v1848, 0.0
        %v1934 = vunpack.c.l.s4 1983009808
        %v1935 = vunpack.c.0.s8 %v1934
        %v1936 = vlaneseq
        %v1937 = vshrl.u32 %v1936, 7
        %v1938 = vsub.s32 %v1935, %v1937
        %v1939 = vrot.slane %v1848, %v1938
        %v1941 = vunpack.c.l.s4 1983009808
        %v1942 = vunpack.c.0.s8 %v1941
        %v1943 = vlaneseq
        %v1944 = vshrl.u32 %v1943, 7
        %v1945 = vsub.s32 %v1942, %v1944
        %v1946 = vrot.slane %v1932, %v1945
        %v1947 = vcombine.low %v1924, %v1939
        %v1948 = vcombine.high %v1924, %v1939
        %v1950 = vunpack.c.l.s4 1934713408
        %v1951 = vunpack.c.0.s8 %v1950
        %v1952 = vlaneseq
        %v1953 = vshrl.u32 %v1952, 7
        %v1954 = vsub.s32 %v1951, %v1953
        %v1955 = vrot.slane %v1947, %v1954
        %v1957 = vunpack.c.l.s4 1934713408
        %v1958 = vunpack.c.0.s8 %v1957
        %v1959 = vlaneseq
        %v1960 = vshrl.u32 %v1959, 7
        %v1961 = vsub.s32 %v1958, %v1960
        %v1962 = vrot.slane %v1948, %v1961
        %v1963 = vcombine.low %v1931, %v1946
        %v1964 = vcombine.high %v1931, %v1946
        %v1966 = vunpack.c.l.s4 1934713408
        %v1967 = vunpack.c.0.s8 %v1966
        %v1968 = vlaneseq
        %v1969 = vshrl.u32 %v1968, 7
        %v1970 = vsub.s32 %v1967, %v1969
        %v1971 = vrot.slane %v1963, %v1970
        %v1973 = vunpack.c.l.s4 1934713408
        %v1974 = vunpack.c.0.s8 %v1973
        %v1975 = vlaneseq
        %v1976 = vshrl.u32 %v1975, 7
        %v1977 = vsub.s32 %v1974, %v1976
        %v1978 = vrot.slane %v1964, %v1977
        %v1979 = vcombine.high %v1955, 0.0
        %v1980 = vcombine.high %v1962, 0.0
        %v1981 = vcombine.high %v1971, 0.0
        %v1982 = vcombine.high %v1978, 0.0
        %v1983 = vcombine.low %v1889, %v1896
        %v1985 = vunpack.c.l.s4 1983009808
        %v1986 = vunpack.c.0.s8 %v1985
        %v1987 = vlaneseq
        %v1988 = vshrl.u32 %v1987, 7
        %v1989 = vsub.s32 %v1986, %v1988
        %v1990 = vrot.slane %v1983, %v1989
        %v1991 = vcombine.low %v1913, %v1914
        %v1993 = vunpack.c.l.s4 1983009808
        %v1994 = vunpack.c.0.s8 %v1993
        %v1995 = vlaneseq
        %v1996 = vshrl.u32 %v1995, 7
        %v1997 = vsub.s32 %v1994, %v1996
        %v1998 = vrot.slane %v1991, %v1997
        %v1999 = vcombine.low %v1905, %v1912
        %v2001 = vunpack.c.l.s4 1983009808
        %v2002 = vunpack.c.0.s8 %v2001
        %v2003 = vlaneseq
        %v2004 = vshrl.u32 %v2003, 7
        %v2005 = vsub.s32 %v2002, %v2004
        %v2006 = vrot.slane %v1999, %v2005
        %v2007 = vcombine.low %v1915, %v1916
        %v2009 = vunpack.c.l.s4 1983009808
        %v2010 = vunpack.c.0.s8 %v2009
        %v2011 = vlaneseq
        %v2012 = vshrl.u32 %v2011, 7
        %v2013 = vsub.s32 %v2010, %v2012
        %v2014 = vrot.slane %v2007, %v2013
        %v2015 = vcombine.low %v1990, %v1998
        %v2017 = vunpack.c.l.s4 1934713408
        %v2018 = vunpack.c.0.s8 %v2017
        %v2019 = vlaneseq
        %v2020 = vshrl.u32 %v2019, 7
        %v2021 = vsub.s32 %v2018, %v2020
        %v2022 = vrot.slane %v2015, %v2021
        %v2023 = vcombine.low %v2006, %v2014
        %v2025 = vunpack.c.l.s4 1934713408
        %v2026 = vunpack.c.0.s8 %v2025
        %v2027 = vlaneseq
        %v2028 = vshrl.u32 %v2027, 7
        %v2029 = vsub.s32 %v2026, %v2028
        %v2030 = vrot.slane %v2023, %v2029
        %v2031 = vcombine.low %v2022, %v2030
        %v2032 = vcombine.high %v2022, %v2030
        %v2033 = vcombine.low %v1955, %v1962
        %v2035 = vunpack.c.l.s4 1983009808
        %v2036 = vunpack.c.0.s8 %v2035
        %v2037 = vlaneseq
        %v2038 = vshrl.u32 %v2037, 7
        %v2039 = vsub.s32 %v2036, %v2038
        %v2040 = vrot.slane %v2033, %v2039
        %v2041 = vcombine.low %v1979, %v1980
        %v2043 = vunpack.c.l.s4 1983009808
        %v2044 = vunpack.c.0.s8 %v2043
        %v2045 = vlaneseq
        %v2046 = vshrl.u32 %v2045, 7
        %v2047 = vsub.s32 %v2044, %v2046
        %v2048 = vrot.slane %v2041, %v2047
        %v2049 = vcombine.low %v1971, %v1978
        %v2051 = vunpack.c.l.s4 1983009808
        %v2052 = vunpack.c.0.s8 %v2051
        %v2053 = vlaneseq
        %v2054 = vshrl.u32 %v2053, 7
        %v2055 = vsub.s32 %v2052, %v2054
        %v2056 = vrot.slane %v2049, %v2055
        %v2057 = vcombine.low %v1981, %v1982
        %v2059 = vunpack.c.l.s4 1983009808
        %v2060 = vunpack.c.0.s8 %v2059
        %v2061 = vlaneseq
        %v2062 = vshrl.u32 %v2061, 7
        %v2063 = vsub.s32 %v2060, %v2062
        %v2064 = vrot.slane %v2057, %v2063
        %v2065 = vcombine.low %v2040, %v2048
        %v2067 = vunpack.c.l.s4 1934713408
        %v2068 = vunpack.c.0.s8 %v2067
        %v2069 = vlaneseq
        %v2070 = vshrl.u32 %v2069, 7
        %v2071 = vsub.s32 %v2068, %v2070
        %v2072 = vrot.slane %v2065, %v2071
        %v2073 = vcombine.low %v2056, %v2064
        %v2075 = vunpack.c.l.s4 1934713408
        %v2076 = vunpack.c.0.s8 %v2075
        %v2077 = vlaneseq
        %v2078 = vshrl.u32 %v2077, 7
        %v2079 = vsub.s32 %v2076, %v2078
        %v2080 = vrot.slane %v2073, %v2079
        %v2081 = vcombine.low %v2072, %v2080
        %v2082 = vcombine.high %v2072, %v2080
        %v2083 = vpack.c.bf16 %v2081, %v2031
        %v2084 = vpack.c.bf16 %v2082, %v2032
        %2087 = vrot.lane.b32.xlu0 %v1595, 64
        %v2088 = vpop.permute.xlu0 %2087
        %2089 = vrot.lane.b32.xlu0 %v1598, 64
        %v2090 = vpop.permute.xlu0 %2089
        %v2093 = vcombine.high %v1595, 0.0
        %v2095 = vunpack.c.l.s4 1983009808
        %v2096 = vunpack.c.0.s8 %v2095
        %v2097 = vlaneseq
        %v2098 = vshrl.u32 %v2097, 7
        %v2099 = vsub.s32 %v2096, %v2098
        %v2100 = vrot.slane %v1595, %v2099
        %v2102 = vunpack.c.l.s4 1983009808
        %v2103 = vunpack.c.0.s8 %v2102
        %v2104 = vlaneseq
        %v2105 = vshrl.u32 %v2104, 7
        %v2106 = vsub.s32 %v2103, %v2105
        %v2107 = vrot.slane %v2093, %v2106
        %v2108 = vcombine.high %v2088, 0.0
        %v2110 = vunpack.c.l.s4 1983009808
        %v2111 = vunpack.c.0.s8 %v2110
        %v2112 = vlaneseq
        %v2113 = vshrl.u32 %v2112, 7
        %v2114 = vsub.s32 %v2111, %v2113
        %v2115 = vrot.slane %v2088, %v2114
        %v2117 = vunpack.c.l.s4 1983009808
        %v2118 = vunpack.c.0.s8 %v2117
        %v2119 = vlaneseq
        %v2120 = vshrl.u32 %v2119, 7
        %v2121 = vsub.s32 %v2118, %v2120
        %v2122 = vrot.slane %v2108, %v2121
        %v2123 = vcombine.low %v2100, %v2115
        %v2124 = vcombine.high %v2100, %v2115
        %v2126 = vunpack.c.l.s4 1934713408
        %v2127 = vunpack.c.0.s8 %v2126
        %v2128 = vlaneseq
        %v2129 = vshrl.u32 %v2128, 7
        %v2130 = vsub.s32 %v2127, %v2129
        %v2131 = vrot.slane %v2123, %v2130
        %v2133 = vunpack.c.l.s4 1934713408
        %v2134 = vunpack.c.0.s8 %v2133
        %v2135 = vlaneseq
        %v2136 = vshrl.u32 %v2135, 7
        %v2137 = vsub.s32 %v2134, %v2136
        %v2138 = vrot.slane %v2124, %v2137
        %v2139 = vcombine.low %v2107, %v2122
        %v2140 = vcombine.high %v2107, %v2122
        %v2142 = vunpack.c.l.s4 1934713408
        %v2143 = vunpack.c.0.s8 %v2142
        %v2144 = vlaneseq
        %v2145 = vshrl.u32 %v2144, 7
        %v2146 = vsub.s32 %v2143, %v2145
        %v2147 = vrot.slane %v2139, %v2146
        %v2149 = vunpack.c.l.s4 1934713408
        %v2150 = vunpack.c.0.s8 %v2149
        %v2151 = vlaneseq
        %v2152 = vshrl.u32 %v2151, 7
        %v2153 = vsub.s32 %v2150, %v2152
        %v2154 = vrot.slane %v2140, %v2153
        %v2155 = vcombine.high %v2131, 0.0
        %v2156 = vcombine.high %v2138, 0.0
        %v2157 = vcombine.high %v2147, 0.0
        %v2158 = vcombine.high %v2154, 0.0
        %v2159 = vcombine.high %v1598, 0.0
        %v2161 = vunpack.c.l.s4 1983009808
        %v2162 = vunpack.c.0.s8 %v2161
        %v2163 = vlaneseq
        %v2164 = vshrl.u32 %v2163, 7
        %v2165 = vsub.s32 %v2162, %v2164
        %v2166 = vrot.slane %v1598, %v2165
        %v2168 = vunpack.c.l.s4 1983009808
        %v2169 = vunpack.c.0.s8 %v2168
        %v2170 = vlaneseq
        %v2171 = vshrl.u32 %v2170, 7
        %v2172 = vsub.s32 %v2169, %v2171
        %v2173 = vrot.slane %v2159, %v2172
        %v2174 = vcombine.high %v2090, 0.0
        %v2176 = vunpack.c.l.s4 1983009808
        %v2177 = vunpack.c.0.s8 %v2176
        %v2178 = vlaneseq
        %v2179 = vshrl.u32 %v2178, 7
        %v2180 = vsub.s32 %v2177, %v2179
        %v2181 = vrot.slane %v2090, %v2180
        %v2183 = vunpack.c.l.s4 1983009808
        %v2184 = vunpack.c.0.s8 %v2183
        %v2185 = vlaneseq
        %v2186 = vshrl.u32 %v2185, 7
        %v2187 = vsub.s32 %v2184, %v2186
        %v2188 = vrot.slane %v2174, %v2187
        %v2189 = vcombine.low %v2166, %v2181
        %v2190 = vcombine.high %v2166, %v2181
        %v2192 = vunpack.c.l.s4 1934713408
        %v2193 = vunpack.c.0.s8 %v2192
        %v2194 = vlaneseq
        %v2195 = vshrl.u32 %v2194, 7
        %v2196 = vsub.s32 %v2193, %v2195
        %v2197 = vrot.slane %v2189, %v2196
        %v2199 = vunpack.c.l.s4 1934713408
        %v2200 = vunpack.c.0.s8 %v2199
        %v2201 = vlaneseq
        %v2202 = vshrl.u32 %v2201, 7
        %v2203 = vsub.s32 %v2200, %v2202
        %v2204 = vrot.slane %v2190, %v2203
        %v2205 = vcombine.low %v2173, %v2188
        %v2206 = vcombine.high %v2173, %v2188
        %v2208 = vunpack.c.l.s4 1934713408
        %v2209 = vunpack.c.0.s8 %v2208
        %v2210 = vlaneseq
        %v2211 = vshrl.u32 %v2210, 7
        %v2212 = vsub.s32 %v2209, %v2211
        %v2213 = vrot.slane %v2205, %v2212
        %v2215 = vunpack.c.l.s4 1934713408
        %v2216 = vunpack.c.0.s8 %v2215
        %v2217 = vlaneseq
        %v2218 = vshrl.u32 %v2217, 7
        %v2219 = vsub.s32 %v2216, %v2218
        %v2220 = vrot.slane %v2206, %v2219
        %v2221 = vcombine.high %v2197, 0.0
        %v2222 = vcombine.high %v2204, 0.0
        %v2223 = vcombine.high %v2213, 0.0
        %v2224 = vcombine.high %v2220, 0.0
        %v2225 = vcombine.low %v2131, %v2138
        %v2227 = vunpack.c.l.s4 1983009808
        %v2228 = vunpack.c.0.s8 %v2227
        %v2229 = vlaneseq
        %v2230 = vshrl.u32 %v2229, 7
        %v2231 = vsub.s32 %v2228, %v2230
        %v2232 = vrot.slane %v2225, %v2231
        %v2233 = vcombine.low %v2155, %v2156
        %v2235 = vunpack.c.l.s4 1983009808
        %v2236 = vunpack.c.0.s8 %v2235
        %v2237 = vlaneseq
        %v2238 = vshrl.u32 %v2237, 7
        %v2239 = vsub.s32 %v2236, %v2238
        %v2240 = vrot.slane %v2233, %v2239
        %v2241 = vcombine.low %v2147, %v2154
        %v2243 = vunpack.c.l.s4 1983009808
        %v2244 = vunpack.c.0.s8 %v2243
        %v2245 = vlaneseq
        %v2246 = vshrl.u32 %v2245, 7
        %v2247 = vsub.s32 %v2244, %v2246
        %v2248 = vrot.slane %v2241, %v2247
        %v2249 = vcombine.low %v2157, %v2158
        %v2251 = vunpack.c.l.s4 1983009808
        %v2252 = vunpack.c.0.s8 %v2251
        %v2253 = vlaneseq
        %v2254 = vshrl.u32 %v2253, 7
        %v2255 = vsub.s32 %v2252, %v2254
        %v2256 = vrot.slane %v2249, %v2255
        %v2257 = vcombine.low %v2232, %v2240
        %v2259 = vunpack.c.l.s4 1934713408
        %v2260 = vunpack.c.0.s8 %v2259
        %v2261 = vlaneseq
        %v2262 = vshrl.u32 %v2261, 7
        %v2263 = vsub.s32 %v2260, %v2262
        %v2264 = vrot.slane %v2257, %v2263
        %v2265 = vcombine.low %v2248, %v2256
        %v2267 = vunpack.c.l.s4 1934713408
        %v2268 = vunpack.c.0.s8 %v2267
        %v2269 = vlaneseq
        %v2270 = vshrl.u32 %v2269, 7
        %v2271 = vsub.s32 %v2268, %v2270
        %v2272 = vrot.slane %v2265, %v2271
        %v2273 = vcombine.low %v2264, %v2272
        %v2274 = vcombine.high %v2264, %v2272
        %v2275 = vcombine.low %v2197, %v2204
        %v2277 = vunpack.c.l.s4 1983009808
        %v2278 = vunpack.c.0.s8 %v2277
        %v2279 = vlaneseq
        %v2280 = vshrl.u32 %v2279, 7
        %v2281 = vsub.s32 %v2278, %v2280
        %v2282 = vrot.slane %v2275, %v2281
        %v2283 = vcombine.low %v2221, %v2222
        %v2285 = vunpack.c.l.s4 1983009808
        %v2286 = vunpack.c.0.s8 %v2285
        %v2287 = vlaneseq
        %v2288 = vshrl.u32 %v2287, 7
        %v2289 = vsub.s32 %v2286, %v2288
        %v2290 = vrot.slane %v2283, %v2289
        %v2291 = vcombine.low %v2213, %v2220
        %v2293 = vunpack.c.l.s4 1983009808
        %v2294 = vunpack.c.0.s8 %v2293
        %v2295 = vlaneseq
        %v2296 = vshrl.u32 %v2295, 7
        %v2297 = vsub.s32 %v2294, %v2296
        %v2298 = vrot.slane %v2291, %v2297
        %v2299 = vcombine.low %v2223, %v2224
        %v2301 = vunpack.c.l.s4 1983009808
        %v2302 = vunpack.c.0.s8 %v2301
        %v2303 = vlaneseq
        %v2304 = vshrl.u32 %v2303, 7
        %v2305 = vsub.s32 %v2302, %v2304
        %v2306 = vrot.slane %v2299, %v2305
        %v2307 = vcombine.low %v2282, %v2290
        %v2309 = vunpack.c.l.s4 1934713408
        %v2310 = vunpack.c.0.s8 %v2309
        %v2311 = vlaneseq
        %v2312 = vshrl.u32 %v2311, 7
        %v2313 = vsub.s32 %v2310, %v2312
        %v2314 = vrot.slane %v2307, %v2313
        %v2315 = vcombine.low %v2298, %v2306
        %v2317 = vunpack.c.l.s4 1934713408
        %v2318 = vunpack.c.0.s8 %v2317
        %v2319 = vlaneseq
        %v2320 = vshrl.u32 %v2319, 7
        %v2321 = vsub.s32 %v2318, %v2320
        %v2322 = vrot.slane %v2315, %v2321
        %v2323 = vcombine.low %v2314, %v2322
        %v2324 = vcombine.high %v2314, %v2322
        %v2325 = vpack.c.bf16 %v2323, %v2273
        %v2326 = vpack.c.bf16 %v2324, %v2274
        %vm2327 = vcmask 523264
        %v2329 = vsel %vm2327, %v1841, 0
        %v2332 = vsel %vm2327, %v2083, 0
        %2334 = vmatprep.subr.bf16.mxu0 0
        %2335 = vmatpush1.bf16.xpose.msra.mxu0 0
        %2336 = vmatprep.subr.bf16.mxu0 0
        %2337 = vmatpush1.bf16.xpose.msra.mxu0 0
        %2338 = vmatprep.subr.bf16.mxu0 0
        %2339 = vmatpush1.bf16.xpose.msra.mxu0 0
        %2340 = vmatprep.subr.bf16.mxu0 0
        %2341 = vmatpush1.bf16.xpose.msra.mxu0 0
        %2342 = vmatprep.subr.bf16.mxu0 0
        %2343 = vmatpush1.bf16.xpose.msra.mxu0 0
        %2344 = vmatprep.subr.bf16.mxu0 0
        %2345 = vmatpush1.bf16.xpose.msra.mxu0 0
        %2346 = vmatprep.subr.bf16.mxu0 0
        %2347 = vmatpush1.bf16.xpose.msra.mxu0 0
        %2348 = vmatprep.subr.bf16.mxu0 0
        %2349 = vmatpush1.bf16.xpose.msra.mxu0 %v2332
        %2350 = vmatprep.subr.bf16.mxu0 0
        %2351 = vmatpush2.bf16.xpose.msra.mxu0 0
        %2352 = vmatprep.subr.bf16.mxu0 0
        %2353 = vmatpush2.bf16.xpose.msra.mxu0 0
        %2354 = vmatprep.subr.bf16.mxu0 0
        %2355 = vmatpush2.bf16.xpose.msra.mxu0 0
        %2356 = vmatprep.subr.bf16.mxu0 0
        %2357 = vmatpush2.bf16.xpose.msra.mxu0 0
        %2358 = vmatprep.subr.bf16.mxu0 0
        %2359 = vmatpush2.bf16.xpose.msra.mxu0 0
        %2360 = vmatprep.subr.bf16.mxu0 0
        %2361 = vmatpush2.bf16.xpose.msra.mxu0 0
        %2362 = vmatprep.subr.bf16.mxu0 0
        %2363 = vmatpush2.bf16.xpose.msra.mxu0 0
        %2364 = vmatprep.subr.bf16.mxu0 0
        %2365 = vmatpush2.bf16.xpose.msra.mxu0 0
        %2366 = vmatprep.mubr.bf16.mxu0 0
        %2367 = vmatmul.mubr.bf16.gmra.mxu0 %v2329
        %v2368 = vpop.f32.mrf.mxu0
        %v2369 = vadd.f32 0.0, %v2368
        %v2370 = vpop.f32.mrf.mxu0
        %v2371 = vpop.f32.mrf.mxu0
        %v2372 = vadd.f32 0.0, %v2371
        %v2373 = vpop.f32.mrf.mxu0
        %2374 = vdwg.mxu0
        %v2376 = vsel %vm2327, %v1842, 0
        %v2379 = vsel %vm2327, %v2084, 0
        %2381 = vmatprep.subr.bf16.mxu0 0
        %2382 = vmatpush1.bf16.xpose.msra.mxu0 0
        %2383 = vmatprep.subr.bf16.mxu0 0
        %2384 = vmatpush1.bf16.xpose.msra.mxu0 0
        %2385 = vmatprep.subr.bf16.mxu0 0
        %2386 = vmatpush1.bf16.xpose.msra.mxu0 0
        %2387 = vmatprep.subr.bf16.mxu0 0
        %2388 = vmatpush1.bf16.xpose.msra.mxu0 0
        %2389 = vmatprep.subr.bf16.mxu0 0
        %2390 = vmatpush1.bf16.xpose.msra.mxu0 0
        %2391 = vmatprep.subr.bf16.mxu0 0
        %2392 = vmatpush1.bf16.xpose.msra.mxu0 0
        %2393 = vmatprep.subr.bf16.mxu0 0
        %2394 = vmatpush1.bf16.xpose.msra.mxu0 0
        %2395 = vmatprep.subr.bf16.mxu0 0
        %2396 = vmatpush1.bf16.xpose.msra.mxu0 %v2379
        %2397 = vmatprep.subr.bf16.mxu0 0
        %2398 = vmatpush2.bf16.xpose.msra.mxu0 0
        %2399 = vmatprep.subr.bf16.mxu0 0
        %2400 = vmatpush2.bf16.xpose.msra.mxu0 0
        %2401 = vmatprep.subr.bf16.mxu0 0
        %2402 = vmatpush2.bf16.xpose.msra.mxu0 0
        %2403 = vmatprep.subr.bf16.mxu0 0
        %2404 = vmatpush2.bf16.xpose.msra.mxu0 0
        %2405 = vmatprep.subr.bf16.mxu0 0
        %2406 = vmatpush2.bf16.xpose.msra.mxu0 0
        %2407 = vmatprep.subr.bf16.mxu0 0
        %2408 = vmatpush2.bf16.xpose.msra.mxu0 0
        %2409 = vmatprep.subr.bf16.mxu0 0
        %2410 = vmatpush2.bf16.xpose.msra.mxu0 0
        %2411 = vmatprep.subr.bf16.mxu0 0
        %2412 = vmatpush2.bf16.xpose.msra.mxu0 0
        %2413 = vmatprep.mubr.bf16.mxu0 0
        %2414 = vmatmul.mubr.bf16.gmra.mxu0 %v2376
        %v2415 = vpop.f32.mrf.mxu0
        %v2416 = vadd.f32 0.0, %v2415
        %v2417 = vpop.f32.mrf.mxu0
        %v2418 = vpop.f32.mrf.mxu0
        %v2419 = vadd.f32 0.0, %v2418
        %v2420 = vpop.f32.mrf.mxu0
        %2421 = vdwg.mxu0
        %vm2422 = vcmask 130048
        %v2423 = vsel %vm2422, %v2369, -inf
        %2424 = vmax.xlane.f32.xlu0 %v2423
        %v2425 = vpop.xlane.xlu0 %2424
        %v2426 = vsel %vm2422, %v2372, -inf
        %2427 = vmax.xlane.f32.xlu0 %v2426
        %v2428 = vpop.xlane.xlu0 %2427
        %v2429 = vsel %vm2422, %v2416, -inf
        %2430 = vmax.xlane.f32.xlu0 %v2429
        %v2431 = vpop.xlane.xlu0 %2430
        %v2432 = vsel %vm2422, %v2419, -inf
        %2433 = vmax.xlane.f32.xlu0 %v2432
        %v2434 = vpop.xlane.xlu0 %2433
        %v2435 = vsub.f32 %v2369, %v2425
        %v2436 = vsub.f32 %v2372, %v2428
        %v2437 = vsub.f32 %v2416, %v2431
        %v2438 = vsub.f32 %v2419, %v2434
        %v2439 = vmul.f32 %v2435, 1.442695
        %v2440 = vpow.pop %v2439
        %v2441 = vmul.f32 %v2436, 1.442695
        %v2442 = vpow.pop %v2441
        %v2443 = vmul.f32 %v2437, 1.442695
        %v2444 = vpow.pop %v2443
        %v2445 = vmul.f32 %v2438, 1.442695
        %v2446 = vpow.pop %v2445
        %v2447 = vsel %vm2422, %v2440, 0.0
        %2448 = vadd.xlane.f32.xlu0 %v2447
        %v2449 = vpop.xlane.xlu0 %2448
        %v2450 = vsel %vm2422, %v2442, 0.0
        %2451 = vadd.xlane.f32.xlu0 %v2450
        %v2452 = vpop.xlane.xlu0 %2451
        %v2453 = vsel %vm2422, %v2444, 0.0
        %2454 = vadd.xlane.f32.xlu0 %v2453
        %v2455 = vpop.xlane.xlu0 %2454
        %v2456 = vsel %vm2422, %v2446, 0.0
        %2457 = vadd.xlane.f32.xlu0 %v2456
        %v2458 = vpop.xlane.xlu0 %2457
        %v2459 = vrcp.pop %v2449
        %v2460 = vrcp.pop %v2452
        %v2461 = vrcp.pop %v2455
        %v2462 = vrcp.pop %v2458
        %v2463 = vmul.f32 %v2440, %v2459
        %v2464 = vmul.f32 %v2442, %v2460
        %v2465 = vmul.f32 %v2444, %v2461
        %v2466 = vmul.f32 %v2446, %v2462
        %v2467 = vpack.c.bf16 %v2464, %v2463
        %v2468 = vpack.c.bf16 %v2466, %v2465
        %v2470 = vsel %vm2422, %v2467, 0
        %2472 = vmatprep.subr.bf16.mxu0 0
        %2473 = vmatpush1.bf16.msra.mxu0 0
        %2474 = vmatprep.subr.bf16.mxu0 0
        %2475 = vmatpush1.bf16.msra.mxu0 0
        %2476 = vmatprep.subr.bf16.mxu0 0
        %2477 = vmatpush1.bf16.msra.mxu0 0
        %2478 = vmatprep.subr.bf16.mxu0 0
        %2479 = vmatpush1.bf16.msra.mxu0 0
        %2480 = vmatprep.subr.bf16.mxu0 0
        %2481 = vmatpush1.bf16.msra.mxu0 0
        %2482 = vmatprep.subr.bf16.mxu0 0
        %2483 = vmatpush1.bf16.msra.mxu0 0
        %2484 = vmatprep.subr.bf16.mxu0 0
        %2485 = vmatpush1.bf16.msra.mxu0 0
        %2486 = vmatprep.subr.bf16.mxu0 0
        %2487 = vmatpush1.bf16.msra.mxu0 %v2325
        %2488 = vmatprep.subr.bf16.mxu0 0
        %2489 = vmatpush2.bf16.msra.mxu0 0
        %2490 = vmatprep.subr.bf16.mxu0 0
        %2491 = vmatpush2.bf16.msra.mxu0 0
        %2492 = vmatprep.subr.bf16.mxu0 0
        %2493 = vmatpush2.bf16.msra.mxu0 0
        %2494 = vmatprep.subr.bf16.mxu0 0
        %2495 = vmatpush2.bf16.msra.mxu0 0
        %2496 = vmatprep.subr.bf16.mxu0 0
        %2497 = vmatpush2.bf16.msra.mxu0 0
        %2498 = vmatprep.subr.bf16.mxu0 0
        %2499 = vmatpush2.bf16.msra.mxu0 0
        %2500 = vmatprep.subr.bf16.mxu0 0
        %2501 = vmatpush2.bf16.msra.mxu0 0
        %2502 = vmatprep.subr.bf16.mxu0 0
        %2503 = vmatpush2.bf16.msra.mxu0 0
        %2504 = vmatprep.mubr.bf16.mxu0 0
        %2505 = vmatmul.mubr.bf16.gmra.mxu0 %v2470
        %v2506 = vpop.f32.mrf.mxu0
        %v2507 = vadd.f32 0.0, %v2506
        %v2508 = vpop.f32.mrf.mxu0
        %v2509 = vpop.f32.mrf.mxu0
        %v2510 = vadd.f32 0.0, %v2509
        %v2511 = vpop.f32.mrf.mxu0
        %2512 = vdwg.mxu0
        %v2514 = vsel %vm2422, %v2468, 0
        %2516 = vmatprep.subr.bf16.mxu0 0
        %2517 = vmatpush1.bf16.msra.mxu0 0
        %2518 = vmatprep.subr.bf16.mxu0 0
        %2519 = vmatpush1.bf16.msra.mxu0 0
        %2520 = vmatprep.subr.bf16.mxu0 0
        %2521 = vmatpush1.bf16.msra.mxu0 0
        %2522 = vmatprep.subr.bf16.mxu0 0
        %2523 = vmatpush1.bf16.msra.mxu0 0
        %2524 = vmatprep.subr.bf16.mxu0 0
        %2525 = vmatpush1.bf16.msra.mxu0 0
        %2526 = vmatprep.subr.bf16.mxu0 0
        %2527 = vmatpush1.bf16.msra.mxu0 0
        %2528 = vmatprep.subr.bf16.mxu0 0
        %2529 = vmatpush1.bf16.msra.mxu0 0
        %2530 = vmatprep.subr.bf16.mxu0 0
        %2531 = vmatpush1.bf16.msra.mxu0 %v2326
        %2532 = vmatprep.subr.bf16.mxu0 0
        %2533 = vmatpush2.bf16.msra.mxu0 0
        %2534 = vmatprep.subr.bf16.mxu0 0
        %2535 = vmatpush2.bf16.msra.mxu0 0
        %2536 = vmatprep.subr.bf16.mxu0 0
        %2537 = vmatpush2.bf16.msra.mxu0 0
        %2538 = vmatprep.subr.bf16.mxu0 0
        %2539 = vmatpush2.bf16.msra.mxu0 0
        %2540 = vmatprep.subr.bf16.mxu0 0
        %2541 = vmatpush2.bf16.msra.mxu0 0
        %2542 = vmatprep.subr.bf16.mxu0 0
        %2543 = vmatpush2.bf16.msra.mxu0 0
        %2544 = vmatprep.subr.bf16.mxu0 0
        %2545 = vmatpush2.bf16.msra.mxu0 0
        %2546 = vmatprep.subr.bf16.mxu0 0
        %2547 = vmatpush2.bf16.msra.mxu0 0
        %2548 = vmatprep.mubr.bf16.mxu0 0
        %2549 = vmatmul.mubr.bf16.gmra.mxu0 %v2514
        %v2550 = vpop.f32.mrf.mxu0
        %v2551 = vadd.f32 0.0, %v2550
        %v2552 = vpop.f32.mrf.mxu0
        %v2553 = vpop.f32.mrf.mxu0
        %v2554 = vadd.f32 0.0, %v2553
        %v2555 = vpop.f32.mrf.mxu0
        %2556 = vdwg.mxu0
        %v2557 = vcombine.high %v2507, 0.0
        %v2559 = vunpack.c.l.s4 1983009808
        %v2560 = vunpack.c.0.s8 %v2559
        %v2561 = vlaneseq
        %v2562 = vshrl.u32 %v2561, 7
        %v2563 = vsub.s32 %v2560, %v2562
        %v2564 = vrot.slane %v2507, %v2563
        %v2566 = vunpack.c.l.s4 1983009808
        %v2567 = vunpack.c.0.s8 %v2566
        %v2568 = vlaneseq
        %v2569 = vshrl.u32 %v2568, 7
        %v2570 = vsub.s32 %v2567, %v2569
        %v2571 = vrot.slane %v2557, %v2570
        %v2572 = vcombine.high %v2551, 0.0
        %v2574 = vunpack.c.l.s4 1983009808
        %v2575 = vunpack.c.0.s8 %v2574
        %v2576 = vlaneseq
        %v2577 = vshrl.u32 %v2576, 7
        %v2578 = vsub.s32 %v2575, %v2577
        %v2579 = vrot.slane %v2551, %v2578
        %v2581 = vunpack.c.l.s4 1983009808
        %v2582 = vunpack.c.0.s8 %v2581
        %v2583 = vlaneseq
        %v2584 = vshrl.u32 %v2583, 7
        %v2585 = vsub.s32 %v2582, %v2584
        %v2586 = vrot.slane %v2572, %v2585
        %v2587 = vcombine.low %v2564, %v2579
        %v2588 = vcombine.high %v2564, %v2579
        %v2590 = vunpack.c.l.s4 1934713408
        %v2591 = vunpack.c.0.s8 %v2590
        %v2592 = vlaneseq
        %v2593 = vshrl.u32 %v2592, 7
        %v2594 = vsub.s32 %v2591, %v2593
        %v2595 = vrot.slane %v2587, %v2594
        %v2597 = vunpack.c.l.s4 1934713408
        %v2598 = vunpack.c.0.s8 %v2597
        %v2599 = vlaneseq
        %v2600 = vshrl.u32 %v2599, 7
        %v2601 = vsub.s32 %v2598, %v2600
        %v2602 = vrot.slane %v2588, %v2601
        %v2603 = vcombine.low %v2571, %v2586
        %v2604 = vcombine.high %v2571, %v2586
        %v2606 = vunpack.c.l.s4 1934713408
        %v2607 = vunpack.c.0.s8 %v2606
        %v2608 = vlaneseq
        %v2609 = vshrl.u32 %v2608, 7
        %v2610 = vsub.s32 %v2607, %v2609
        %v2611 = vrot.slane %v2603, %v2610
        %v2613 = vunpack.c.l.s4 1934713408
        %v2614 = vunpack.c.0.s8 %v2613
        %v2615 = vlaneseq
        %v2616 = vshrl.u32 %v2615, 7
        %v2617 = vsub.s32 %v2614, %v2616
        %v2618 = vrot.slane %v2604, %v2617
        %v2619 = vcombine.high %v2595, 0.0
        %v2620 = vcombine.high %v2602, 0.0
        %v2621 = vcombine.high %v2611, 0.0
        %v2622 = vcombine.high %v2618, 0.0
        %v2623 = vcombine.high %v2510, 0.0
        %v2625 = vunpack.c.l.s4 1983009808
        %v2626 = vunpack.c.0.s8 %v2625
        %v2627 = vlaneseq
        %v2628 = vshrl.u32 %v2627, 7
        %v2629 = vsub.s32 %v2626, %v2628
        %v2630 = vrot.slane %v2510, %v2629
        %v2632 = vunpack.c.l.s4 1983009808
        %v2633 = vunpack.c.0.s8 %v2632
        %v2634 = vlaneseq
        %v2635 = vshrl.u32 %v2634, 7
        %v2636 = vsub.s32 %v2633, %v2635
        %v2637 = vrot.slane %v2623, %v2636
        %v2638 = vcombine.high %v2554, 0.0
        %v2640 = vunpack.c.l.s4 1983009808
        %v2641 = vunpack.c.0.s8 %v2640
        %v2642 = vlaneseq
        %v2643 = vshrl.u32 %v2642, 7
        %v2644 = vsub.s32 %v2641, %v2643
        %v2645 = vrot.slane %v2554, %v2644
        %v2647 = vunpack.c.l.s4 1983009808
        %v2648 = vunpack.c.0.s8 %v2647
        %v2649 = vlaneseq
        %v2650 = vshrl.u32 %v2649, 7
        %v2651 = vsub.s32 %v2648, %v2650
        %v2652 = vrot.slane %v2638, %v2651
        %v2653 = vcombine.low %v2630, %v2645
        %v2654 = vcombine.high %v2630, %v2645
        %v2656 = vunpack.c.l.s4 1934713408
        %v2657 = vunpack.c.0.s8 %v2656
        %v2658 = vlaneseq
        %v2659 = vshrl.u32 %v2658, 7
        %v2660 = vsub.s32 %v2657, %v2659
        %v2661 = vrot.slane %v2653, %v2660
        %v2663 = vunpack.c.l.s4 1934713408
        %v2664 = vunpack.c.0.s8 %v2663
        %v2665 = vlaneseq
        %v2666 = vshrl.u32 %v2665, 7
        %v2667 = vsub.s32 %v2664, %v2666
        %v2668 = vrot.slane %v2654, %v2667
        %v2669 = vcombine.low %v2637, %v2652
        %v2670 = vcombine.high %v2637, %v2652
        %v2672 = vunpack.c.l.s4 1934713408
        %v2673 = vunpack.c.0.s8 %v2672
        %v2674 = vlaneseq
        %v2675 = vshrl.u32 %v2674, 7
        %v2676 = vsub.s32 %v2673, %v2675
        %v2677 = vrot.slane %v2669, %v2676
        %v2679 = vunpack.c.l.s4 1934713408
        %v2680 = vunpack.c.0.s8 %v2679
        %v2681 = vlaneseq
        %v2682 = vshrl.u32 %v2681, 7
        %v2683 = vsub.s32 %v2680, %v2682
        %v2684 = vrot.slane %v2670, %v2683
        %v2685 = vcombine.high %v2661, 0.0
        %v2686 = vcombine.high %v2668, 0.0
        %v2687 = vcombine.high %v2677, 0.0
        %v2688 = vcombine.high %v2684, 0.0
        %v2689 = vcombine.low %v2595, %v2602
        %v2691 = vunpack.c.l.s4 1983009808
        %v2692 = vunpack.c.0.s8 %v2691
        %v2693 = vlaneseq
        %v2694 = vshrl.u32 %v2693, 7
        %v2695 = vsub.s32 %v2692, %v2694
        %v2696 = vrot.slane %v2689, %v2695
        %v2697 = vcombine.low %v2619, %v2620
        %v2699 = vunpack.c.l.s4 1983009808
        %v2700 = vunpack.c.0.s8 %v2699
        %v2701 = vlaneseq
        %v2702 = vshrl.u32 %v2701, 7
        %v2703 = vsub.s32 %v2700, %v2702
        %v2704 = vrot.slane %v2697, %v2703
        %v2705 = vcombine.low %v2611, %v2618
        %v2707 = vunpack.c.l.s4 1983009808
        %v2708 = vunpack.c.0.s8 %v2707
        %v2709 = vlaneseq
        %v2710 = vshrl.u32 %v2709, 7
        %v2711 = vsub.s32 %v2708, %v2710
        %v2712 = vrot.slane %v2705, %v2711
        %v2713 = vcombine.low %v2621, %v2622
        %v2715 = vunpack.c.l.s4 1983009808
        %v2716 = vunpack.c.0.s8 %v2715
        %v2717 = vlaneseq
        %v2718 = vshrl.u32 %v2717, 7
        %v2719 = vsub.s32 %v2716, %v2718
        %v2720 = vrot.slane %v2713, %v2719
        %v2721 = vcombine.low %v2696, %v2704
        %v2723 = vunpack.c.l.s4 1934713408
        %v2724 = vunpack.c.0.s8 %v2723
        %v2725 = vlaneseq
        %v2726 = vshrl.u32 %v2725, 7
        %v2727 = vsub.s32 %v2724, %v2726
        %v2728 = vrot.slane %v2721, %v2727
        %v2729 = vcombine.low %v2712, %v2720
        %v2731 = vunpack.c.l.s4 1934713408
        %v2732 = vunpack.c.0.s8 %v2731
        %v2733 = vlaneseq
        %v2734 = vshrl.u32 %v2733, 7
        %v2735 = vsub.s32 %v2732, %v2734
        %v2736 = vrot.slane %v2729, %v2735
        %v2737 = vcombine.low %v2728, %v2736
        %v2738 = vcombine.high %v2728, %v2736
        %v2739 = vcombine.low %v2661, %v2668
        %v2741 = vunpack.c.l.s4 1983009808
        %v2742 = vunpack.c.0.s8 %v2741
        %v2743 = vlaneseq
        %v2744 = vshrl.u32 %v2743, 7
        %v2745 = vsub.s32 %v2742, %v2744
        %v2746 = vrot.slane %v2739, %v2745
        %v2747 = vcombine.low %v2685, %v2686
        %v2749 = vunpack.c.l.s4 1983009808
        %v2750 = vunpack.c.0.s8 %v2749
        %v2751 = vlaneseq
        %v2752 = vshrl.u32 %v2751, 7
        %v2753 = vsub.s32 %v2750, %v2752
        %v2754 = vrot.slane %v2747, %v2753
        %v2755 = vcombine.low %v2677, %v2684
        %v2757 = vunpack.c.l.s4 1983009808
        %v2758 = vunpack.c.0.s8 %v2757
        %v2759 = vlaneseq
        %v2760 = vshrl.u32 %v2759, 7
        %v2761 = vsub.s32 %v2758, %v2760
        %v2762 = vrot.slane %v2755, %v2761
        %v2763 = vcombine.low %v2687, %v2688
        %v2765 = vunpack.c.l.s4 1983009808
        %v2766 = vunpack.c.0.s8 %v2765
        %v2767 = vlaneseq
        %v2768 = vshrl.u32 %v2767, 7
        %v2769 = vsub.s32 %v2766, %v2768
        %v2770 = vrot.slane %v2763, %v2769
        %v2771 = vcombine.low %v2746, %v2754
        %v2773 = vunpack.c.l.s4 1934713408
        %v2774 = vunpack.c.0.s8 %v2773
        %v2775 = vlaneseq
        %v2776 = vshrl.u32 %v2775, 7
        %v2777 = vsub.s32 %v2774, %v2776
        %v2778 = vrot.slane %v2771, %v2777
        %v2779 = vcombine.low %v2762, %v2770
        %v2781 = vunpack.c.l.s4 1934713408
        %v2782 = vunpack.c.0.s8 %v2781
        %v2783 = vlaneseq
        %v2784 = vshrl.u32 %v2783, 7
        %v2785 = vsub.s32 %v2782, %v2784
        %v2786 = vrot.slane %v2779, %v2785
        %v2787 = vcombine.low %v2778, %v2786
        %v2788 = vcombine.high %v2778, %v2786
        %2791 = vrot.lane.b32.xlu0 %v2738, 64
        %v2792 = vpop.permute.xlu0 %2791
        %2793 = vrot.lane.b32.xlu0 %v2788, 64
        %v2794 = vpop.permute.xlu0 %2793
        %v2797 = vsel %vm2327, %v2737, %v2792
        %v2798 = vsel %vm2327, %v2787, %v2794
        %v2799 = vpack.c.bf16 %v2798, %v2797
        %v2800 = vld [vmem:[%s882] sm:$0xf]
        %v2801 = vld [vmem:[%s882 + $0x4] sm:$0xf]
        %v2802 = vld [vmem:[%s882 + $0x8] sm:$0xf]
        %v2803 = vld [vmem:[%s882 + $0xc] sm:$0xf]
        %v2804 = vld [vmem:[%s882 + $0x10] sm:$0xf]
        %v2805 = vld [vmem:[%s882 + $0x14] sm:$0xf]
        %v2806 = vld [vmem:[%s882 + $0x18] sm:$0xf]
        %v2807 = vld [vmem:[%s882 + $0x1c] sm:$0xf]
        %v2808 = vld [vmem:[%s882 + $0x20] sm:$0xf]
        %v2809 = vld [vmem:[%s882 + $0x24] sm:$0xf]
        %v2810 = vld [vmem:[%s882 + $0x28] sm:$0xf]
        %v2811 = vld [vmem:[%s882 + $0x2c] sm:$0xf]
        %v2812 = vld [vmem:[%s882 + $0x30] sm:$0xf]
        %v2813 = vld [vmem:[%s882 + $0x34] sm:$0xf]
        %v2814 = vld [vmem:[%s882 + $0x38] sm:$0xf]
        %v2815 = vld [vmem:[%s882 + $0x3c] sm:$0xf]
        %v2832 = vunpack.c.l.b16 %v2800
        %v2833 = vunpack.c.l.b16 %v2801
        %v2834 = vunpack.c.l.b16 %v2802
        %v2835 = vunpack.c.l.b16 %v2803
        %v2836 = vunpack.c.l.b16 %v2804
        %v2837 = vunpack.c.l.b16 %v2805
        %v2838 = vunpack.c.l.b16 %v2806
        %v2839 = vunpack.c.l.b16 %v2807
        %v2840 = vunpack.c.l.b16 %v2808
        %v2841 = vunpack.c.l.b16 %v2809
        %v2842 = vunpack.c.l.b16 %v2810
        %v2843 = vunpack.c.l.b16 %v2811
        %v2844 = vunpack.c.l.b16 %v2812
        %v2845 = vunpack.c.l.b16 %v2813
        %v2846 = vunpack.c.l.b16 %v2814
        %v2847 = vunpack.c.l.b16 %v2815
        %v2848 = vpack.c.b16 %v2833, %v2832
        %v2849 = vpack.c.b16 %v2835, %v2834
        %v2850 = vpack.c.b16 %v2837, %v2836
        %v2851 = vpack.c.b16 %v2839, %v2838
        %v2852 = vpack.c.b16 %v2841, %v2840
        %v2853 = vpack.c.b16 %v2843, %v2842
        %v2854 = vpack.c.b16 %v2845, %v2844
        %v2855 = vpack.c.b16 %v2847, %v2846
        %2864 = vmatprep.subr.bf16.mxu0 0
        %2865 = vmatpush1.bf16.msra.mxu0 %v2855
        %2866 = vmatprep.subr.bf16.mxu0 0
        %2867 = vmatpush1.bf16.msra.mxu0 %v2854
        %2868 = vmatprep.subr.bf16.mxu0 0
        %2869 = vmatpush1.bf16.msra.mxu0 %v2853
        %2870 = vmatprep.subr.bf16.mxu0 0
        %2871 = vmatpush1.bf16.msra.mxu0 %v2852
        %2872 = vmatprep.subr.bf16.mxu0 0
        %2873 = vmatpush1.bf16.msra.mxu0 %v2851
        %2874 = vmatprep.subr.bf16.mxu0 0
        %2875 = vmatpush1.bf16.msra.mxu0 %v2850
        %2876 = vmatprep.subr.bf16.mxu0 0
        %2877 = vmatpush1.bf16.msra.mxu0 %v2849
        %2878 = vmatprep.subr.bf16.mxu0 0
        %2879 = vmatpush1.bf16.msra.mxu0 %v2848
        %2880 = vmatprep.subr.bf16.mxu0 0
        %2881 = vmatpush2.bf16.msra.mxu0 0
        %2882 = vmatprep.subr.bf16.mxu0 0
        %2883 = vmatpush2.bf16.msra.mxu0 0
        %2884 = vmatprep.subr.bf16.mxu0 0
        %2885 = vmatpush2.bf16.msra.mxu0 0
        %2886 = vmatprep.subr.bf16.mxu0 0
        %2887 = vmatpush2.bf16.msra.mxu0 0
        %2888 = vmatprep.subr.bf16.mxu0 0
        %2889 = vmatpush2.bf16.msra.mxu0 0
        %2890 = vmatprep.subr.bf16.mxu0 0
        %2891 = vmatpush2.bf16.msra.mxu0 0
        %2892 = vmatprep.subr.bf16.mxu0 0
        %2893 = vmatpush2.bf16.msra.mxu0 0
        %2894 = vmatprep.subr.bf16.mxu0 0
        %2895 = vmatpush2.bf16.msra.mxu0 0
        %2896 = vmatprep.mubr.bf16.mxu0 0
        %2897 = vmatmul.mubr.bf16.gmra.mxu0 %v2799
        %v2898 = vpop.f32.mrf.mxu0
        %v2899 = vadd.f32 0.0, %v2898
        %v2900 = vpop.f32.mrf.mxu0
        %v2901 = vpop.f32.mrf.mxu0
        %v2902 = vadd.f32 0.0, %v2901
        %v2903 = vpop.f32.mrf.mxu0
        %2904 = vdwg.mxu0
        %v2905 = vadd.f32 %v1221, %v2899
        %v2906 = vadd.f32 %v1222, %v2902
        %v2907 = vld [vmem:[%s1041] sm:$0x1]
        %v2909 = vlaneseq
        %v2910 = vshrl.u32 %v2909, 7
        %v2911 = vsub.s32 0, %v2910
        %v2912 = vrot.slane %v2907, %v2911
        %v2914 = vadd.f32 %v2905, %v2912
        %v2915 = vadd.f32 %v2906, %v2912
        %v2916 = vld [vmem:[%s1044] sm:$0x1]
        %v2917 = vld [vmem:[%s1047] sm:$0x1]
        %2918 = vadd.xlane.f32.xlu0 %v2914
        %v2919 = vpop.xlane.xlu0 %2918
        %2920 = vadd.xlane.f32.xlu0 %v2915
        %v2921 = vpop.xlane.xlu0 %2920
        %v2922 = vmul.f32 %v2919, %v1229
        %v2923 = vmul.f32 %v2921, %v1229
        %v2924 = vsub.f32 %v2914, %v2922
        %v2925 = vsub.f32 %v2915, %v2923
        %v2926 = vmul.f32 %v2924, %v2924
        %v2927 = vmul.f32 %v2925, %v2925
        %2928 = vadd.xlane.f32.xlu0 %v2926
        %v2929 = vpop.xlane.xlu0 %2928
        %2930 = vadd.xlane.f32.xlu0 %v2927
        %v2931 = vpop.xlane.xlu0 %2930
        %v2932 = vmul.f32 %v2929, %v1229
        %v2933 = vmul.f32 %v2931, %v1229
        %v2934 = vadd.f32 %v2932, 1e-12
        %v2935 = vadd.f32 %v2933, 1e-12
        %v2936 = vrsqrt.pop %v2934
        %v2937 = vrsqrt.pop %v2935
        %v2938 = vmul.f32 %v2924, %v2936
        %v2939 = vmul.f32 %v2925, %v2937
        %v2941 = vlaneseq
        %v2942 = vshrl.u32 %v2941, 7
        %v2943 = vsub.s32 0, %v2942
        %v2944 = vrot.slane %v2916, %v2943
        %v2946 = vmul.f32 %v2938, %v2944
        %v2947 = vmul.f32 %v2939, %v2944
        %v2949 = vlaneseq
        %v2950 = vshrl.u32 %v2949, 7
        %v2951 = vsub.s32 0, %v2950
        %v2952 = vrot.slane %v2917, %v2951
        %v2954 = vadd.f32 %v2946, %v2952
        %v2955 = vadd.f32 %v2947, %v2952
        %v2956 = vpack.c.bf16 %v2955, %v2954
        %v2957 = vld [vmem:[%s891] sm:$0xff]
        %v2958 = vld [vmem:[%s891 + $0x8] sm:$0xff]
        %v2959 = vld [vmem:[%s891 + $0x10] sm:$0xff]
        %v2960 = vld [vmem:[%s891 + $0x18] sm:$0xff]
        %v2961 = vld [vmem:[%s891 + $0x20] sm:$0xff]
        %v2962 = vld [vmem:[%s891 + $0x28] sm:$0xff]
        %v2963 = vld [vmem:[%s891 + $0x30] sm:$0xff]
        %v2964 = vld [vmem:[%s891 + $0x38] sm:$0xff]
        %v2965 = vld [vmem:[%s891 + $0x40] sm:$0xff]
        %v2966 = vld [vmem:[%s891 + $0x48] sm:$0xff]
        %v2967 = vld [vmem:[%s891 + $0x50] sm:$0xff]
        %v2968 = vld [vmem:[%s891 + $0x58] sm:$0xff]
        %v2969 = vld [vmem:[%s891 + $0x60] sm:$0xff]
        %v2970 = vld [vmem:[%s891 + $0x68] sm:$0xff]
        %v2971 = vld [vmem:[%s891 + $0x70] sm:$0xff]
        %v2972 = vld [vmem:[%s891 + $0x78] sm:$0xff]
        %v2973 = vld [vmem:[%s1051] sm:$0x3]
        %v2975 = vlaneseq
        %v2976 = vshrl.u32 %v2975, 7
        %v2977 = vsub.s32 0, %v2976
        %v2978 = vrot.slane %v2973, %v2977
        %v2979 = vlaneseq
        %v2980 = vshrl.u32 %v2979, 7
        %v2981 = vsub.s32 1, %v2980
        %v2982 = vrot.slane %v2973, %v2981
        %v3001 = vunpack.c.l.b16 %v2957
        %v3002 = vunpack.c.h.b16 %v2957
        %v3003 = vunpack.c.l.b16 %v2958
        %v3004 = vunpack.c.h.b16 %v2958
        %v3005 = vunpack.c.l.b16 %v2959
        %v3006 = vunpack.c.h.b16 %v2959
        %v3007 = vunpack.c.l.b16 %v2960
        %v3008 = vunpack.c.h.b16 %v2960
        %v3009 = vunpack.c.l.b16 %v2961
        %v3010 = vunpack.c.h.b16 %v2961
        %v3011 = vunpack.c.l.b16 %v2962
        %v3012 = vunpack.c.h.b16 %v2962
        %v3013 = vunpack.c.l.b16 %v2963
        %v3014 = vunpack.c.h.b16 %v2963
        %v3015 = vunpack.c.l.b16 %v2964
        %v3016 = vunpack.c.h.b16 %v2964
        %v3017 = vunpack.c.l.b16 %v2965
        %v3018 = vunpack.c.h.b16 %v2965
        %v3019 = vunpack.c.l.b16 %v2966
        %v3020 = vunpack.c.h.b16 %v2966
        %v3021 = vunpack.c.l.b16 %v2967
        %v3022 = vunpack.c.h.b16 %v2967
        %v3023 = vunpack.c.l.b16 %v2968
        %v3024 = vunpack.c.h.b16 %v2968
        %v3025 = vunpack.c.l.b16 %v2969
        %v3026 = vunpack.c.h.b16 %v2969
        %v3027 = vunpack.c.l.b16 %v2970
        %v3028 = vunpack.c.h.b16 %v2970
        %v3029 = vunpack.c.l.b16 %v2971
        %v3030 = vunpack.c.h.b16 %v2971
        %v3031 = vunpack.c.l.b16 %v2972
        %v3032 = vunpack.c.h.b16 %v2972
        %v3033 = vpack.c.b16 %v3003, %v3001
        %v3034 = vpack.c.b16 %v3004, %v3002
        %v3035 = vpack.c.b16 %v3007, %v3005
        %v3036 = vpack.c.b16 %v3008, %v3006
        %v3037 = vpack.c.b16 %v3011, %v3009
        %v3038 = vpack.c.b16 %v3012, %v3010
        %v3039 = vpack.c.b16 %v3015, %v3013
        %v3040 = vpack.c.b16 %v3016, %v3014
        %v3041 = vpack.c.b16 %v3019, %v3017
        %v3042 = vpack.c.b16 %v3020, %v3018
        %v3043 = vpack.c.b16 %v3023, %v3021
        %v3044 = vpack.c.b16 %v3024, %v3022
        %v3045 = vpack.c.b16 %v3027, %v3025
        %v3046 = vpack.c.b16 %v3028, %v3026
        %v3047 = vpack.c.b16 %v3031, %v3029
        %v3048 = vpack.c.b16 %v3032, %v3030
        %3065 = vmatprep.subr.bf16.mxu0 %v3048
        %3066 = vmatpush1.bf16.msra.mxu0 %v3047
        %3067 = vmatprep.subr.bf16.mxu0 %v3046
        %3068 = vmatpush1.bf16.msra.mxu0 %v3045
        %3069 = vmatprep.subr.bf16.mxu0 %v3044
        %3070 = vmatpush1.bf16.msra.mxu0 %v3043
        %3071 = vmatprep.subr.bf16.mxu0 %v3042
        %3072 = vmatpush1.bf16.msra.mxu0 %v3041
        %3073 = vmatprep.subr.bf16.mxu0 %v3040
        %3074 = vmatpush1.bf16.msra.mxu0 %v3039
        %3075 = vmatprep.subr.bf16.mxu0 %v3038
        %3076 = vmatpush1.bf16.msra.mxu0 %v3037
        %3077 = vmatprep.subr.bf16.mxu0 %v3036
        %3078 = vmatpush1.bf16.msra.mxu0 %v3035
        %3079 = vmatprep.subr.bf16.mxu0 %v3034
        %3080 = vmatpush1.bf16.msra.mxu0 %v3033
        %3081 = vmatprep.subr.bf16.mxu0 0
        %3082 = vmatpush2.bf16.msra.mxu0 0
        %3083 = vmatprep.subr.bf16.mxu0 0
        %3084 = vmatpush2.bf16.msra.mxu0 0
        %3085 = vmatprep.subr.bf16.mxu0 0
        %3086 = vmatpush2.bf16.msra.mxu0 0
        %3087 = vmatprep.subr.bf16.mxu0 0
        %3088 = vmatpush2.bf16.msra.mxu0 0
        %3089 = vmatprep.subr.bf16.mxu0 0
        %3090 = vmatpush2.bf16.msra.mxu0 0
        %3091 = vmatprep.subr.bf16.mxu0 0
        %3092 = vmatpush2.bf16.msra.mxu0 0
        %3093 = vmatprep.subr.bf16.mxu0 0
        %3094 = vmatpush2.bf16.msra.mxu0 0
        %3095 = vmatprep.subr.bf16.mxu0 0
        %3096 = vmatpush2.bf16.msra.mxu0 0
        %3097 = vmatprep.mubr.bf16.mxu0 0
        %3098 = vmatmul.mubr.bf16.gmra.mxu0 %v2956
        %v3099 = vpop.f32.mrf.mxu0
        %v3100 = vadd.f32 %v2978, %v3099
        %v3101 = vpop.f32.mrf.mxu0
        %v3102 = vadd.f32 %v2982, %v3101
        %v3103 = vpop.f32.mrf.mxu0
        %v3104 = vadd.f32 %v2978, %v3103
        %v3105 = vpop.f32.mrf.mxu0
        %v3106 = vadd.f32 %v2982, %v3105
        %3107 = vdwg.mxu0
        %v3108 = vmul.f32 %v3100, 0.5
        %v3109 = vmul.f32 %v3102, 0.5
        %v3110 = vmul.f32 %v3104, 0.5
        %v3111 = vmul.f32 %v3106, 0.5
        %v3112 = vmul.f32 %v3100, 0.044715
        %v3113 = vmul.f32 %v3102, 0.044715
        %v3114 = vmul.f32 %v3104, 0.044715
        %v3115 = vmul.f32 %v3106, 0.044715
        %v3116 = vmul.f32 %v3112, %v3100
        %v3117 = vmul.f32 %v3113, %v3102
        %v3118 = vmul.f32 %v3114, %v3104
        %v3119 = vmul.f32 %v3115, %v3106
        %v3120 = vmul.f32 %v3116, %v3100
        %v3121 = vmul.f32 %v3117, %v3102
        %v3122 = vmul.f32 %v3118, %v3104
        %v3123 = vmul.f32 %v3119, %v3106
        %v3124 = vadd.f32 %v3100, %v3120
        %v3125 = vadd.f32 %v3102, %v3121
        %v3126 = vadd.f32 %v3104, %v3122
        %v3127 = vadd.f32 %v3106, %v3123
        %v3128 = vmul.f32 %v3124, 0.7978846
        %v3129 = vmul.f32 %v3125, 0.7978846
        %v3130 = vmul.f32 %v3126, 0.7978846
        %v3131 = vmul.f32 %v3127, 0.7978846
        %v3132 = vtanh.pop %v3128
        %v3133 = vtanh.pop %v3129
        %v3134 = vtanh.pop %v3130
        %v3135 = vtanh.pop %v3131
        %v3136 = vadd.f32 %v3132, 1.0
        %v3137 = vadd.f32 %v3133, 1.0
        %v3138 = vadd.f32 %v3134, 1.0
        %v3139 = vadd.f32 %v3135, 1.0
        %v3140 = vmul.f32 %v3108, %v3136
        %v3141 = vmul.f32 %v3109, %v3137
        %v3142 = vmul.f32 %v3110, %v3138
        %v3143 = vmul.f32 %v3111, %v3139
        %v3144 = vpack.c.bf16 %v3142, %v3140
        %v3145 = vpack.c.bf16 %v3143, %v3141
        %v3146 = vld [vmem:[%s900] sm:$0xf]
        %v3147 = vld [vmem:[%s900 + $0x4] sm:$0xf]
        %v3148 = vld [vmem:[%s900 + $0x8] sm:$0xf]
        %v3149 = vld [vmem:[%s900 + $0xc] sm:$0xf]
        %v3150 = vld [vmem:[%s900 + $0x10] sm:$0xf]
        %v3151 = vld [vmem:[%s900 + $0x14] sm:$0xf]
        %v3152 = vld [vmem:[%s900 + $0x18] sm:$0xf]
        %v3153 = vld [vmem:[%s900 + $0x1c] sm:$0xf]
        %v3154 = vld [vmem:[%s900 + $0x20] sm:$0xf]
        %v3155 = vld [vmem:[%s900 + $0x24] sm:$0xf]
        %v3156 = vld [vmem:[%s900 + $0x28] sm:$0xf]
        %v3157 = vld [vmem:[%s900 + $0x2c] sm:$0xf]
        %v3158 = vld [vmem:[%s900 + $0x30] sm:$0xf]
        %v3159 = vld [vmem:[%s900 + $0x34] sm:$0xf]
        %v3160 = vld [vmem:[%s900 + $0x38] sm:$0xf]
        %v3161 = vld [vmem:[%s900 + $0x3c] sm:$0xf]
        %v3162 = vld [vmem:[%s900 + $0x40] sm:$0xf]
        %v3163 = vld [vmem:[%s900 + $0x44] sm:$0xf]
        %v3164 = vld [vmem:[%s900 + $0x48] sm:$0xf]
        %v3165 = vld [vmem:[%s900 + $0x4c] sm:$0xf]
        %v3166 = vld [vmem:[%s900 + $0x50] sm:$0xf]
        %v3167 = vld [vmem:[%s900 + $0x54] sm:$0xf]
        %v3168 = vld [vmem:[%s900 + $0x58] sm:$0xf]
        %v3169 = vld [vmem:[%s900 + $0x5c] sm:$0xf]
        %v3170 = vld [vmem:[%s900 + $0x60] sm:$0xf]
        %v3171 = vld [vmem:[%s900 + $0x64] sm:$0xf]
        %v3172 = vld [vmem:[%s900 + $0x68] sm:$0xf]
        %v3173 = vld [vmem:[%s900 + $0x6c] sm:$0xf]
        %v3174 = vld [vmem:[%s900 + $0x70] sm:$0xf]
        %v3175 = vld [vmem:[%s900 + $0x74] sm:$0xf]
        %v3176 = vld [vmem:[%s900 + $0x78] sm:$0xf]
        %v3177 = vld [vmem:[%s900 + $0x7c] sm:$0xf]
        %v3210 = vunpack.c.l.b16 %v3146
        %v3211 = vunpack.c.l.b16 %v3147
        %v3212 = vunpack.c.l.b16 %v3148
        %v3213 = vunpack.c.l.b16 %v3149
        %v3214 = vunpack.c.l.b16 %v3150
        %v3215 = vunpack.c.l.b16 %v3151
        %v3216 = vunpack.c.l.b16 %v3152
        %v3217 = vunpack.c.l.b16 %v3153
        %v3218 = vunpack.c.l.b16 %v3154
        %v3219 = vunpack.c.l.b16 %v3155
        %v3220 = vunpack.c.l.b16 %v3156
        %v3221 = vunpack.c.l.b16 %v3157
        %v3222 = vunpack.c.l.b16 %v3158
        %v3223 = vunpack.c.l.b16 %v3159
        %v3224 = vunpack.c.l.b16 %v3160
        %v3225 = vunpack.c.l.b16 %v3161
        %v3226 = vunpack.c.l.b16 %v3162
        %v3227 = vunpack.c.l.b16 %v3163
        %v3228 = vunpack.c.l.b16 %v3164
        %v3229 = vunpack.c.l.b16 %v3165
        %v3230 = vunpack.c.l.b16 %v3166
        %v3231 = vunpack.c.l.b16 %v3167
        %v3232 = vunpack.c.l.b16 %v3168
        %v3233 = vunpack.c.l.b16 %v3169
        %v3234 = vunpack.c.l.b16 %v3170
        %v3235 = vunpack.c.l.b16 %v3171
        %v3236 = vunpack.c.l.b16 %v3172
        %v3237 = vunpack.c.l.b16 %v3173
        %v3238 = vunpack.c.l.b16 %v3174
        %v3239 = vunpack.c.l.b16 %v3175
        %v3240 = vunpack.c.l.b16 %v3176
        %v3241 = vunpack.c.l.b16 %v3177
        %v3242 = vpack.c.b16 %v3211, %v3210
        %v3243 = vpack.c.b16 %v3213, %v3212
        %v3244 = vpack.c.b16 %v3215, %v3214
        %v3245 = vpack.c.b16 %v3217, %v3216
        %v3246 = vpack.c.b16 %v3219, %v3218
        %v3247 = vpack.c.b16 %v3221, %v3220
        %v3248 = vpack.c.b16 %v3223, %v3222
        %v3249 = vpack.c.b16 %v3225, %v3224
        %v3250 = vpack.c.b16 %v3227, %v3226
        %v3251 = vpack.c.b16 %v3229, %v3228
        %v3252 = vpack.c.b16 %v3231, %v3230
        %v3253 = vpack.c.b16 %v3233, %v3232
        %v3254 = vpack.c.b16 %v3235, %v3234
        %v3255 = vpack.c.b16 %v3237, %v3236
        %v3256 = vpack.c.b16 %v3239, %v3238
        %v3257 = vpack.c.b16 %v3241, %v3240
        %3274 = vmatprep.subr.bf16.mxu0 0
        %3275 = vmatpush1.bf16.msra.mxu0 %v3249
        %3276 = vmatprep.subr.bf16.mxu0 0
        %3277 = vmatpush1.bf16.msra.mxu0 %v3248
        %3278 = vmatprep.subr.bf16.mxu0 0
        %3279 = vmatpush1.bf16.msra.mxu0 %v3247
        %3280 = vmatprep.subr.bf16.mxu0 0
        %3281 = vmatpush1.bf16.msra.mxu0 %v3246
        %3282 = vmatprep.subr.bf16.mxu0 0
        %3283 = vmatpush1.bf16.msra.mxu0 %v3245
        %3284 = vmatprep.subr.bf16.mxu0 0
        %3285 = vmatpush1.bf16.msra.mxu0 %v3244
        %3286 = vmatprep.subr.bf16.mxu0 0
        %3287 = vmatpush1.bf16.msra.mxu0 %v3243
        %3288 = vmatprep.subr.bf16.mxu0 0
        %3289 = vmatpush1.bf16.msra.mxu0 %v3242
        %3290 = vmatprep.subr.bf16.mxu0 0
        %3291 = vmatpush2.bf16.msra.mxu0 %v3257
        %3292 = vmatprep.subr.bf16.mxu0 0
        %3293 = vmatpush2.bf16.msra.mxu0 %v3256
        %3294 = vmatprep.subr.bf16.mxu0 0
        %3295 = vmatpush2.bf16.msra.mxu0 %v3255
        %3296 = vmatprep.subr.bf16.mxu0 0
        %3297 = vmatpush2.bf16.msra.mxu0 %v3254
        %3298 = vmatprep.subr.bf16.mxu0 0
        %3299 = vmatpush2.bf16.msra.mxu0 %v3253
        %3300 = vmatprep.subr.bf16.mxu0 0
        %3301 = vmatpush2.bf16.msra.mxu0 %v3252
        %3302 = vmatprep.subr.bf16.mxu0 0
        %3303 = vmatpush2.bf16.msra.mxu0 %v3251
        %3304 = vmatprep.subr.bf16.mxu0 0
        %3305 = vmatpush2.bf16.msra.mxu0 %v3250
        %3306 = vmatprep.mubr.bf16.mxu0 %v3145
        %3307 = vmatmul.mubr.bf16.gmra.mxu0 %v3144
        %v3308 = vpop.f32.mrf.mxu0
        %v3309 = vadd.f32 0.0, %v3308
        %v3310 = vpop.f32.mrf.mxu0
        %v3311 = vpop.f32.mrf.mxu0
        %v3312 = vadd.f32 0.0, %v3311
        %v3313 = vpop.f32.mrf.mxu0
        %3314 = vdwg.mxu0
        %v3315 = vadd.f32 %v2914, %v3309
        %v3316 = vadd.f32 %v2915, %v3312
        %v3317 = vld [vmem:[%s1054] sm:$0x1]
        %v3319 = vlaneseq
        %v3320 = vshrl.u32 %v3319, 7
        %v3321 = vsub.s32 0, %v3320
        %v3322 = vrot.slane %v3317, %v3321
        %v3324 = vadd.f32 %v3315, %v3322
        %v3325 = vadd.f32 %v3316, %v3322
        %3326 = vst [vmem:[#allocation2] sm:$0xff] %v3324
        %3327 = vst [vmem:[#allocation2 + $0x8] sm:$0xff] %v3325
        %p3328 = scmp.eq.s32.totalorder %s50, 1
        // Predicated region
        $region137: #{tpu_custom_call.1} parent=103 // pred_check
          %p3329 = pneg %p3328
        $region138: #{tpu_custom_call.1} parent=103 // pred_check_branch
          %3331 = sbr.rel (%p3329) target = $region140
        $region139: #{tpu_custom_call.1} parent=103 // pred_region
          %v3332 = vpack.c.bf16 %v3325, %v3324
          %v3333 = vld [vmem:[%s19] sm:$0xf]
          %v3334 = vld [vmem:[%s19 + $0x4] sm:$0xf]
          %v3335 = vld [vmem:[%s19 + $0x8] sm:$0xf]
          %v3336 = vld [vmem:[%s19 + $0xc] sm:$0xf]
          %v3337 = vld [vmem:[%s19 + $0x10] sm:$0xf]
          %v3338 = vld [vmem:[%s19 + $0x14] sm:$0xf]
          %v3339 = vld [vmem:[%s19 + $0x18] sm:$0xf]
          %v3340 = vld [vmem:[%s19 + $0x1c] sm:$0xf]
          %v3341 = vld [vmem:[%s19 + $0x20] sm:$0xf]
          %v3342 = vld [vmem:[%s19 + $0x24] sm:$0xf]
          %v3343 = vld [vmem:[%s19 + $0x28] sm:$0xf]
          %v3344 = vld [vmem:[%s19 + $0x2c] sm:$0xf]
          %v3345 = vld [vmem:[%s19 + $0x30] sm:$0xf]
          %v3346 = vld [vmem:[%s19 + $0x34] sm:$0xf]
          %v3347 = vld [vmem:[%s19 + $0x38] sm:$0xf]
          %v3348 = vld [vmem:[%s19 + $0x3c] sm:$0xf]
          %v3349 = vld [vmem:[%s20] sm:$0x1]
          %v3351 = vlaneseq
          %v3352 = vshrl.u32 %v3351, 7
          %v3353 = vsub.s32 0, %v3352
          %v3354 = vrot.slane %v3349, %v3353
          %v3372 = vunpack.c.l.b16 %v3333
          %v3373 = vunpack.c.l.b16 %v3334
          %v3374 = vunpack.c.l.b16 %v3335
          %v3375 = vunpack.c.l.b16 %v3336
          %v3376 = vunpack.c.l.b16 %v3337
          %v3377 = vunpack.c.l.b16 %v3338
          %v3378 = vunpack.c.l.b16 %v3339
          %v3379 = vunpack.c.l.b16 %v3340
          %v3380 = vunpack.c.l.b16 %v3341
          %v3381 = vunpack.c.l.b16 %v3342
          %v3382 = vunpack.c.l.b16 %v3343
          %v3383 = vunpack.c.l.b16 %v3344
          %v3384 = vunpack.c.l.b16 %v3345
          %v3385 = vunpack.c.l.b16 %v3346
          %v3386 = vunpack.c.l.b16 %v3347
          %v3387 = vunpack.c.l.b16 %v3348
          %v3388 = vpack.c.b16 %v3373, %v3372
          %v3389 = vpack.c.b16 %v3375, %v3374
          %v3390 = vpack.c.b16 %v3377, %v3376
          %v3391 = vpack.c.b16 %v3379, %v3378
          %v3392 = vpack.c.b16 %v3381, %v3380
          %v3393 = vpack.c.b16 %v3383, %v3382
          %v3394 = vpack.c.b16 %v3385, %v3384
          %v3395 = vpack.c.b16 %v3387, %v3386
          %3404 = vmatprep.subr.bf16.mxu0 0
          %3405 = vmatpush1.bf16.msra.mxu0 %v3395
          %3406 = vmatprep.subr.bf16.mxu0 0
          %3407 = vmatpush1.bf16.msra.mxu0 %v3394
          %3408 = vmatprep.subr.bf16.mxu0 0
          %3409 = vmatpush1.bf16.msra.mxu0 %v3393
          %3410 = vmatprep.subr.bf16.mxu0 0
          %3411 = vmatpush1.bf16.msra.mxu0 %v3392
          %3412 = vmatprep.subr.bf16.mxu0 0
          %3413 = vmatpush1.bf16.msra.mxu0 %v3391
          %3414 = vmatprep.subr.bf16.mxu0 0
          %3415 = vmatpush1.bf16.msra.mxu0 %v3390
          %3416 = vmatprep.subr.bf16.mxu0 0
          %3417 = vmatpush1.bf16.msra.mxu0 %v3389
          %3418 = vmatprep.subr.bf16.mxu0 0
          %3419 = vmatpush1.bf16.msra.mxu0 %v3388
          %3420 = vmatprep.subr.bf16.mxu0 0
          %3421 = vmatpush2.bf16.msra.mxu0 0
          %3422 = vmatprep.subr.bf16.mxu0 0
          %3423 = vmatpush2.bf16.msra.mxu0 0
          %3424 = vmatprep.subr.bf16.mxu0 0
          %3425 = vmatpush2.bf16.msra.mxu0 0
          %3426 = vmatprep.subr.bf16.mxu0 0
          %3427 = vmatpush2.bf16.msra.mxu0 0
          %3428 = vmatprep.subr.bf16.mxu0 0
          %3429 = vmatpush2.bf16.msra.mxu0 0
          %3430 = vmatprep.subr.bf16.mxu0 0
          %3431 = vmatpush2.bf16.msra.mxu0 0
          %3432 = vmatprep.subr.bf16.mxu0 0
          %3433 = vmatpush2.bf16.msra.mxu0 0
          %3434 = vmatprep.subr.bf16.mxu0 0
          %3435 = vmatpush2.bf16.msra.mxu0 0
          %3436 = vmatprep.mubr.bf16.mxu0 0
          %3437 = vmatmul.mubr.bf16.gmra.mxu0 %v3332
          %v3438 = vpop.f32.mrf.mxu0
          %v3439 = vadd.f32 %v3354, %v3438
          %v3440 = vpop.f32.mrf.mxu0
          %v3441 = vpop.f32.mrf.mxu0
          %v3442 = vadd.f32 %v3354, %v3441
          %v3443 = vpop.f32.mrf.mxu0
          %3444 = vdwg.mxu0
          %v3445 = vlaneseq
          %v3446 = vand.u32 %v3445, 127
          %vm3447 = vcmask 97280
          %v3448 = vsel %vm3447, %v3439, -inf
          %3449 = vmax.xlane.f32.xlu0 %v3448
          %v3450 = vpop.xlane.xlu0 %3449
          %v3451 = vsel %vm3447, %v3442, -inf
          %3452 = vmax.xlane.f32.xlu0 %v3451
          %v3453 = vpop.xlane.xlu0 %3452
          %vm3454 = vcmp.eq.f32.partialorder %v3439, %v3450
          %vm3455 = vcmp.eq.f32.partialorder %v3442, %v3453
          %v3456 = vsel %vm3454, %v3446, 12
          %v3457 = vsel %vm3455, %v3446, 12
          %v3458 = vsel %vm3447, %v3456, 2147483647
          %v3459 = vand.u32 %v3458, 65535
          %v3460 = vshra.s32 %v3458, 16
          %v3461 = vcvt.s32.f32 %v3459
          %v3462 = vcvt.s32.f32 %v3460
          %3463 = vmin.xlane.f32.xlu0 %v3462
          %v3464 = vpop.xlane.xlu0 %3463
          %vm3465 = vcmp.eq.f32.partialorder %v3462, %v3464
          %v3466 = vsel %vm3465, %v3461, inf
          %3467 = vmin.xlane.f32.xlu0 %v3466
          %v3468 = vpop.xlane.xlu0 %3467
          %v3469 = vcvt.f32.s32 %v3468
          %v3470 = vcvt.f32.s32 %v3464
          %v3471 = vshll.u32 %v3470, 16
          %v3472 = vadd.s32 %v3471, %v3469
          %v3473 = vsel %vm3447, %v3457, 2147483647
          %v3474 = vand.u32 %v3473, 65535
          %v3475 = vshra.s32 %v3473, 16
          %v3476 = vcvt.s32.f32 %v3474
          %v3477 = vcvt.s32.f32 %v3475
          %3478 = vmin.xlane.f32.xlu0 %v3477
          %v3479 = vpop.xlane.xlu0 %3478
          %vm3480 = vcmp.eq.f32.partialorder %v3477, %v3479
          %v3481 = vsel %vm3480, %v3476, inf
          %3482 = vmin.xlane.f32.xlu0 %v3481
          %v3483 = vpop.xlane.xlu0 %3482
          %v3484 = vcvt.f32.s32 %v3483
          %v3485 = vcvt.f32.s32 %v3479
          %v3486 = vshll.u32 %v3485, 16
          %v3487 = vadd.s32 %v3486, %v3484
          %v3488 = vlaneseq
          %v3489 = vshrl.u32 %v3488, 7
          %v3490 = vsub.s32 %v3446, %v3489
          %v3491 = vrot.slane %v3472, %v3490
          %v3492 = vadd.s32 %v3446, 4294967288
          %v3493 = vlaneseq
          %v3494 = vshrl.u32 %v3493, 7
          %v3495 = vsub.s32 %v3492, %v3494
          %v3496 = vrot.slane %v3487, %v3495
          %vm3497 = vcmask 130112
          %v3498 = vsel %vm3497, %v3496, %v3491
          %vm3499 = vcmask 122880
          %3500 = vst.msk [vmem:[%s1018] sm:$0x1] %vm3499, %v3498
        $region140: #{tpu_custom_call.1} parent=103 // pred_fallthru
          _
        %s3501 = sand.u32 %s591, 1
        %s3502 = scalar_lea.sflag [#allocation5], %s3501
        %s3503 = sand.u32 %s591, 1
        %s3504 = scalar_lea.vmem [#allocation15], %s3503
        // Predicated region
        $region141: #{tpu_custom_call.1} parent=103 // pred_check
          %p3505 = pneg %p601
        $region142: #{tpu_custom_call.1} parent=103 // pred_check_branch
          %3507 = sbr.rel (%p3505) target = $region144
        $region143: #{tpu_custom_call.1} parent=103 // pred_region
          %s3509 = ssub.s32 16, 16
          %3510 = vsyncadd %s3502, %s3509
          %s3511 = smul.addr %s49, 16
          %s3512 = scalar_lea.hbm %s21, %s3511
          %s3514 = sshll.u32 %s3504, 4
          %s3515 = int_to_ptr.vmem [resolvable:$true] %s3514
          %3517 = dma.vmem_to_hbm [thread:$0]  %s3515, 16, %s3512, %s3502
        $region144: #{tpu_custom_call.1} parent=103 // pred_fallthru
          _
      $region104: #{tpu_custom_call.1} parent=5 // pred_fallthru
        _
      %p3518 = scmp.le.s32.totalorder 2, %s40
      // Predicated region
      $region145: #{tpu_custom_call.1} parent=5 // pred_check
        %p3519 = pneg %p3518
      $region146: #{tpu_custom_call.1} parent=5 // pred_check_branch
        %3521 = sbr.rel (%p3519) target = $region148
      $region147: #{tpu_custom_call.1} parent=5 // pred_region
        %s3522 = ssub.s32 %s40, 2
        // Predicated region
        $region149: #{tpu_custom_call.1} parent=147 // pred_check
          %p3523 = pneg %p607
        $region150: #{tpu_custom_call.1} parent=147 // pred_check_branch
          %3525 = sbr.rel (%p3523) target = $region152
        $region151: #{tpu_custom_call.1} parent=147 // pred_region
          %s3526 = sand.u32 %s592, 1
          %s3527 = scalar_lea.sflag [#allocation5], %s3526
          %s3528 = sand.u32 %s592, 1
          %s3529 = scalar_lea.vmem [#allocation15], %s3528
          %3530 = dma.done %s3527, 16
        $region152: #{tpu_custom_call.1} parent=147 // pred_fallthru
          _
      $region148: #{tpu_custom_call.1} parent=5 // pred_fallthru
        _
    $region6: #{tpu_custom_call.1} parent=1 // loop_footer
      %s44 = sadd.s32 1, %s40
    $region7: #{tpu_custom_call.1} parent=1 // loop_footer_branch
      %39 = sbr.rel target = $region3
    $region8: #{tpu_custom_call.1} parent=1 // loop_exit
      _
    %3531 = vsyncpa [#allocation4], 1
    %s3532 = scalar_lea.sflag [#allocation4], 1
    %3533 = vsyncpa %s3532, 1
    %3534 = vsyncpa [#allocation7], 1
    %s3535 = scalar_lea.sflag [#allocation7], 1
    %3536 = vsyncpa %s3535, 1
    %3537 = vsyncpa [#allocation10], 1
    %s3538 = scalar_lea.sflag [#allocation10], 1
    %3539 = vsyncpa %s3538, 1
    %3540 = vsyncpa [#allocation13], 1
    %s3541 = scalar_lea.sflag [#allocation13], 1
    %3542 = vsyncpa %s3541, 1
    %3543 = vsyncpa [#allocation5], 1
    %s3544 = scalar_lea.sflag [#allocation5], 1
    %3545 = vsyncpa %s3544, 1

</llo_original>
